<compile_context>
chip_gen: v6e
topology: v6e:2x2x1
jax: 0.10.0
libtpu: 0.0.40
codegen_flags: <defaults>
</compile_context>

<pallas_src>
import jax
import jax.numpy as jnp
from jax.experimental import pallas as pl
from jax.experimental.pallas import tpu as pltpu


IMG_DIM = 784         # raw MNIST pixels
EMB_DIM = 10          # label-embedding width
C_PAD = 128           # embedding rows padded to one lane tile
H0, H1, H2 = 1024, 512, 256
OUT_PAD = 128         # true output dim is 1; padded to one lane tile
NEG_SLOPE = 0.2
MAX_ROW_TILE = 512    # batch tile (amortizes per-grid-step overhead)


def _round_up(n, m):
    return ((n + m - 1) // m) * m


def _leaky_relu(x):
    return jnp.where(x >= 0, x, NEG_SLOPE * x)


def discriminator_kernel(x_ref, c_ref,
                         w0a_ref, w0c_ref, b0_ref,
                         w1_ref, b1_ref,
                         w2_ref, b2_ref,
                         w3_ref, b3_ref,
                         o_ref):
    # Layer 0: split contraction -- raw image (784) + padded label embedding (128).
    # bf16 MXU matmuls with f32 accumulation; bias + LeakyReLU in f32 on the VPU.
    h = (jnp.dot(x_ref[...].astype(jnp.bfloat16), w0a_ref[...],
                 preferred_element_type=jnp.float32)
         + jnp.dot(c_ref[...], w0c_ref[...],
                   preferred_element_type=jnp.float32)
         + b0_ref[...])
    h = _leaky_relu(h)                                        # (TB, 1024) f32

    h = jnp.dot(h.astype(jnp.bfloat16), w1_ref[...],
                preferred_element_type=jnp.float32) + b1_ref[...]
    h = _leaky_relu(h)                                        # (TB, 512)

    h = jnp.dot(h.astype(jnp.bfloat16), w2_ref[...],
                preferred_element_type=jnp.float32) + b2_ref[...]
    h = _leaky_relu(h)                                        # (TB, 256)

    z = jnp.dot(h.astype(jnp.bfloat16), w3_ref[...],
                preferred_element_type=jnp.float32) + b3_ref[...]
    # Exact sigmoid (EUP exp + f32 divide); output stored bf16, 128 lanes wide.
    o_ref[...] = (1.0 / (1.0 + jnp.exp(-z))).astype(o_ref.dtype)


@jax.jit
def discriminator_forward(x, label, kparams):
    """x: (B, 784) f32, label: (B,) int32, kparams from prepare_params -> (B, 1) f32."""
    B = x.shape[0]

    # Batch tile: aim for >= 2 grid points (megacore sharding on v7x) while keeping tiles
    # MXU-sized; small batches become one 16-row-aligned tile.
    tb = max(16, min(MAX_ROW_TILE, _round_up(pl.cdiv(B, 2), 16)))
    Bp = _round_up(B, tb)
    nb = Bp // tb

    # Tiny glue only: exact f32 embedding lookup, padded to one lane tile, cast bf16.
    # The raw image is NOT rewritten/padded (no extra HBM pass over the activations).
    c = jnp.take(kparams["emb"], label, axis=0)                               # (B, 10) f32
    c = jnp.pad(c, ((0, Bp - B), (0, C_PAD - EMB_DIM))).astype(jnp.bfloat16)  # (Bp, 128) bf16
    x_in = x if Bp == B else jnp.pad(x, ((0, Bp - B), (0, 0)))                # (Bp, 784) f32

    def row_spec(width):
        return pl.BlockSpec((tb, width), lambda i: (i, 0))

    def res_spec(shape):
        # Resident weights/biases: constant block index, single-buffered (no dead VMEM).
        return pl.BlockSpec(shape, lambda i: (0, 0),
                            pipeline_mode=pl.Buffered(buffer_count=1))

    out = pl.pallas_call(
        discriminator_kernel,
        out_shape=jax.ShapeDtypeStruct((Bp, OUT_PAD), jnp.bfloat16),
        grid=(nb,),
        in_specs=[
            row_spec(IMG_DIM),                                # x (f32, full 784 width)
            row_spec(C_PAD),                                  # label embedding rows (bf16)
            res_spec((IMG_DIM, H0)), res_spec((C_PAD, H0)), res_spec((1, H0)),
            res_spec((H0, H1)),      res_spec((1, H1)),
            res_spec((H1, H2)),      res_spec((1, H2)),
            res_spec((H2, OUT_PAD)), res_spec((1, OUT_PAD)),
        ],
        out_specs=row_spec(OUT_PAD),
        compiler_params=pltpu.CompilerParams(
            dimension_semantics=("parallel",),
            vmem_limit_bytes=32 << 20),
    )(x_in, c,
      kparams["w0a"], kparams["w0c"], kparams["b0"],
      kparams["w1"], kparams["b1"],
      kparams["w2"], kparams["b2"],
      kparams["w3"], kparams["b3"])

    return out[:B, :1].astype(jnp.float32)


def init_params(key):
    """Raw f32 parameters matching the nn.Module shapes (weights stored as (in, out))."""
    ks = jax.random.split(key, 9)

    def lin(kw, kb, fan_in, fan_out):
        bound = 1.0 / jnp.sqrt(fan_in)
        w = jax.random.uniform(kw, (fan_in, fan_out), jnp.float32, -bound, bound)
        b = jax.random.uniform(kb, (fan_out,), jnp.float32, -bound, bound)
        return w, b

    return {
        "emb": jax.random.normal(ks[0], (10, 10), jnp.float32),
        "l0": lin(ks[1], ks[2], IMG_DIM + EMB_DIM, H0),
        "l1": lin(ks[3], ks[4], H0, H1),
        "l2": lin(ks[5], ks[6], H1, H2),
        "l3": lin(ks[7], ks[8], H2, 1),
    }


def prepare_params(params):
    """One-time split + pad + bf16 cast so no per-call weight copies hit HBM."""
    emb = params["emb"]
    w0, b0 = params["l0"]
    w1, b1 = params["l1"]
    w2, b2 = params["l2"]
    w3, b3 = params["l3"]
    return {
        "emb": emb,                                                   # f32 (exact lookup)
        # Layer 0 weight split: image slice (784,1024) + embedding slice padded to 128 rows.
        "w0a": w0[:IMG_DIM, :].astype(jnp.bfloat16),
        "w0c": jnp.pad(w0[IMG_DIM:, :],
                       ((0, C_PAD - EMB_DIM), (0, 0))).astype(jnp.bfloat16),
        "b0": b0.reshape(1, H0),
        "w1": w1.astype(jnp.bfloat16),
        "b1": b1.reshape(1, H1),
        "w2": w2.astype(jnp.bfloat16),
        "b2": b2.reshape(1, H2),
        "w3": jnp.pad(w3, ((0, 0), (0, OUT_PAD - 1))).astype(jnp.bfloat16),
        "b3": jnp.pad(b3.reshape(1, 1), ((0, 0), (0, OUT_PAD - 1))),
    }


def reference_forward_f32(x, label, params):
    """Pure-JAX full-f32 reference (eval-mode dropout)."""
    emb, (w0, b0), (w1, b1), (w2, b2), (w3, b3) = (
        params["emb"], params["l0"], params["l1"], params["l2"], params["l3"])
    c = jnp.take(emb, label, axis=0)
    h = jnp.concatenate([x, c], axis=1)
    h = jax.nn.leaky_relu(h @ w0 + b0, NEG_SLOPE)
    h = jax.nn.leaky_relu(h @ w1 + b1, NEG_SLOPE)
    h = jax.nn.leaky_relu(h @ w2 + b2, NEG_SLOPE)
    return jax.nn.sigmoid(h @ w3 + b3)


def reference_forward_bf16(x, label, params):
    """Reference matching the kernel's matmul numerics: bf16 operands, f32 accumulation."""
    emb, (w0, b0), (w1, b1), (w2, b2), (w3, b3) = (
        params["emb"], params["l0"], params["l1"], params["l2"], params["l3"])

    def lin(h, w, b):
        return jnp.dot(h.astype(jnp.bfloat16), w.astype(jnp.bfloat16),
                       preferred_element_type=jnp.float32) + b

    c = jnp.take(emb, label, axis=0)
    h = jnp.concatenate([x, c], axis=1)
    h = jax.nn.leaky_relu(lin(h, w0, b0), NEG_SLOPE)
    h = jax.nn.leaky_relu(lin(h, w1, b1), NEG_SLOPE)
    h = jax.nn.leaky_relu(lin(h, w2, b2), NEG_SLOPE)
    z = lin(h, w3, b3)
    return 1.0 / (1.0 + jnp.exp(-z))


if __name__ == "__main__":
    key = jax.random.PRNGKey(0)
    kparam, kx, kl = jax.random.split(key, 3)

    params = init_params(kparam)
    kparams = prepare_params(params)   # split + padded + bf16-cast once, reused every call

    B = 2
    x = jax.random.normal(kx, (B, 784), jnp.float32)
    label = jax.random.randint(kl, (B,), 0, 10, jnp.int32)

    y = discriminator_forward(x, label, kparams)
    y = jax.block_until_ready(y)
    assert y.shape == (B, 1), y.shape

    # Check against a reference using the same bf16-matmul numerics (allowing for the
    # bf16 output store, ~2e-3 abs near 0.5).
    y_bf16 = reference_forward_bf16(x, label, params)
    assert jnp.allclose(y, y_bf16, atol=1e-2, rtol=1e-2), (y, y_bf16)

    # Loose check against the full-precision PyTorch-equivalent math.
    y_f32 = reference_forward_f32(x, label, params)
    assert jnp.allclose(y, y_f32, atol=5e-2, rtol=5e-2), (y, y_f32)

    print("KERNEL_OK")
</pallas_src>

<mosaic_0001>
module attributes {stable_mosaic.version = 11 : i64} {
  func.func @discriminator_kernel(%arg0: i32, %arg1: memref<16x784xf32, #tpu.memory_space<vmem>>, %arg2: memref<16x128xbf16, #tpu.memory_space<vmem>>, %arg3: memref<784x1024xbf16, #tpu.memory_space<vmem>>, %arg4: memref<128x1024xbf16, #tpu.memory_space<vmem>>, %arg5: memref<1x1024xf32, #tpu.memory_space<vmem>>, %arg6: memref<1024x512xbf16, #tpu.memory_space<vmem>>, %arg7: memref<1x512xf32, #tpu.memory_space<vmem>>, %arg8: memref<512x256xbf16, #tpu.memory_space<vmem>>, %arg9: memref<1x256xf32, #tpu.memory_space<vmem>>, %arg10: memref<256x128xbf16, #tpu.memory_space<vmem>>, %arg11: memref<1x128xf32, #tpu.memory_space<vmem>>, %arg12: memref<16x128xbf16, #tpu.memory_space<vmem>>) attributes {dimension_semantics = [#tpu.dimension_semantics<parallel>], iteration_bounds = array<i64: 1>, scalar_prefetch = 0 : i64, scratch_operands = 0 : i64, tpu.core_type = #tpu.core_type<tc>, window_params = [{transform_indices = @transform_0, window_bounds = array<i64: 16, 784>}, {transform_indices = @transform_1, window_bounds = array<i64: 16, 128>}, {pipeline_mode = #tpu.pipeline_mode<synchronous>, transform_indices = @transform_2, window_bounds = array<i64: 784, 1024>}, {pipeline_mode = #tpu.pipeline_mode<synchronous>, transform_indices = @transform_3, window_bounds = array<i64: 128, 1024>}, {pipeline_mode = #tpu.pipeline_mode<synchronous>, transform_indices = @transform_4, window_bounds = array<i64: 1, 1024>}, {pipeline_mode = #tpu.pipeline_mode<synchronous>, transform_indices = @transform_5, window_bounds = array<i64: 1024, 512>}, {pipeline_mode = #tpu.pipeline_mode<synchronous>, transform_indices = @transform_6, window_bounds = array<i64: 1, 512>}, {pipeline_mode = #tpu.pipeline_mode<synchronous>, transform_indices = @transform_7, window_bounds = array<i64: 512, 256>}, {pipeline_mode = #tpu.pipeline_mode<synchronous>, transform_indices = @transform_8, window_bounds = array<i64: 1, 256>}, {pipeline_mode = #tpu.pipeline_mode<synchronous>, transform_indices = @transform_9, window_bounds = array<i64: 256, 128>}, {pipeline_mode = #tpu.pipeline_mode<synchronous>, transform_indices = @transform_10, window_bounds = array<i64: 1, 128>}, {transform_indices = @transform_11, window_bounds = array<i64: 16, 128>}]} {
    %c0 = arith.constant 0 : index
    %c0_0 = arith.constant 0 : index
    %0 = vector.load %arg1[%c0, %c0_0] : memref<16x784xf32, #tpu.memory_space<vmem>>, vector<16x784xf32>
    %1 = arith.truncf %0 : vector<16x784xf32> to vector<16x784xbf16>
    %c0_1 = arith.constant 0 : index
    %c0_2 = arith.constant 0 : index
    %2 = vector.load %arg3[%c0_1, %c0_2] : memref<784x1024xbf16, #tpu.memory_space<vmem>>, vector<784x1024xbf16>
    %cst = arith.constant dense<0.000000e+00> : vector<16x1024xf32>
    %3 = tpu.matmul %1, %2, %cst {dimension_numbers = #tpu.dot_dimension_numbers<[1], [0], [0], [1], [0, 0, 1, 1], [], []>} : vector<16x784xbf16>, vector<784x1024xbf16>, vector<16x1024xf32> -> vector<16x1024xf32>
    %c0_3 = arith.constant 0 : index
    %c0_4 = arith.constant 0 : index
    %4 = vector.load %arg2[%c0_3, %c0_4] : memref<16x128xbf16, #tpu.memory_space<vmem>>, vector<16x128xbf16>
    %c0_5 = arith.constant 0 : index
    %c0_6 = arith.constant 0 : index
    %5 = vector.load %arg4[%c0_5, %c0_6] : memref<128x1024xbf16, #tpu.memory_space<vmem>>, vector<128x1024xbf16>
    %cst_7 = arith.constant dense<0.000000e+00> : vector<16x1024xf32>
    %6 = tpu.matmul %4, %5, %cst_7 {dimension_numbers = #tpu.dot_dimension_numbers<[1], [0], [0], [1], [0, 0, 1, 1], [], []>} : vector<16x128xbf16>, vector<128x1024xbf16>, vector<16x1024xf32> -> vector<16x1024xf32>
    %7 = arith.addf %3, %6 : vector<16x1024xf32>
    %c0_8 = arith.constant 0 : index
    %c0_9 = arith.constant 0 : index
    %8 = vector.load %arg5[%c0_8, %c0_9] : memref<1x1024xf32, #tpu.memory_space<vmem>>, vector<1x1024xf32>
    %9 = vector.broadcast %8 : vector<1x1024xf32> to vector<16x1024xf32>
    %10 = arith.addf %7, %9 : vector<16x1024xf32>
    %cst_10 = arith.constant 0.000000e+00 : f32
    %11 = vector.broadcast %cst_10 : f32 to vector<16x1024xf32>
    %12 = arith.cmpf oge, %10, %11 : vector<16x1024xf32>
    %cst_11 = arith.constant 2.000000e-01 : f32
    %13 = vector.broadcast %cst_11 : f32 to vector<16x1024xf32>
    %14 = arith.mulf %13, %10 : vector<16x1024xf32>
    %15 = arith.select %12, %10, %14 : vector<16x1024xi1>, vector<16x1024xf32>
    %16 = arith.truncf %15 : vector<16x1024xf32> to vector<16x1024xbf16>
    %c0_12 = arith.constant 0 : index
    %c0_13 = arith.constant 0 : index
    %17 = vector.load %arg6[%c0_12, %c0_13] : memref<1024x512xbf16, #tpu.memory_space<vmem>>, vector<1024x512xbf16>
    %cst_14 = arith.constant dense<0.000000e+00> : vector<16x512xf32>
    %18 = tpu.matmul %16, %17, %cst_14 {dimension_numbers = #tpu.dot_dimension_numbers<[1], [0], [0], [1], [0, 0, 1, 1], [], []>} : vector<16x1024xbf16>, vector<1024x512xbf16>, vector<16x512xf32> -> vector<16x512xf32>
    %c0_15 = arith.constant 0 : index
    %c0_16 = arith.constant 0 : index
    %19 = vector.load %arg7[%c0_15, %c0_16] : memref<1x512xf32, #tpu.memory_space<vmem>>, vector<1x512xf32>
    %20 = vector.broadcast %19 : vector<1x512xf32> to vector<16x512xf32>
    %21 = arith.addf %18, %20 : vector<16x512xf32>
    %cst_17 = arith.constant 0.000000e+00 : f32
    %22 = vector.broadcast %cst_17 : f32 to vector<16x512xf32>
    %23 = arith.cmpf oge, %21, %22 : vector<16x512xf32>
    %cst_18 = arith.constant 2.000000e-01 : f32
    %24 = vector.broadcast %cst_18 : f32 to vector<16x512xf32>
    %25 = arith.mulf %24, %21 : vector<16x512xf32>
    %26 = arith.select %23, %21, %25 : vector<16x512xi1>, vector<16x512xf32>
    %27 = arith.truncf %26 : vector<16x512xf32> to vector<16x512xbf16>
    %c0_19 = arith.constant 0 : index
    %c0_20 = arith.constant 0 : index
    %28 = vector.load %arg8[%c0_19, %c0_20] : memref<512x256xbf16, #tpu.memory_space<vmem>>, vector<512x256xbf16>
    %cst_21 = arith.constant dense<0.000000e+00> : vector<16x256xf32>
    %29 = tpu.matmul %27, %28, %cst_21 {dimension_numbers = #tpu.dot_dimension_numbers<[1], [0], [0], [1], [0, 0, 1, 1], [], []>} : vector<16x512xbf16>, vector<512x256xbf16>, vector<16x256xf32> -> vector<16x256xf32>
    %c0_22 = arith.constant 0 : index
    %c0_23 = arith.constant 0 : index
    %30 = vector.load %arg9[%c0_22, %c0_23] : memref<1x256xf32, #tpu.memory_space<vmem>>, vector<1x256xf32>
    %31 = vector.broadcast %30 : vector<1x256xf32> to vector<16x256xf32>
    %32 = arith.addf %29, %31 : vector<16x256xf32>
    %cst_24 = arith.constant 0.000000e+00 : f32
    %33 = vector.broadcast %cst_24 : f32 to vector<16x256xf32>
    %34 = arith.cmpf oge, %32, %33 : vector<16x256xf32>
    %cst_25 = arith.constant 2.000000e-01 : f32
    %35 = vector.broadcast %cst_25 : f32 to vector<16x256xf32>
    %36 = arith.mulf %35, %32 : vector<16x256xf32>
    %37 = arith.select %34, %32, %36 : vector<16x256xi1>, vector<16x256xf32>
    %38 = arith.truncf %37 : vector<16x256xf32> to vector<16x256xbf16>
    %c0_26 = arith.constant 0 : index
    %c0_27 = arith.constant 0 : index
    %39 = vector.load %arg10[%c0_26, %c0_27] : memref<256x128xbf16, #tpu.memory_space<vmem>>, vector<256x128xbf16>
    %cst_28 = arith.constant dense<0.000000e+00> : vector<16x128xf32>
    %40 = tpu.matmul %38, %39, %cst_28 {dimension_numbers = #tpu.dot_dimension_numbers<[1], [0], [0], [1], [0, 0, 1, 1], [], []>} : vector<16x256xbf16>, vector<256x128xbf16>, vector<16x128xf32> -> vector<16x128xf32>
    %c0_29 = arith.constant 0 : index
    %c0_30 = arith.constant 0 : index
    %41 = vector.load %arg11[%c0_29, %c0_30] : memref<1x128xf32, #tpu.memory_space<vmem>>, vector<1x128xf32>
    %42 = vector.broadcast %41 : vector<1x128xf32> to vector<16x128xf32>
    %43 = arith.addf %40, %42 : vector<16x128xf32>
    %cst_31 = arith.constant 0.000000e+00 : f32
    %44 = vector.broadcast %cst_31 : f32 to vector<16x128xf32>
    %45 = arith.subf %44, %43 : vector<16x128xf32>
    %46 = math.exp %45 : vector<16x128xf32>
    %cst_32 = arith.constant 1.000000e+00 : f32
    %47 = vector.broadcast %cst_32 : f32 to vector<16x128xf32>
    %48 = arith.addf %47, %46 : vector<16x128xf32>
    %cst_33 = arith.constant 1.000000e+00 : f32
    %49 = vector.broadcast %cst_33 : f32 to vector<16x128xf32>
    %50 = arith.divf %49, %48 : vector<16x128xf32>
    %51 = arith.truncf %50 : vector<16x128xf32> to vector<16x128xbf16>
    %c0_34 = arith.constant 0 : index
    %c0_35 = arith.constant 0 : index
    %52 = vector.load %arg12[%c0_34, %c0_35] : memref<16x128xbf16, #tpu.memory_space<vmem>>, vector<16x128xbf16>
    tpu.vector_store %arg12[%c0_34, %c0_35], %51 {strides = array<i32>} : memref<16x128xbf16, #tpu.memory_space<vmem>>, vector<16x128xbf16>,
    return
  }
  func.func @transform_0(%arg0: i32) -> (i32, i32) {
    %c0_i32 = arith.constant 0 : i32
    %c0_i32_0 = arith.constant 0 : i32
    return %arg0, %c0_i32 : i32, i32
  }
  func.func @transform_1(%arg0: i32) -> (i32, i32) {
    %c0_i32 = arith.constant 0 : i32
    %c0_i32_0 = arith.constant 0 : i32
    return %arg0, %c0_i32 : i32, i32
  }
  func.func @transform_2(%arg0: i32) -> (i32, i32) {
    %c0_i32 = arith.constant 0 : i32
    %c0_i32_0 = arith.constant 0 : i32
    %c0_i32_1 = arith.constant 0 : i32
    return %c0_i32, %c0_i32_0 : i32, i32
  }
  func.func @transform_3(%arg0: i32) -> (i32, i32) {
    %c0_i32 = arith.constant 0 : i32
    %c0_i32_0 = arith.constant 0 : i32
    %c0_i32_1 = arith.constant 0 : i32
    return %c0_i32, %c0_i32_0 : i32, i32
  }
  func.func @transform_4(%arg0: i32) -> (i32, i32) {
    %c0_i32 = arith.constant 0 : i32
    %c0_i32_0 = arith.constant 0 : i32
    %c0_i32_1 = arith.constant 0 : i32
    return %c0_i32, %c0_i32_0 : i32, i32
  }
  func.func @transform_5(%arg0: i32) -> (i32, i32) {
    %c0_i32 = arith.constant 0 : i32
    %c0_i32_0 = arith.constant 0 : i32
    %c0_i32_1 = arith.constant 0 : i32
    return %c0_i32, %c0_i32_0 : i32, i32
  }
  func.func @transform_6(%arg0: i32) -> (i32, i32) {
    %c0_i32 = arith.constant 0 : i32
    %c0_i32_0 = arith.constant 0 : i32
    %c0_i32_1 = arith.constant 0 : i32
    return %c0_i32, %c0_i32_0 : i32, i32
  }
  func.func @transform_7(%arg0: i32) -> (i32, i32) {
    %c0_i32 = arith.constant 0 : i32
    %c0_i32_0 = arith.constant 0 : i32
    %c0_i32_1 = arith.constant 0 : i32
    return %c0_i32, %c0_i32_0 : i32, i32
  }
  func.func @transform_8(%arg0: i32) -> (i32, i32) {
    %c0_i32 = arith.constant 0 : i32
    %c0_i32_0 = arith.constant 0 : i32
    %c0_i32_1 = arith.constant 0 : i32
    return %c0_i32, %c0_i32_0 : i32, i32
  }
  func.func @transform_9(%arg0: i32) -> (i32, i32) {
    %c0_i32 = arith.constant 0 : i32
    %c0_i32_0 = arith.constant 0 : i32
    %c0_i32_1 = arith.constant 0 : i32
    return %c0_i32, %c0_i32_0 : i32, i32
  }
  func.func @transform_10(%arg0: i32) -> (i32, i32) {
    %c0_i32 = arith.constant 0 : i32
    %c0_i32_0 = arith.constant 0 : i32
    %c0_i32_1 = arith.constant 0 : i32
    return %c0_i32, %c0_i32_0 : i32, i32
  }
  func.func @transform_11(%arg0: i32) -> (i32, i32) {
    %c0_i32 = arith.constant 0 : i32
    %c0_i32_0 = arith.constant 0 : i32
    return %arg0, %c0_i32 : i32, i32
  }
}

</mosaic_0001>

<llo_original>
// kernel: discriminator_forward.1
$region0: #{discriminator_forward.1}
  #allocation0 [shape = 'u32[]', space=smem, size = 0x4, offset = 0x4, fixed_abs, tag = 'smem constant byte address 0x4 - core index']
  #allocation1 [shape = 'u32[144,128]{1,0:T(1,128)}', space=vmem, size = 0x12000, scoped, tag = 'internal scratch']
  %s0 = inlined_call_operand.vmem [shape: f32[16,784], index: 0, kind: input, shape index: {}]
  %s1 = inlined_call_operand.vmem [shape: bf16[16,128], index: 1, kind: input, shape index: {}]
  %s2 = inlined_call_operand.hbm [shape: bf16[784,1024], index: 2, kind: input, shape index: {}]
  %s3 = inlined_call_operand.hbm [shape: bf16[128,1024], index: 3, kind: input, shape index: {}]
  %s4 = inlined_call_operand.hbm [shape: f32[1,1024], index: 4, kind: input, shape index: {}]
  %s5 = inlined_call_operand.hbm [shape: bf16[1024,512], index: 5, kind: input, shape index: {}]
  %s6 = inlined_call_operand.hbm [shape: f32[1,512], index: 6, kind: input, shape index: {}]
  %s7 = inlined_call_operand.hbm [shape: bf16[512,256], index: 7, kind: input, shape index: {}]
  %s8 = inlined_call_operand.hbm [shape: f32[1,256], index: 8, kind: input, shape index: {}]
  %s9 = inlined_call_operand.hbm [shape: bf16[256,128], index: 9, kind: input, shape index: {}]
  %s10 = inlined_call_operand.hbm [shape: f32[1,128], index: 10, kind: input, shape index: {}]
  %s11 = inlined_call_operand.vmem [shape: bf16[16,128], index: 11, kind: output, shape index: {}]
  %s12 = sld [smem:[#allocation0]]
  $region90: #{discriminator_forward.1} parent=0
    _
  %s14 = ssub.s32 1, %s12
  %s15 = scalar_select 0, %s14, %s12
  $region1: #{discriminator_forward.1} parent=0
    #allocation2 [shape = 'u8[1605632]{0}', space=vmem, size = 0x188000, scoped, tag = 'input window, operand 2, single buffered']
    #allocation3 [shape = 's32[1]{0}', space=sflag, size = 0x4, scoped, tag = 'scoped memory for discriminator_forward.1']
    #allocation4 [shape = 'u8[262144]{0}', space=vmem, size = 0x40000, scoped, tag = 'input window, operand 3, single buffered']
    #allocation5 [shape = 's32[1]{0}', space=sflag, size = 0x4, scoped, tag = 'scoped memory for discriminator_forward.1']
    #allocation6 [shape = 'u8[4096]{0}', space=vmem, size = 0x1000, scoped, tag = 'input window, operand 4, single buffered']
    #allocation7 [shape = 'u8[1048576]{0}', space=vmem, size = 0x100000, scoped, tag = 'input window, operand 5, single buffered']
    #allocation8 [shape = 's32[1]{0}', space=sflag, size = 0x4, scoped, tag = 'scoped memory for discriminator_forward.1']
    #allocation9 [shape = 'u8[2048]{0}', space=vmem, size = 0x800, scoped, tag = 'input window, operand 6, single buffered']
    #allocation10 [shape = 'u8[262144]{0}', space=vmem, size = 0x40000, scoped, tag = 'input window, operand 7, single buffered']
    #allocation11 [shape = 's32[1]{0}', space=sflag, size = 0x4, scoped, tag = 'scoped memory for discriminator_forward.1']
    #allocation12 [shape = 'u8[1024]{0}', space=vmem, size = 0x400, scoped, tag = 'input window, operand 8, single buffered']
    #allocation13 [shape = 'u8[65536]{0}', space=vmem, size = 0x10000, scoped, tag = 'input window, operand 9, single buffered']
    #allocation14 [shape = 's32[1]{0}', space=sflag, size = 0x4, scoped, tag = 'scoped memory for discriminator_forward.1']
    #allocation15 [shape = 'u8[512]{0}', space=vmem, size = 0x400, scoped, tag = 'input window, operand 10, single buffered']
    %16 = vsyncpa [#allocation3], 0
    %17 = vsyncpa [#allocation5], 0
    %18 = vsyncpa [#allocation8], 0
    %19 = vsyncpa [#allocation11], 0
    %20 = vsyncpa [#allocation14], 0
    // Predicated region
    $region2: #{discriminator_forward.1} parent=1 // pred_check
      _
    $region3: #{discriminator_forward.1} parent=1 // pred_check_branch
      %22 = sbr.rel (0) target = $region5
    $region4: #{discriminator_forward.1} parent=1 // pred_region
      _
    $region5: #{discriminator_forward.1} parent=1 // pred_fallthru
      _
    // Predicated region
    $region6: #{discriminator_forward.1} parent=1 // pred_check
      _
    $region7: #{discriminator_forward.1} parent=1 // pred_check_branch
      %24 = sbr.rel (0) target = $region9
    $region8: #{discriminator_forward.1} parent=1 // pred_region
      _
    $region9: #{discriminator_forward.1} parent=1 // pred_fallthru
      _
    // Predicated region
    $region10: #{discriminator_forward.1} parent=1 // pred_check
      _
    $region11: #{discriminator_forward.1} parent=1 // pred_check_branch
      %26 = sbr.rel (0) target = $region13
    $region12: #{discriminator_forward.1} parent=1 // pred_region
      %s28 = ssub.s32 50176, 50176
      %29 = vsyncadd [#allocation3], %s28
      %s30 = sshll.u32 [#allocation2], 4
      %s31 = int_to_ptr.vmem [resolvable:$true] %s30
      %36 = dma.hbm_to_vmem [thread:$0]  %s2, 50176, %s31, [#allocation3], 512, 512, 32
    $region13: #{discriminator_forward.1} parent=1 // pred_fallthru
      _
    // Predicated region
    $region14: #{discriminator_forward.1} parent=1 // pred_check
      _
    $region15: #{discriminator_forward.1} parent=1 // pred_check_branch
      %38 = sbr.rel (0) target = $region17
    $region16: #{discriminator_forward.1} parent=1 // pred_region
      %s40 = ssub.s32 8192, 8192
      %41 = vsyncadd [#allocation5], %s40
      %s42 = sshll.u32 [#allocation4], 4
      %s43 = int_to_ptr.vmem [resolvable:$true] %s42
      %48 = dma.hbm_to_vmem [thread:$0]  %s3, 8192, %s43, [#allocation5], 512, 512, 32
    $region17: #{discriminator_forward.1} parent=1 // pred_fallthru
      _
    // Predicated region
    $region18: #{discriminator_forward.1} parent=1 // pred_check
      _
    $region19: #{discriminator_forward.1} parent=1 // pred_check_branch
      %50 = sbr.rel (0) target = $region21
    $region20: #{discriminator_forward.1} parent=1 // pred_region
      %s52 = ssub.s32 128, 128
      %53 = vsyncadd [#allocation5], %s52
      %s55 = sshll.u32 [#allocation6], 4
      %s56 = int_to_ptr.vmem [resolvable:$true] %s55
      %58 = dma.hbm_to_vmem [thread:$0]  %s4, 128, %s56, [#allocation5]
    $region21: #{discriminator_forward.1} parent=1 // pred_fallthru
      _
    // Predicated region
    $region22: #{discriminator_forward.1} parent=1 // pred_check
      _
    $region23: #{discriminator_forward.1} parent=1 // pred_check_branch
      %60 = sbr.rel (0) target = $region25
    $region24: #{discriminator_forward.1} parent=1 // pred_region
      %s62 = ssub.s32 32768, 32768
      %63 = vsyncadd [#allocation8], %s62
      %s64 = sshll.u32 [#allocation7], 4
      %s65 = int_to_ptr.vmem [resolvable:$true] %s64
      %70 = dma.hbm_to_vmem [thread:$0]  %s5, 32768, %s65, [#allocation8], 256, 256, 16
    $region25: #{discriminator_forward.1} parent=1 // pred_fallthru
      _
    // Predicated region
    $region26: #{discriminator_forward.1} parent=1 // pred_check
      _
    $region27: #{discriminator_forward.1} parent=1 // pred_check_branch
      %72 = sbr.rel (0) target = $region29
    $region28: #{discriminator_forward.1} parent=1 // pred_region
      %s74 = ssub.s32 64, 64
      %75 = vsyncadd [#allocation8], %s74
      %s77 = sshll.u32 [#allocation9], 4
      %s78 = int_to_ptr.vmem [resolvable:$true] %s77
      %80 = dma.hbm_to_vmem [thread:$0]  %s6, 64, %s78, [#allocation8]
    $region29: #{discriminator_forward.1} parent=1 // pred_fallthru
      _
    // Predicated region
    $region30: #{discriminator_forward.1} parent=1 // pred_check
      _
    $region31: #{discriminator_forward.1} parent=1 // pred_check_branch
      %82 = sbr.rel (0) target = $region33
    $region32: #{discriminator_forward.1} parent=1 // pred_region
      %s84 = ssub.s32 8192, 8192
      %85 = vsyncadd [#allocation11], %s84
      %s86 = sshll.u32 [#allocation10], 4
      %s87 = int_to_ptr.vmem [resolvable:$true] %s86
      %92 = dma.hbm_to_vmem [thread:$0]  %s7, 8192, %s87, [#allocation11], 128, 128, 8
    $region33: #{discriminator_forward.1} parent=1 // pred_fallthru
      _
    // Predicated region
    $region34: #{discriminator_forward.1} parent=1 // pred_check
      _
    $region35: #{discriminator_forward.1} parent=1 // pred_check_branch
      %94 = sbr.rel (0) target = $region37
    $region36: #{discriminator_forward.1} parent=1 // pred_region
      %s96 = ssub.s32 32, 32
      %97 = vsyncadd [#allocation11], %s96
      %s99 = sshll.u32 [#allocation12], 4
      %s100 = int_to_ptr.vmem [resolvable:$true] %s99
      %102 = dma.hbm_to_vmem [thread:$0]  %s8, 32, %s100, [#allocation11]
    $region37: #{discriminator_forward.1} parent=1 // pred_fallthru
      _
    // Predicated region
    $region38: #{discriminator_forward.1} parent=1 // pred_check
      _
    $region39: #{discriminator_forward.1} parent=1 // pred_check_branch
      %104 = sbr.rel (0) target = $region41
    $region40: #{discriminator_forward.1} parent=1 // pred_region
      %s106 = ssub.s32 2048, 2048
      %107 = vsyncadd [#allocation14], %s106
      %s108 = sshll.u32 [#allocation13], 4
      %s109 = int_to_ptr.vmem [resolvable:$true] %s108
      %114 = dma.hbm_to_vmem [thread:$0]  %s9, 2048, %s109, [#allocation14], 64, 64, 4
    $region41: #{discriminator_forward.1} parent=1 // pred_fallthru
      _
    // Predicated region
    $region42: #{discriminator_forward.1} parent=1 // pred_check
      _
    $region43: #{discriminator_forward.1} parent=1 // pred_check_branch
      %116 = sbr.rel (0) target = $region45
    $region44: #{discriminator_forward.1} parent=1 // pred_region
      %s118 = ssub.s32 16, 16
      %119 = vsyncadd [#allocation14], %s118
      %s121 = sshll.u32 [#allocation15], 4
      %s122 = int_to_ptr.vmem [resolvable:$true] %s121
      %124 = dma.hbm_to_vmem [thread:$0]  %s10, 16, %s122, [#allocation14]
    $region45: #{discriminator_forward.1} parent=1 // pred_fallthru
      _
    // Predicated region
    $region46: #{discriminator_forward.1} parent=1 // pred_check
      _
    $region47: #{discriminator_forward.1} parent=1 // pred_check_branch
      %126 = sbr.rel (0) target = $region49
    $region48: #{discriminator_forward.1} parent=1 // pred_region
      %127 = dma.done [#allocation3], 50176
    $region49: #{discriminator_forward.1} parent=1 // pred_fallthru
      _
    // Predicated region
    $region50: #{discriminator_forward.1} parent=1 // pred_check
      _
    $region51: #{discriminator_forward.1} parent=1 // pred_check_branch
      %129 = sbr.rel (0) target = $region53
    $region52: #{discriminator_forward.1} parent=1 // pred_region
      %130 = dma.done [#allocation5], 8192
    $region53: #{discriminator_forward.1} parent=1 // pred_fallthru
      _
    // Predicated region
    $region54: #{discriminator_forward.1} parent=1 // pred_check
      _
    $region55: #{discriminator_forward.1} parent=1 // pred_check_branch
      %132 = sbr.rel (0) target = $region57
    $region56: #{discriminator_forward.1} parent=1 // pred_region
      %133 = dma.done [#allocation5], 128
    $region57: #{discriminator_forward.1} parent=1 // pred_fallthru
      _
    // Predicated region
    $region58: #{discriminator_forward.1} parent=1 // pred_check
      _
    $region59: #{discriminator_forward.1} parent=1 // pred_check_branch
      %135 = sbr.rel (0) target = $region61
    $region60: #{discriminator_forward.1} parent=1 // pred_region
      %136 = dma.done [#allocation8], 32768
    $region61: #{discriminator_forward.1} parent=1 // pred_fallthru
      _
    // Predicated region
    $region62: #{discriminator_forward.1} parent=1 // pred_check
      _
    $region63: #{discriminator_forward.1} parent=1 // pred_check_branch
      %138 = sbr.rel (0) target = $region65
    $region64: #{discriminator_forward.1} parent=1 // pred_region
      %139 = dma.done [#allocation8], 64
    $region65: #{discriminator_forward.1} parent=1 // pred_fallthru
      _
    // Predicated region
    $region66: #{discriminator_forward.1} parent=1 // pred_check
      _
    $region67: #{discriminator_forward.1} parent=1 // pred_check_branch
      %141 = sbr.rel (0) target = $region69
    $region68: #{discriminator_forward.1} parent=1 // pred_region
      %142 = dma.done [#allocation11], 8192
    $region69: #{discriminator_forward.1} parent=1 // pred_fallthru
      _
    // Predicated region
    $region70: #{discriminator_forward.1} parent=1 // pred_check
      _
    $region71: #{discriminator_forward.1} parent=1 // pred_check_branch
      %144 = sbr.rel (0) target = $region73
    $region72: #{discriminator_forward.1} parent=1 // pred_region
      %145 = dma.done [#allocation11], 32
    $region73: #{discriminator_forward.1} parent=1 // pred_fallthru
      _
    // Predicated region
    $region74: #{discriminator_forward.1} parent=1 // pred_check
      _
    $region75: #{discriminator_forward.1} parent=1 // pred_check_branch
      %147 = sbr.rel (0) target = $region77
    $region76: #{discriminator_forward.1} parent=1 // pred_region
      %148 = dma.done [#allocation14], 2048
    $region77: #{discriminator_forward.1} parent=1 // pred_fallthru
      _
    // Predicated region
    $region78: #{discriminator_forward.1} parent=1 // pred_check
      _
    $region79: #{discriminator_forward.1} parent=1 // pred_check_branch
      %150 = sbr.rel (0) target = $region81
    $region80: #{discriminator_forward.1} parent=1 // pred_region
      %151 = dma.done [#allocation14], 16
    $region81: #{discriminator_forward.1} parent=1 // pred_fallthru
      _
    %v153 = vld [vmem:[%s0] sm:$0xff]
    %v154 = vld [vmem:[%s0 + $0x8] sm:$0xff]
    %v155 = vld [vmem:[%s0 + $0x10] sm:$0xff]
    %v156 = vld [vmem:[%s0 + $0x18] sm:$0xff]
    %v157 = vld [vmem:[%s0 + $0x20] sm:$0xff]
    %v158 = vld [vmem:[%s0 + $0x28] sm:$0xff]
    %v159 = vld [vmem:[%s0 + $0x30] sm:$0xff]
    %v160 = vld [vmem:[%s0 + $0x38] sm:$0xff]
    %v161 = vld [vmem:[%s0 + $0x40] sm:$0xff]
    %v162 = vld [vmem:[%s0 + $0x48] sm:$0xff]
    %v163 = vld [vmem:[%s0 + $0x50] sm:$0xff]
    %v164 = vld [vmem:[%s0 + $0x58] sm:$0xff]
    %v165 = vld [vmem:[%s0 + $0x60] sm:$0xff]
    %v166 = vld [vmem:[%s0 + $0x68] sm:$0xff]
    %v167 = vpack.c.bf16 %v160, %v153
    %v168 = vpack.c.bf16 %v161, %v154
    %v169 = vpack.c.bf16 %v162, %v155
    %v170 = vpack.c.bf16 %v163, %v156
    %v171 = vpack.c.bf16 %v164, %v157
    %v172 = vpack.c.bf16 %v165, %v158
    %v173 = vpack.c.bf16 %v166, %v159
    %v174 = vld [vmem:[#allocation2] sm:$0xff]
    %v175 = vld [vmem:[#allocation2 + $0x8] sm:$0xff]
    %v176 = vld [vmem:[#allocation2 + $0x10] sm:$0xff]
    %v177 = vld [vmem:[#allocation2 + $0x18] sm:$0xff]
    %v178 = vld [vmem:[#allocation2 + $0x20] sm:$0xff]
    %v179 = vld [vmem:[#allocation2 + $0x28] sm:$0xff]
    %v180 = vld [vmem:[#allocation2 + $0x30] sm:$0xff]
    %v181 = vld [vmem:[#allocation2 + $0x38] sm:$0xff]
    %v182 = vld [vmem:[#allocation2 + $0x40] sm:$0xff]
    %v183 = vld [vmem:[#allocation2 + $0x48] sm:$0xff]
    %v184 = vld [vmem:[#allocation2 + $0x50] sm:$0xff]
    %v185 = vld [vmem:[#allocation2 + $0x58] sm:$0xff]
    %v186 = vld [vmem:[#allocation2 + $0x60] sm:$0xff]
    %v187 = vld [vmem:[#allocation2 + $0x68] sm:$0xff]
    %v188 = vld [vmem:[#allocation2 + $0x70] sm:$0xff]
    %v189 = vld [vmem:[#allocation2 + $0x78] sm:$0xff]
    %v190 = vld [vmem:[#allocation2 + $0x80] sm:$0xff]
    %v191 = vld [vmem:[#allocation2 + $0x88] sm:$0xff]
    %v192 = vld [vmem:[#allocation2 + $0x90] sm:$0xff]
    %v193 = vld [vmem:[#allocation2 + $0x98] sm:$0xff]
    %v194 = vld [vmem:[#allocation2 + $0xa0] sm:$0xff]
    %v195 = vld [vmem:[#allocation2 + $0xa8] sm:$0xff]
    %v196 = vld [vmem:[#allocation2 + $0xb0] sm:$0xff]
    %v197 = vld [vmem:[#allocation2 + $0xb8] sm:$0xff]
    %v198 = vld [vmem:[#allocation2 + $0xc0] sm:$0xff]
    %v199 = vld [vmem:[#allocation2 + $0xc8] sm:$0xff]
    %v200 = vld [vmem:[#allocation2 + $0xd0] sm:$0xff]
    %v201 = vld [vmem:[#allocation2 + $0xd8] sm:$0xff]
    %v202 = vld [vmem:[#allocation2 + $0xe0] sm:$0xff]
    %v203 = vld [vmem:[#allocation2 + $0xe8] sm:$0xff]
    %v204 = vld [vmem:[#allocation2 + $0xf0] sm:$0xff]
    %v205 = vld [vmem:[#allocation2 + $0xf8] sm:$0xff]
    %v206 = vld [vmem:[#allocation2 + $0x100] sm:$0xff]
    %v207 = vld [vmem:[#allocation2 + $0x108] sm:$0xff]
    %v208 = vld [vmem:[#allocation2 + $0x110] sm:$0xff]
    %v209 = vld [vmem:[#allocation2 + $0x118] sm:$0xff]
    %v210 = vld [vmem:[#allocation2 + $0x120] sm:$0xff]
    %v211 = vld [vmem:[#allocation2 + $0x128] sm:$0xff]
    %v212 = vld [vmem:[#allocation2 + $0x130] sm:$0xff]
    %v213 = vld [vmem:[#allocation2 + $0x138] sm:$0xff]
    %v214 = vld [vmem:[#allocation2 + $0x140] sm:$0xff]
    %v215 = vld [vmem:[#allocation2 + $0x148] sm:$0xff]
    %v216 = vld [vmem:[#allocation2 + $0x150] sm:$0xff]
    %v217 = vld [vmem:[#allocation2 + $0x158] sm:$0xff]
    %v218 = vld [vmem:[#allocation2 + $0x160] sm:$0xff]
    %v219 = vld [vmem:[#allocation2 + $0x168] sm:$0xff]
    %v220 = vld [vmem:[#allocation2 + $0x170] sm:$0xff]
    %v221 = vld [vmem:[#allocation2 + $0x178] sm:$0xff]
    %v222 = vld [vmem:[#allocation2 + $0x180] sm:$0xff]
    %v223 = vld [vmem:[#allocation2 + $0x188] sm:$0xff]
    %v224 = vld [vmem:[#allocation2 + $0x190] sm:$0xff]
    %v225 = vld [vmem:[#allocation2 + $0x198] sm:$0xff]
    %v226 = vld [vmem:[#allocation2 + $0x1a0] sm:$0xff]
    %v227 = vld [vmem:[#allocation2 + $0x1a8] sm:$0xff]
    %v228 = vld [vmem:[#allocation2 + $0x1b0] sm:$0xff]
    %v229 = vld [vmem:[#allocation2 + $0x1b8] sm:$0xff]
    %v230 = vld [vmem:[#allocation2 + $0x1c0] sm:$0xff]
    %v231 = vld [vmem:[#allocation2 + $0x1c8] sm:$0xff]
    %v232 = vld [vmem:[#allocation2 + $0x1d0] sm:$0xff]
    %v233 = vld [vmem:[#allocation2 + $0x1d8] sm:$0xff]
    %v234 = vld [vmem:[#allocation2 + $0x1e0] sm:$0xff]
    %v235 = vld [vmem:[#allocation2 + $0x1e8] sm:$0xff]
    %v236 = vld [vmem:[#allocation2 + $0x1f0] sm:$0xff]
    %v237 = vld [vmem:[#allocation2 + $0x1f8] sm:$0xff]
    %v238 = vld [vmem:[#allocation2 + $0x200] sm:$0xff]
    %v239 = vld [vmem:[#allocation2 + $0x208] sm:$0xff]
    %v240 = vld [vmem:[#allocation2 + $0x210] sm:$0xff]
    %v241 = vld [vmem:[#allocation2 + $0x218] sm:$0xff]
    %v242 = vld [vmem:[#allocation2 + $0x220] sm:$0xff]
    %v243 = vld [vmem:[#allocation2 + $0x228] sm:$0xff]
    %v244 = vld [vmem:[#allocation2 + $0x230] sm:$0xff]
    %v245 = vld [vmem:[#allocation2 + $0x238] sm:$0xff]
    %v246 = vld [vmem:[#allocation2 + $0x240] sm:$0xff]
    %v247 = vld [vmem:[#allocation2 + $0x248] sm:$0xff]
    %v248 = vld [vmem:[#allocation2 + $0x250] sm:$0xff]
    %v249 = vld [vmem:[#allocation2 + $0x258] sm:$0xff]
    %v250 = vld [vmem:[#allocation2 + $0x260] sm:$0xff]
    %v251 = vld [vmem:[#allocation2 + $0x268] sm:$0xff]
    %v252 = vld [vmem:[#allocation2 + $0x270] sm:$0xff]
    %v253 = vld [vmem:[#allocation2 + $0x278] sm:$0xff]
    %v254 = vld [vmem:[#allocation2 + $0x280] sm:$0xff]
    %v255 = vld [vmem:[#allocation2 + $0x288] sm:$0xff]
    %v256 = vld [vmem:[#allocation2 + $0x290] sm:$0xff]
    %v257 = vld [vmem:[#allocation2 + $0x298] sm:$0xff]
    %v258 = vld [vmem:[#allocation2 + $0x2a0] sm:$0xff]
    %v259 = vld [vmem:[#allocation2 + $0x2a8] sm:$0xff]
    %v260 = vld [vmem:[#allocation2 + $0x2b0] sm:$0xff]
    %v261 = vld [vmem:[#allocation2 + $0x2b8] sm:$0xff]
    %v262 = vld [vmem:[#allocation2 + $0x2c0] sm:$0xff]
    %v263 = vld [vmem:[#allocation2 + $0x2c8] sm:$0xff]
    %v264 = vld [vmem:[#allocation2 + $0x2d0] sm:$0xff]
    %v265 = vld [vmem:[#allocation2 + $0x2d8] sm:$0xff]
    %v266 = vld [vmem:[#allocation2 + $0x2e0] sm:$0xff]
    %v267 = vld [vmem:[#allocation2 + $0x2e8] sm:$0xff]
    %v268 = vld [vmem:[#allocation2 + $0x2f0] sm:$0xff]
    %v269 = vld [vmem:[#allocation2 + $0x2f8] sm:$0xff]
    %v270 = vld [vmem:[#allocation2 + $0x300] sm:$0xff]
    %v271 = vld [vmem:[#allocation2 + $0x308] sm:$0xff]
    %v272 = vld [vmem:[#allocation2 + $0x310] sm:$0xff]
    %v273 = vld [vmem:[#allocation2 + $0x318] sm:$0xff]
    %v274 = vld [vmem:[#allocation2 + $0x320] sm:$0xff]
    %v275 = vld [vmem:[#allocation2 + $0x328] sm:$0xff]
    %v276 = vld [vmem:[#allocation2 + $0x330] sm:$0xff]
    %v277 = vld [vmem:[#allocation2 + $0x338] sm:$0xff]
    %v278 = vld [vmem:[#allocation2 + $0x340] sm:$0xff]
    %v279 = vld [vmem:[#allocation2 + $0x348] sm:$0xff]
    %v280 = vld [vmem:[#allocation2 + $0x350] sm:$0xff]
    %v281 = vld [vmem:[#allocation2 + $0x358] sm:$0xff]
    %v282 = vld [vmem:[#allocation2 + $0x360] sm:$0xff]
    %v283 = vld [vmem:[#allocation2 + $0x368] sm:$0xff]
    %v284 = vld [vmem:[#allocation2 + $0x370] sm:$0xff]
    %v285 = vld [vmem:[#allocation2 + $0x378] sm:$0xff]
    %v286 = vld [vmem:[#allocation2 + $0x380] sm:$0xff]
    %v287 = vld [vmem:[#allocation2 + $0x388] sm:$0xff]
    %v288 = vld [vmem:[#allocation2 + $0x390] sm:$0xff]
    %v289 = vld [vmem:[#allocation2 + $0x398] sm:$0xff]
    %v290 = vld [vmem:[#allocation2 + $0x3a0] sm:$0xff]
    %v291 = vld [vmem:[#allocation2 + $0x3a8] sm:$0xff]
    %v292 = vld [vmem:[#allocation2 + $0x3b0] sm:$0xff]
    %v293 = vld [vmem:[#allocation2 + $0x3b8] sm:$0xff]
    %v294 = vld [vmem:[#allocation2 + $0x3c0] sm:$0xff]
    %v295 = vld [vmem:[#allocation2 + $0x3c8] sm:$0xff]
    %v296 = vld [vmem:[#allocation2 + $0x3d0] sm:$0xff]
    %v297 = vld [vmem:[#allocation2 + $0x3d8] sm:$0xff]
    %v298 = vld [vmem:[#allocation2 + $0x3e0] sm:$0xff]
    %v299 = vld [vmem:[#allocation2 + $0x3e8] sm:$0xff]
    %v300 = vld [vmem:[#allocation2 + $0x3f0] sm:$0xff]
    %v301 = vld [vmem:[#allocation2 + $0x3f8] sm:$0xff]
    %v302 = vld [vmem:[#allocation2 + $0x400] sm:$0xff]
    %v303 = vld [vmem:[#allocation2 + $0x408] sm:$0xff]
    %v304 = vld [vmem:[#allocation2 + $0x410] sm:$0xff]
    %v305 = vld [vmem:[#allocation2 + $0x418] sm:$0xff]
    %v306 = vld [vmem:[#allocation2 + $0x420] sm:$0xff]
    %v307 = vld [vmem:[#allocation2 + $0x428] sm:$0xff]
    %v308 = vld [vmem:[#allocation2 + $0x430] sm:$0xff]
    %v309 = vld [vmem:[#allocation2 + $0x438] sm:$0xff]
    %v310 = vld [vmem:[#allocation2 + $0x440] sm:$0xff]
    %v311 = vld [vmem:[#allocation2 + $0x448] sm:$0xff]
    %v312 = vld [vmem:[#allocation2 + $0x450] sm:$0xff]
    %v313 = vld [vmem:[#allocation2 + $0x458] sm:$0xff]
    %v314 = vld [vmem:[#allocation2 + $0x460] sm:$0xff]
    %v315 = vld [vmem:[#allocation2 + $0x468] sm:$0xff]
    %v316 = vld [vmem:[#allocation2 + $0x470] sm:$0xff]
    %v317 = vld [vmem:[#allocation2 + $0x478] sm:$0xff]
    %v318 = vld [vmem:[#allocation2 + $0x480] sm:$0xff]
    %v319 = vld [vmem:[#allocation2 + $0x488] sm:$0xff]
    %v320 = vld [vmem:[#allocation2 + $0x490] sm:$0xff]
    %v321 = vld [vmem:[#allocation2 + $0x498] sm:$0xff]
    %v322 = vld [vmem:[#allocation2 + $0x4a0] sm:$0xff]
    %v323 = vld [vmem:[#allocation2 + $0x4a8] sm:$0xff]
    %v324 = vld [vmem:[#allocation2 + $0x4b0] sm:$0xff]
    %v325 = vld [vmem:[#allocation2 + $0x4b8] sm:$0xff]
    %v326 = vld [vmem:[#allocation2 + $0x4c0] sm:$0xff]
    %v327 = vld [vmem:[#allocation2 + $0x4c8] sm:$0xff]
    %v328 = vld [vmem:[#allocation2 + $0x4d0] sm:$0xff]
    %v329 = vld [vmem:[#allocation2 + $0x4d8] sm:$0xff]
    %v330 = vld [vmem:[#allocation2 + $0x4e0] sm:$0xff]
    %v331 = vld [vmem:[#allocation2 + $0x4e8] sm:$0xff]
    %v332 = vld [vmem:[#allocation2 + $0x4f0] sm:$0xff]
    %v333 = vld [vmem:[#allocation2 + $0x4f8] sm:$0xff]
    %v334 = vld [vmem:[#allocation2 + $0x500] sm:$0xff]
    %v335 = vld [vmem:[#allocation2 + $0x508] sm:$0xff]
    %v336 = vld [vmem:[#allocation2 + $0x510] sm:$0xff]
    %v337 = vld [vmem:[#allocation2 + $0x518] sm:$0xff]
    %v338 = vld [vmem:[#allocation2 + $0x520] sm:$0xff]
    %v339 = vld [vmem:[#allocation2 + $0x528] sm:$0xff]
    %v340 = vld [vmem:[#allocation2 + $0x530] sm:$0xff]
    %v341 = vld [vmem:[#allocation2 + $0x538] sm:$0xff]
    %v342 = vld [vmem:[#allocation2 + $0x540] sm:$0xff]
    %v343 = vld [vmem:[#allocation2 + $0x548] sm:$0xff]
    %v344 = vld [vmem:[#allocation2 + $0x550] sm:$0xff]
    %v345 = vld [vmem:[#allocation2 + $0x558] sm:$0xff]
    %v346 = vld [vmem:[#allocation2 + $0x560] sm:$0xff]
    %v347 = vld [vmem:[#allocation2 + $0x568] sm:$0xff]
    %v348 = vld [vmem:[#allocation2 + $0x570] sm:$0xff]
    %v349 = vld [vmem:[#allocation2 + $0x578] sm:$0xff]
    %v350 = vld [vmem:[#allocation2 + $0x580] sm:$0xff]
    %v351 = vld [vmem:[#allocation2 + $0x588] sm:$0xff]
    %v352 = vld [vmem:[#allocation2 + $0x590] sm:$0xff]
    %v353 = vld [vmem:[#allocation2 + $0x598] sm:$0xff]
    %v354 = vld [vmem:[#allocation2 + $0x5a0] sm:$0xff]
    %v355 = vld [vmem:[#allocation2 + $0x5a8] sm:$0xff]
    %v356 = vld [vmem:[#allocation2 + $0x5b0] sm:$0xff]
    %v357 = vld [vmem:[#allocation2 + $0x5b8] sm:$0xff]
    %v358 = vld [vmem:[#allocation2 + $0x5c0] sm:$0xff]
    %v359 = vld [vmem:[#allocation2 + $0x5c8] sm:$0xff]
    %v360 = vld [vmem:[#allocation2 + $0x5d0] sm:$0xff]
    %v361 = vld [vmem:[#allocation2 + $0x5d8] sm:$0xff]
    %v362 = vld [vmem:[#allocation2 + $0x5e0] sm:$0xff]
    %v363 = vld [vmem:[#allocation2 + $0x5e8] sm:$0xff]
    %v364 = vld [vmem:[#allocation2 + $0x5f0] sm:$0xff]
    %v365 = vld [vmem:[#allocation2 + $0x5f8] sm:$0xff]
    %v366 = vld [vmem:[#allocation2 + $0x600] sm:$0xff]
    %v367 = vld [vmem:[#allocation2 + $0x608] sm:$0xff]
    %v368 = vld [vmem:[#allocation2 + $0x610] sm:$0xff]
    %v369 = vld [vmem:[#allocation2 + $0x618] sm:$0xff]
    %v370 = vld [vmem:[#allocation2 + $0x620] sm:$0xff]
    %v371 = vld [vmem:[#allocation2 + $0x628] sm:$0xff]
    %v372 = vld [vmem:[#allocation2 + $0x630] sm:$0xff]
    %v373 = vld [vmem:[#allocation2 + $0x638] sm:$0xff]
    %v374 = vld [vmem:[#allocation2 + $0x640] sm:$0xff]
    %v375 = vld [vmem:[#allocation2 + $0x648] sm:$0xff]
    %v376 = vld [vmem:[#allocation2 + $0x650] sm:$0xff]
    %v377 = vld [vmem:[#allocation2 + $0x658] sm:$0xff]
    %v378 = vld [vmem:[#allocation2 + $0x660] sm:$0xff]
    %v379 = vld [vmem:[#allocation2 + $0x668] sm:$0xff]
    %v380 = vld [vmem:[#allocation2 + $0x670] sm:$0xff]
    %v381 = vld [vmem:[#allocation2 + $0x678] sm:$0xff]
    %v382 = vld [vmem:[#allocation2 + $0x680] sm:$0xff]
    %v383 = vld [vmem:[#allocation2 + $0x688] sm:$0xff]
    %v384 = vld [vmem:[#allocation2 + $0x690] sm:$0xff]
    %v385 = vld [vmem:[#allocation2 + $0x698] sm:$0xff]
    %v386 = vld [vmem:[#allocation2 + $0x6a0] sm:$0xff]
    %v387 = vld [vmem:[#allocation2 + $0x6a8] sm:$0xff]
    %v388 = vld [vmem:[#allocation2 + $0x6b0] sm:$0xff]
    %v389 = vld [vmem:[#allocation2 + $0x6b8] sm:$0xff]
    %v390 = vld [vmem:[#allocation2 + $0x6c0] sm:$0xff]
    %v391 = vld [vmem:[#allocation2 + $0x6c8] sm:$0xff]
    %v392 = vld [vmem:[#allocation2 + $0x6d0] sm:$0xff]
    %v393 = vld [vmem:[#allocation2 + $0x6d8] sm:$0xff]
    %v394 = vld [vmem:[#allocation2 + $0x6e0] sm:$0xff]
    %v395 = vld [vmem:[#allocation2 + $0x6e8] sm:$0xff]
    %v396 = vld [vmem:[#allocation2 + $0x6f0] sm:$0xff]
    %v397 = vld [vmem:[#allocation2 + $0x6f8] sm:$0xff]
    %v398 = vld [vmem:[#allocation2 + $0x700] sm:$0xff]
    %v399 = vld [vmem:[#allocation2 + $0x708] sm:$0xff]
    %v400 = vld [vmem:[#allocation2 + $0x710] sm:$0xff]
    %v401 = vld [vmem:[#allocation2 + $0x718] sm:$0xff]
    %v402 = vld [vmem:[#allocation2 + $0x720] sm:$0xff]
    %v403 = vld [vmem:[#allocation2 + $0x728] sm:$0xff]
    %v404 = vld [vmem:[#allocation2 + $0x730] sm:$0xff]
    %v405 = vld [vmem:[#allocation2 + $0x738] sm:$0xff]
    %v406 = vld [vmem:[#allocation2 + $0x740] sm:$0xff]
    %v407 = vld [vmem:[#allocation2 + $0x748] sm:$0xff]
    %v408 = vld [vmem:[#allocation2 + $0x750] sm:$0xff]
    %v409 = vld [vmem:[#allocation2 + $0x758] sm:$0xff]
    %v410 = vld [vmem:[#allocation2 + $0x760] sm:$0xff]
    %v411 = vld [vmem:[#allocation2 + $0x768] sm:$0xff]
    %v412 = vld [vmem:[#allocation2 + $0x770] sm:$0xff]
    %v413 = vld [vmem:[#allocation2 + $0x778] sm:$0xff]
    %v414 = vld [vmem:[#allocation2 + $0x780] sm:$0xff]
    %v415 = vld [vmem:[#allocation2 + $0x788] sm:$0xff]
    %v416 = vld [vmem:[#allocation2 + $0x790] sm:$0xff]
    %v417 = vld [vmem:[#allocation2 + $0x798] sm:$0xff]
    %v418 = vld [vmem:[#allocation2 + $0x7a0] sm:$0xff]
    %v419 = vld [vmem:[#allocation2 + $0x7a8] sm:$0xff]
    %v420 = vld [vmem:[#allocation2 + $0x7b0] sm:$0xff]
    %v421 = vld [vmem:[#allocation2 + $0x7b8] sm:$0xff]
    %v422 = vld [vmem:[#allocation2 + $0x7c0] sm:$0xff]
    %v423 = vld [vmem:[#allocation2 + $0x7c8] sm:$0xff]
    %v424 = vld [vmem:[#allocation2 + $0x7d0] sm:$0xff]
    %v425 = vld [vmem:[#allocation2 + $0x7d8] sm:$0xff]
    %v426 = vld [vmem:[#allocation2 + $0x7e0] sm:$0xff]
    %v427 = vld [vmem:[#allocation2 + $0x7e8] sm:$0xff]
    %v428 = vld [vmem:[#allocation2 + $0x7f0] sm:$0xff]
    %v429 = vld [vmem:[#allocation2 + $0x7f8] sm:$0xff]
    %v430 = vld [vmem:[#allocation2 + $0x800] sm:$0xff]
    %v431 = vld [vmem:[#allocation2 + $0x808] sm:$0xff]
    %v432 = vld [vmem:[#allocation2 + $0x810] sm:$0xff]
    %v433 = vld [vmem:[#allocation2 + $0x818] sm:$0xff]
    %v434 = vld [vmem:[#allocation2 + $0x820] sm:$0xff]
    %v435 = vld [vmem:[#allocation2 + $0x828] sm:$0xff]
    %v436 = vld [vmem:[#allocation2 + $0x830] sm:$0xff]
    %v437 = vld [vmem:[#allocation2 + $0x838] sm:$0xff]
    %v438 = vld [vmem:[#allocation2 + $0x840] sm:$0xff]
    %v439 = vld [vmem:[#allocation2 + $0x848] sm:$0xff]
    %v440 = vld [vmem:[#allocation2 + $0x850] sm:$0xff]
    %v441 = vld [vmem:[#allocation2 + $0x858] sm:$0xff]
    %v442 = vld [vmem:[#allocation2 + $0x860] sm:$0xff]
    %v443 = vld [vmem:[#allocation2 + $0x868] sm:$0xff]
    %v444 = vld [vmem:[#allocation2 + $0x870] sm:$0xff]
    %v445 = vld [vmem:[#allocation2 + $0x878] sm:$0xff]
    %v446 = vld [vmem:[#allocation2 + $0x880] sm:$0xff]
    %v447 = vld [vmem:[#allocation2 + $0x888] sm:$0xff]
    %v448 = vld [vmem:[#allocation2 + $0x890] sm:$0xff]
    %v449 = vld [vmem:[#allocation2 + $0x898] sm:$0xff]
    %v450 = vld [vmem:[#allocation2 + $0x8a0] sm:$0xff]
    %v451 = vld [vmem:[#allocation2 + $0x8a8] sm:$0xff]
    %v452 = vld [vmem:[#allocation2 + $0x8b0] sm:$0xff]
    %v453 = vld [vmem:[#allocation2 + $0x8b8] sm:$0xff]
    %v454 = vld [vmem:[#allocation2 + $0x8c0] sm:$0xff]
    %v455 = vld [vmem:[#allocation2 + $0x8c8] sm:$0xff]
    %v456 = vld [vmem:[#allocation2 + $0x8d0] sm:$0xff]
    %v457 = vld [vmem:[#allocation2 + $0x8d8] sm:$0xff]
    %v458 = vld [vmem:[#allocation2 + $0x8e0] sm:$0xff]
    %v459 = vld [vmem:[#allocation2 + $0x8e8] sm:$0xff]
    %v460 = vld [vmem:[#allocation2 + $0x8f0] sm:$0xff]
    %v461 = vld [vmem:[#allocation2 + $0x8f8] sm:$0xff]
    %v462 = vld [vmem:[#allocation2 + $0x900] sm:$0xff]
    %v463 = vld [vmem:[#allocation2 + $0x908] sm:$0xff]
    %v464 = vld [vmem:[#allocation2 + $0x910] sm:$0xff]
    %v465 = vld [vmem:[#allocation2 + $0x918] sm:$0xff]
    %v466 = vld [vmem:[#allocation2 + $0x920] sm:$0xff]
    %v467 = vld [vmem:[#allocation2 + $0x928] sm:$0xff]
    %v468 = vld [vmem:[#allocation2 + $0x930] sm:$0xff]
    %v469 = vld [vmem:[#allocation2 + $0x938] sm:$0xff]
    %v470 = vld [vmem:[#allocation2 + $0x940] sm:$0xff]
    %v471 = vld [vmem:[#allocation2 + $0x948] sm:$0xff]
    %v472 = vld [vmem:[#allocation2 + $0x950] sm:$0xff]
    %v473 = vld [vmem:[#allocation2 + $0x958] sm:$0xff]
    %v474 = vld [vmem:[#allocation2 + $0x960] sm:$0xff]
    %v475 = vld [vmem:[#allocation2 + $0x968] sm:$0xff]
    %v476 = vld [vmem:[#allocation2 + $0x970] sm:$0xff]
    %v477 = vld [vmem:[#allocation2 + $0x978] sm:$0xff]
    %v478 = vld [vmem:[#allocation2 + $0x980] sm:$0xff]
    %v479 = vld [vmem:[#allocation2 + $0x988] sm:$0xff]
    %v480 = vld [vmem:[#allocation2 + $0x990] sm:$0xff]
    %v481 = vld [vmem:[#allocation2 + $0x998] sm:$0xff]
    %v482 = vld [vmem:[#allocation2 + $0x9a0] sm:$0xff]
    %v483 = vld [vmem:[#allocation2 + $0x9a8] sm:$0xff]
    %v484 = vld [vmem:[#allocation2 + $0x9b0] sm:$0xff]
    %v485 = vld [vmem:[#allocation2 + $0x9b8] sm:$0xff]
    %v486 = vld [vmem:[#allocation2 + $0x9c0] sm:$0xff]
    %v487 = vld [vmem:[#allocation2 + $0x9c8] sm:$0xff]
    %v488 = vld [vmem:[#allocation2 + $0x9d0] sm:$0xff]
    %v489 = vld [vmem:[#allocation2 + $0x9d8] sm:$0xff]
    %v490 = vld [vmem:[#allocation2 + $0x9e0] sm:$0xff]
    %v491 = vld [vmem:[#allocation2 + $0x9e8] sm:$0xff]
    %v492 = vld [vmem:[#allocation2 + $0x9f0] sm:$0xff]
    %v493 = vld [vmem:[#allocation2 + $0x9f8] sm:$0xff]
    %v494 = vld [vmem:[#allocation2 + $0xa00] sm:$0xff]
    %v495 = vld [vmem:[#allocation2 + $0xa08] sm:$0xff]
    %v496 = vld [vmem:[#allocation2 + $0xa10] sm:$0xff]
    %v497 = vld [vmem:[#allocation2 + $0xa18] sm:$0xff]
    %v498 = vld [vmem:[#allocation2 + $0xa20] sm:$0xff]
    %v499 = vld [vmem:[#allocation2 + $0xa28] sm:$0xff]
    %v500 = vld [vmem:[#allocation2 + $0xa30] sm:$0xff]
    %v501 = vld [vmem:[#allocation2 + $0xa38] sm:$0xff]
    %v502 = vld [vmem:[#allocation2 + $0xa40] sm:$0xff]
    %v503 = vld [vmem:[#allocation2 + $0xa48] sm:$0xff]
    %v504 = vld [vmem:[#allocation2 + $0xa50] sm:$0xff]
    %v505 = vld [vmem:[#allocation2 + $0xa58] sm:$0xff]
    %v506 = vld [vmem:[#allocation2 + $0xa60] sm:$0xff]
    %v507 = vld [vmem:[#allocation2 + $0xa68] sm:$0xff]
    %v508 = vld [vmem:[#allocation2 + $0xa70] sm:$0xff]
    %v509 = vld [vmem:[#allocation2 + $0xa78] sm:$0xff]
    %v510 = vld [vmem:[#allocation2 + $0xa80] sm:$0xff]
    %v511 = vld [vmem:[#allocation2 + $0xa88] sm:$0xff]
    %v512 = vld [vmem:[#allocation2 + $0xa90] sm:$0xff]
    %v513 = vld [vmem:[#allocation2 + $0xa98] sm:$0xff]
    %v514 = vld [vmem:[#allocation2 + $0xaa0] sm:$0xff]
    %v515 = vld [vmem:[#allocation2 + $0xaa8] sm:$0xff]
    %v516 = vld [vmem:[#allocation2 + $0xab0] sm:$0xff]
    %v517 = vld [vmem:[#allocation2 + $0xab8] sm:$0xff]
    %v518 = vld [vmem:[#allocation2 + $0xac0] sm:$0xff]
    %v519 = vld [vmem:[#allocation2 + $0xac8] sm:$0xff]
    %v520 = vld [vmem:[#allocation2 + $0xad0] sm:$0xff]
    %v521 = vld [vmem:[#allocation2 + $0xad8] sm:$0xff]
    %v522 = vld [vmem:[#allocation2 + $0xae0] sm:$0xff]
    %v523 = vld [vmem:[#allocation2 + $0xae8] sm:$0xff]
    %v524 = vld [vmem:[#allocation2 + $0xaf0] sm:$0xff]
    %v525 = vld [vmem:[#allocation2 + $0xaf8] sm:$0xff]
    %v526 = vld [vmem:[#allocation2 + $0xb00] sm:$0xff]
    %v527 = vld [vmem:[#allocation2 + $0xb08] sm:$0xff]
    %v528 = vld [vmem:[#allocation2 + $0xb10] sm:$0xff]
    %v529 = vld [vmem:[#allocation2 + $0xb18] sm:$0xff]
    %v530 = vld [vmem:[#allocation2 + $0xb20] sm:$0xff]
    %v531 = vld [vmem:[#allocation2 + $0xb28] sm:$0xff]
    %v532 = vld [vmem:[#allocation2 + $0xb30] sm:$0xff]
    %v533 = vld [vmem:[#allocation2 + $0xb38] sm:$0xff]
    %v534 = vld [vmem:[#allocation2 + $0xb40] sm:$0xff]
    %v535 = vld [vmem:[#allocation2 + $0xb48] sm:$0xff]
    %v536 = vld [vmem:[#allocation2 + $0xb50] sm:$0xff]
    %v537 = vld [vmem:[#allocation2 + $0xb58] sm:$0xff]
    %v538 = vld [vmem:[#allocation2 + $0xb60] sm:$0xff]
    %v539 = vld [vmem:[#allocation2 + $0xb68] sm:$0xff]
    %v540 = vld [vmem:[#allocation2 + $0xb70] sm:$0xff]
    %v541 = vld [vmem:[#allocation2 + $0xb78] sm:$0xff]
    %v542 = vld [vmem:[#allocation2 + $0xb80] sm:$0xff]
    %v543 = vld [vmem:[#allocation2 + $0xb88] sm:$0xff]
    %v544 = vld [vmem:[#allocation2 + $0xb90] sm:$0xff]
    %v545 = vld [vmem:[#allocation2 + $0xb98] sm:$0xff]
    %v546 = vld [vmem:[#allocation2 + $0xba0] sm:$0xff]
    %v547 = vld [vmem:[#allocation2 + $0xba8] sm:$0xff]
    %v548 = vld [vmem:[#allocation2 + $0xbb0] sm:$0xff]
    %v549 = vld [vmem:[#allocation2 + $0xbb8] sm:$0xff]
    %v550 = vld [vmem:[#allocation2 + $0xbc0] sm:$0xff]
    %v551 = vld [vmem:[#allocation2 + $0xbc8] sm:$0xff]
    %v552 = vld [vmem:[#allocation2 + $0xbd0] sm:$0xff]
    %v553 = vld [vmem:[#allocation2 + $0xbd8] sm:$0xff]
    %v554 = vld [vmem:[#allocation2 + $0xbe0] sm:$0xff]
    %v555 = vld [vmem:[#allocation2 + $0xbe8] sm:$0xff]
    %v556 = vld [vmem:[#allocation2 + $0xbf0] sm:$0xff]
    %v557 = vld [vmem:[#allocation2 + $0xbf8] sm:$0xff]
    %v558 = vld [vmem:[#allocation2 + $0xc00] sm:$0xff]
    %v559 = vld [vmem:[#allocation2 + $0xc08] sm:$0xff]
    %v560 = vld [vmem:[#allocation2 + $0xc10] sm:$0xff]
    %v561 = vld [vmem:[#allocation2 + $0xc18] sm:$0xff]
    %v562 = vld [vmem:[#allocation2 + $0xc20] sm:$0xff]
    %v563 = vld [vmem:[#allocation2 + $0xc28] sm:$0xff]
    %v564 = vld [vmem:[#allocation2 + $0xc30] sm:$0xff]
    %v565 = vld [vmem:[#allocation2 + $0xc38] sm:$0xff]
    %v566 = vld [vmem:[%s1] sm:$0xf]
    %v567 = vld [vmem:[%s1 + $0x4] sm:$0xf]
    %v568 = vld [vmem:[#allocation4] sm:$0xff]
    %v569 = vld [vmem:[#allocation4 + $0x8] sm:$0xff]
    %v570 = vld [vmem:[#allocation4 + $0x10] sm:$0xff]
    %v571 = vld [vmem:[#allocation4 + $0x18] sm:$0xff]
    %v572 = vld [vmem:[#allocation4 + $0x20] sm:$0xff]
    %v573 = vld [vmem:[#allocation4 + $0x28] sm:$0xff]
    %v574 = vld [vmem:[#allocation4 + $0x30] sm:$0xff]
    %v575 = vld [vmem:[#allocation4 + $0x38] sm:$0xff]
    %v576 = vld [vmem:[#allocation4 + $0x40] sm:$0xff]
    %v577 = vld [vmem:[#allocation4 + $0x48] sm:$0xff]
    %v578 = vld [vmem:[#allocation4 + $0x50] sm:$0xff]
    %v579 = vld [vmem:[#allocation4 + $0x58] sm:$0xff]
    %v580 = vld [vmem:[#allocation4 + $0x60] sm:$0xff]
    %v581 = vld [vmem:[#allocation4 + $0x68] sm:$0xff]
    %v582 = vld [vmem:[#allocation4 + $0x70] sm:$0xff]
    %v583 = vld [vmem:[#allocation4 + $0x78] sm:$0xff]
    %v584 = vld [vmem:[#allocation4 + $0x80] sm:$0xff]
    %v585 = vld [vmem:[#allocation4 + $0x88] sm:$0xff]
    %v586 = vld [vmem:[#allocation4 + $0x90] sm:$0xff]
    %v587 = vld [vmem:[#allocation4 + $0x98] sm:$0xff]
    %v588 = vld [vmem:[#allocation4 + $0xa0] sm:$0xff]
    %v589 = vld [vmem:[#allocation4 + $0xa8] sm:$0xff]
    %v590 = vld [vmem:[#allocation4 + $0xb0] sm:$0xff]
    %v591 = vld [vmem:[#allocation4 + $0xb8] sm:$0xff]
    %v592 = vld [vmem:[#allocation4 + $0xc0] sm:$0xff]
    %v593 = vld [vmem:[#allocation4 + $0xc8] sm:$0xff]
    %v594 = vld [vmem:[#allocation4 + $0xd0] sm:$0xff]
    %v595 = vld [vmem:[#allocation4 + $0xd8] sm:$0xff]
    %v596 = vld [vmem:[#allocation4 + $0xe0] sm:$0xff]
    %v597 = vld [vmem:[#allocation4 + $0xe8] sm:$0xff]
    %v598 = vld [vmem:[#allocation4 + $0xf0] sm:$0xff]
    %v599 = vld [vmem:[#allocation4 + $0xf8] sm:$0xff]
    %v600 = vld [vmem:[#allocation4 + $0x100] sm:$0xff]
    %v601 = vld [vmem:[#allocation4 + $0x108] sm:$0xff]
    %v602 = vld [vmem:[#allocation4 + $0x110] sm:$0xff]
    %v603 = vld [vmem:[#allocation4 + $0x118] sm:$0xff]
    %v604 = vld [vmem:[#allocation4 + $0x120] sm:$0xff]
    %v605 = vld [vmem:[#allocation4 + $0x128] sm:$0xff]
    %v606 = vld [vmem:[#allocation4 + $0x130] sm:$0xff]
    %v607 = vld [vmem:[#allocation4 + $0x138] sm:$0xff]
    %v608 = vld [vmem:[#allocation4 + $0x140] sm:$0xff]
    %v609 = vld [vmem:[#allocation4 + $0x148] sm:$0xff]
    %v610 = vld [vmem:[#allocation4 + $0x150] sm:$0xff]
    %v611 = vld [vmem:[#allocation4 + $0x158] sm:$0xff]
    %v612 = vld [vmem:[#allocation4 + $0x160] sm:$0xff]
    %v613 = vld [vmem:[#allocation4 + $0x168] sm:$0xff]
    %v614 = vld [vmem:[#allocation4 + $0x170] sm:$0xff]
    %v615 = vld [vmem:[#allocation4 + $0x178] sm:$0xff]
    %v616 = vld [vmem:[#allocation4 + $0x180] sm:$0xff]
    %v617 = vld [vmem:[#allocation4 + $0x188] sm:$0xff]
    %v618 = vld [vmem:[#allocation4 + $0x190] sm:$0xff]
    %v619 = vld [vmem:[#allocation4 + $0x198] sm:$0xff]
    %v620 = vld [vmem:[#allocation4 + $0x1a0] sm:$0xff]
    %v621 = vld [vmem:[#allocation4 + $0x1a8] sm:$0xff]
    %v622 = vld [vmem:[#allocation4 + $0x1b0] sm:$0xff]
    %v623 = vld [vmem:[#allocation4 + $0x1b8] sm:$0xff]
    %v624 = vld [vmem:[#allocation4 + $0x1c0] sm:$0xff]
    %v625 = vld [vmem:[#allocation4 + $0x1c8] sm:$0xff]
    %v626 = vld [vmem:[#allocation4 + $0x1d0] sm:$0xff]
    %v627 = vld [vmem:[#allocation4 + $0x1d8] sm:$0xff]
    %v628 = vld [vmem:[#allocation4 + $0x1e0] sm:$0xff]
    %v629 = vld [vmem:[#allocation4 + $0x1e8] sm:$0xff]
    %v630 = vld [vmem:[#allocation4 + $0x1f0] sm:$0xff]
    %v631 = vld [vmem:[#allocation4 + $0x1f8] sm:$0xff]
    %v634 = vunpack.c.l.b16 %v566
    %v635 = vunpack.c.l.b16 %v567
    %v636 = vpack.c.b16 %v635, %v634
    %v702 = vunpack.c.l.b16 %v568
    %v703 = vunpack.c.h.b16 %v568
    %v704 = vunpack.c.l.b16 %v569
    %v705 = vunpack.c.h.b16 %v569
    %v706 = vunpack.c.l.b16 %v570
    %v707 = vunpack.c.h.b16 %v570
    %v708 = vunpack.c.l.b16 %v571
    %v709 = vunpack.c.h.b16 %v571
    %v710 = vunpack.c.l.b16 %v572
    %v711 = vunpack.c.h.b16 %v572
    %v712 = vunpack.c.l.b16 %v573
    %v713 = vunpack.c.h.b16 %v573
    %v714 = vunpack.c.l.b16 %v574
    %v715 = vunpack.c.h.b16 %v574
    %v716 = vunpack.c.l.b16 %v575
    %v717 = vunpack.c.h.b16 %v575
    %v718 = vunpack.c.l.b16 %v576
    %v719 = vunpack.c.h.b16 %v576
    %v720 = vunpack.c.l.b16 %v577
    %v721 = vunpack.c.h.b16 %v577
    %v722 = vunpack.c.l.b16 %v578
    %v723 = vunpack.c.h.b16 %v578
    %v724 = vunpack.c.l.b16 %v579
    %v725 = vunpack.c.h.b16 %v579
    %v726 = vunpack.c.l.b16 %v580
    %v727 = vunpack.c.h.b16 %v580
    %v728 = vunpack.c.l.b16 %v581
    %v729 = vunpack.c.h.b16 %v581
    %v730 = vunpack.c.l.b16 %v582
    %v731 = vunpack.c.h.b16 %v582
    %v732 = vunpack.c.l.b16 %v583
    %v733 = vunpack.c.h.b16 %v583
    %v734 = vunpack.c.l.b16 %v584
    %v735 = vunpack.c.h.b16 %v584
    %v736 = vunpack.c.l.b16 %v585
    %v737 = vunpack.c.h.b16 %v585
    %v738 = vunpack.c.l.b16 %v586
    %v739 = vunpack.c.h.b16 %v586
    %v740 = vunpack.c.l.b16 %v587
    %v741 = vunpack.c.h.b16 %v587
    %v742 = vunpack.c.l.b16 %v588
    %v743 = vunpack.c.h.b16 %v588
    %v744 = vunpack.c.l.b16 %v589
    %v745 = vunpack.c.h.b16 %v589
    %v746 = vunpack.c.l.b16 %v590
    %v747 = vunpack.c.h.b16 %v590
    %v748 = vunpack.c.l.b16 %v591
    %v749 = vunpack.c.h.b16 %v591
    %v750 = vunpack.c.l.b16 %v592
    %v751 = vunpack.c.h.b16 %v592
    %v752 = vunpack.c.l.b16 %v593
    %v753 = vunpack.c.h.b16 %v593
    %v754 = vunpack.c.l.b16 %v594
    %v755 = vunpack.c.h.b16 %v594
    %v756 = vunpack.c.l.b16 %v595
    %v757 = vunpack.c.h.b16 %v595
    %v758 = vunpack.c.l.b16 %v596
    %v759 = vunpack.c.h.b16 %v596
    %v760 = vunpack.c.l.b16 %v597
    %v761 = vunpack.c.h.b16 %v597
    %v762 = vunpack.c.l.b16 %v598
    %v763 = vunpack.c.h.b16 %v598
    %v764 = vunpack.c.l.b16 %v599
    %v765 = vunpack.c.h.b16 %v599
    %v766 = vunpack.c.l.b16 %v600
    %v767 = vunpack.c.h.b16 %v600
    %v768 = vunpack.c.l.b16 %v601
    %v769 = vunpack.c.h.b16 %v601
    %v770 = vunpack.c.l.b16 %v602
    %v771 = vunpack.c.h.b16 %v602
    %v772 = vunpack.c.l.b16 %v603
    %v773 = vunpack.c.h.b16 %v603
    %v774 = vunpack.c.l.b16 %v604
    %v775 = vunpack.c.h.b16 %v604
    %v776 = vunpack.c.l.b16 %v605
    %v777 = vunpack.c.h.b16 %v605
    %v778 = vunpack.c.l.b16 %v606
    %v779 = vunpack.c.h.b16 %v606
    %v780 = vunpack.c.l.b16 %v607
    %v781 = vunpack.c.h.b16 %v607
    %v782 = vunpack.c.l.b16 %v608
    %v783 = vunpack.c.h.b16 %v608
    %v784 = vunpack.c.l.b16 %v609
    %v785 = vunpack.c.h.b16 %v609
    %v786 = vunpack.c.l.b16 %v610
    %v787 = vunpack.c.h.b16 %v610
    %v788 = vunpack.c.l.b16 %v611
    %v789 = vunpack.c.h.b16 %v611
    %v790 = vunpack.c.l.b16 %v612
    %v791 = vunpack.c.h.b16 %v612
    %v792 = vunpack.c.l.b16 %v613
    %v793 = vunpack.c.h.b16 %v613
    %v794 = vunpack.c.l.b16 %v614
    %v795 = vunpack.c.h.b16 %v614
    %v796 = vunpack.c.l.b16 %v615
    %v797 = vunpack.c.h.b16 %v615
    %v798 = vunpack.c.l.b16 %v616
    %v799 = vunpack.c.h.b16 %v616
    %v800 = vunpack.c.l.b16 %v617
    %v801 = vunpack.c.h.b16 %v617
    %v802 = vunpack.c.l.b16 %v618
    %v803 = vunpack.c.h.b16 %v618
    %v804 = vunpack.c.l.b16 %v619
    %v805 = vunpack.c.h.b16 %v619
    %v806 = vunpack.c.l.b16 %v620
    %v807 = vunpack.c.h.b16 %v620
    %v808 = vunpack.c.l.b16 %v621
    %v809 = vunpack.c.h.b16 %v621
    %v810 = vunpack.c.l.b16 %v622
    %v811 = vunpack.c.h.b16 %v622
    %v812 = vunpack.c.l.b16 %v623
    %v813 = vunpack.c.h.b16 %v623
    %v814 = vunpack.c.l.b16 %v624
    %v815 = vunpack.c.h.b16 %v624
    %v816 = vunpack.c.l.b16 %v625
    %v817 = vunpack.c.h.b16 %v625
    %v818 = vunpack.c.l.b16 %v626
    %v819 = vunpack.c.h.b16 %v626
    %v820 = vunpack.c.l.b16 %v627
    %v821 = vunpack.c.h.b16 %v627
    %v822 = vunpack.c.l.b16 %v628
    %v823 = vunpack.c.h.b16 %v628
    %v824 = vunpack.c.l.b16 %v629
    %v825 = vunpack.c.h.b16 %v629
    %v826 = vunpack.c.l.b16 %v630
    %v827 = vunpack.c.h.b16 %v630
    %v828 = vunpack.c.l.b16 %v631
    %v829 = vunpack.c.h.b16 %v631
    %v830 = vpack.c.b16 %v710, %v702
    %v831 = vpack.c.b16 %v711, %v703
    %v832 = vpack.c.b16 %v712, %v704
    %v833 = vpack.c.b16 %v713, %v705
    %v834 = vpack.c.b16 %v714, %v706
    %v835 = vpack.c.b16 %v715, %v707
    %v836 = vpack.c.b16 %v716, %v708
    %v837 = vpack.c.b16 %v717, %v709
    %v838 = vpack.c.b16 %v726, %v718
    %v839 = vpack.c.b16 %v727, %v719
    %v840 = vpack.c.b16 %v728, %v720
    %v841 = vpack.c.b16 %v729, %v721
    %v842 = vpack.c.b16 %v730, %v722
    %v843 = vpack.c.b16 %v731, %v723
    %v844 = vpack.c.b16 %v732, %v724
    %v845 = vpack.c.b16 %v733, %v725
    %v846 = vpack.c.b16 %v742, %v734
    %v847 = vpack.c.b16 %v743, %v735
    %v848 = vpack.c.b16 %v744, %v736
    %v849 = vpack.c.b16 %v745, %v737
    %v850 = vpack.c.b16 %v746, %v738
    %v851 = vpack.c.b16 %v747, %v739
    %v852 = vpack.c.b16 %v748, %v740
    %v853 = vpack.c.b16 %v749, %v741
    %v854 = vpack.c.b16 %v758, %v750
    %v855 = vpack.c.b16 %v759, %v751
    %v856 = vpack.c.b16 %v760, %v752
    %v857 = vpack.c.b16 %v761, %v753
    %v858 = vpack.c.b16 %v762, %v754
    %v859 = vpack.c.b16 %v763, %v755
    %v860 = vpack.c.b16 %v764, %v756
    %v861 = vpack.c.b16 %v765, %v757
    %v862 = vpack.c.b16 %v774, %v766
    %v863 = vpack.c.b16 %v775, %v767
    %v864 = vpack.c.b16 %v776, %v768
    %v865 = vpack.c.b16 %v777, %v769
    %v866 = vpack.c.b16 %v778, %v770
    %v867 = vpack.c.b16 %v779, %v771
    %v868 = vpack.c.b16 %v780, %v772
    %v869 = vpack.c.b16 %v781, %v773
    %v870 = vpack.c.b16 %v790, %v782
    %v871 = vpack.c.b16 %v791, %v783
    %v872 = vpack.c.b16 %v792, %v784
    %v873 = vpack.c.b16 %v793, %v785
    %v874 = vpack.c.b16 %v794, %v786
    %v875 = vpack.c.b16 %v795, %v787
    %v876 = vpack.c.b16 %v796, %v788
    %v877 = vpack.c.b16 %v797, %v789
    %v878 = vpack.c.b16 %v806, %v798
    %v879 = vpack.c.b16 %v807, %v799
    %v880 = vpack.c.b16 %v808, %v800
    %v881 = vpack.c.b16 %v809, %v801
    %v882 = vpack.c.b16 %v810, %v802
    %v883 = vpack.c.b16 %v811, %v803
    %v884 = vpack.c.b16 %v812, %v804
    %v885 = vpack.c.b16 %v813, %v805
    %v886 = vpack.c.b16 %v822, %v814
    %v887 = vpack.c.b16 %v823, %v815
    %v888 = vpack.c.b16 %v824, %v816
    %v889 = vpack.c.b16 %v825, %v817
    %v890 = vpack.c.b16 %v826, %v818
    %v891 = vpack.c.b16 %v827, %v819
    %v892 = vpack.c.b16 %v828, %v820
    %v893 = vpack.c.b16 %v829, %v821
    %958 = vmatprep.subr.bf16.mxu0 %v887
    %959 = vmatpush1.bf16.msra.mxu0 %v886
    %960 = vmatprep.subr.bf16.mxu0 %v879
    %961 = vmatpush1.bf16.msra.mxu0 %v878
    %962 = vmatprep.subr.bf16.mxu0 %v871
    %963 = vmatpush1.bf16.msra.mxu0 %v870
    %964 = vmatprep.subr.bf16.mxu0 %v863
    %965 = vmatpush1.bf16.msra.mxu0 %v862
    %966 = vmatprep.subr.bf16.mxu0 %v855
    %967 = vmatpush1.bf16.msra.mxu0 %v854
    %968 = vmatprep.subr.bf16.mxu0 %v847
    %969 = vmatpush1.bf16.msra.mxu0 %v846
    %970 = vmatprep.subr.bf16.mxu0 %v839
    %971 = vmatpush1.bf16.msra.mxu0 %v838
    %972 = vmatprep.subr.bf16.mxu0 %v831
    %973 = vmatpush1.bf16.msra.mxu0 %v830
    %974 = vmatprep.subr.bf16.mxu0 0
    %975 = vmatpush2.bf16.msra.mxu0 0
    %976 = vmatprep.subr.bf16.mxu0 0
    %977 = vmatpush2.bf16.msra.mxu0 0
    %978 = vmatprep.subr.bf16.mxu0 0
    %979 = vmatpush2.bf16.msra.mxu0 0
    %980 = vmatprep.subr.bf16.mxu0 0
    %981 = vmatpush2.bf16.msra.mxu0 0
    %982 = vmatprep.subr.bf16.mxu0 0
    %983 = vmatpush2.bf16.msra.mxu0 0
    %984 = vmatprep.subr.bf16.mxu0 0
    %985 = vmatpush2.bf16.msra.mxu0 0
    %986 = vmatprep.subr.bf16.mxu0 0
    %987 = vmatpush2.bf16.msra.mxu0 0
    %988 = vmatprep.subr.bf16.mxu0 0
    %989 = vmatpush2.bf16.msra.mxu0 0
    %990 = vmatprep.mubr.bf16.mxu0 0
    %991 = vmatmul.mubr.bf16.gmra.mxu0 %v636
    %v992 = vpop.f32.mrf.mxu0
    %v993 = vadd.f32 0.0, %v992
    %v994 = vpop.f32.mrf.mxu0
    %v995 = vadd.f32 0.0, %v994
    %v996 = vpop.f32.mrf.mxu0
    %v997 = vadd.f32 0.0, %v996
    %v998 = vpop.f32.mrf.mxu0
    %v999 = vadd.f32 0.0, %v998
    %1000 = vdwg.mxu0
    %1001 = vmatprep.subr.bf16.mxu0 %v889
    %1002 = vmatpush1.bf16.msra.mxu0 %v888
    %1003 = vmatprep.subr.bf16.mxu0 %v881
    %1004 = vmatpush1.bf16.msra.mxu0 %v880
    %1005 = vmatprep.subr.bf16.mxu0 %v873
    %1006 = vmatpush1.bf16.msra.mxu0 %v872
    %1007 = vmatprep.subr.bf16.mxu0 %v865
    %1008 = vmatpush1.bf16.msra.mxu0 %v864
    %1009 = vmatprep.subr.bf16.mxu0 %v857
    %1010 = vmatpush1.bf16.msra.mxu0 %v856
    %1011 = vmatprep.subr.bf16.mxu0 %v849
    %1012 = vmatpush1.bf16.msra.mxu0 %v848
    %1013 = vmatprep.subr.bf16.mxu0 %v841
    %1014 = vmatpush1.bf16.msra.mxu0 %v840
    %1015 = vmatprep.subr.bf16.mxu0 %v833
    %1016 = vmatpush1.bf16.msra.mxu0 %v832
    %1017 = vmatprep.subr.bf16.mxu0 0
    %1018 = vmatpush2.bf16.msra.mxu0 0
    %1019 = vmatprep.subr.bf16.mxu0 0
    %1020 = vmatpush2.bf16.msra.mxu0 0
    %1021 = vmatprep.subr.bf16.mxu0 0
    %1022 = vmatpush2.bf16.msra.mxu0 0
    %1023 = vmatprep.subr.bf16.mxu0 0
    %1024 = vmatpush2.bf16.msra.mxu0 0
    %1025 = vmatprep.subr.bf16.mxu0 0
    %1026 = vmatpush2.bf16.msra.mxu0 0
    %1027 = vmatprep.subr.bf16.mxu0 0
    %1028 = vmatpush2.bf16.msra.mxu0 0
    %1029 = vmatprep.subr.bf16.mxu0 0
    %1030 = vmatpush2.bf16.msra.mxu0 0
    %1031 = vmatprep.subr.bf16.mxu0 0
    %1032 = vmatpush2.bf16.msra.mxu0 0
    %1033 = vmatprep.mubr.bf16.mxu0 0
    %1034 = vmatmul.mubr.bf16.gmra.mxu0 %v636
    %v1035 = vpop.f32.mrf.mxu0
    %v1036 = vadd.f32 0.0, %v1035
    %v1037 = vpop.f32.mrf.mxu0
    %v1038 = vadd.f32 0.0, %v1037
    %v1039 = vpop.f32.mrf.mxu0
    %v1040 = vadd.f32 0.0, %v1039
    %v1041 = vpop.f32.mrf.mxu0
    %v1042 = vadd.f32 0.0, %v1041
    %1043 = vdwg.mxu0
    %1044 = vmatprep.subr.bf16.mxu0 %v891
    %1045 = vmatpush1.bf16.msra.mxu0 %v890
    %1046 = vmatprep.subr.bf16.mxu0 %v883
    %1047 = vmatpush1.bf16.msra.mxu0 %v882
    %1048 = vmatprep.subr.bf16.mxu0 %v875
    %1049 = vmatpush1.bf16.msra.mxu0 %v874
    %1050 = vmatprep.subr.bf16.mxu0 %v867
    %1051 = vmatpush1.bf16.msra.mxu0 %v866
    %1052 = vmatprep.subr.bf16.mxu0 %v859
    %1053 = vmatpush1.bf16.msra.mxu0 %v858
    %1054 = vmatprep.subr.bf16.mxu0 %v851
    %1055 = vmatpush1.bf16.msra.mxu0 %v850
    %1056 = vmatprep.subr.bf16.mxu0 %v843
    %1057 = vmatpush1.bf16.msra.mxu0 %v842
    %1058 = vmatprep.subr.bf16.mxu0 %v835
    %1059 = vmatpush1.bf16.msra.mxu0 %v834
    %1060 = vmatprep.subr.bf16.mxu0 0
    %1061 = vmatpush2.bf16.msra.mxu0 0
    %1062 = vmatprep.subr.bf16.mxu0 0
    %1063 = vmatpush2.bf16.msra.mxu0 0
    %1064 = vmatprep.subr.bf16.mxu0 0
    %1065 = vmatpush2.bf16.msra.mxu0 0
    %1066 = vmatprep.subr.bf16.mxu0 0
    %1067 = vmatpush2.bf16.msra.mxu0 0
    %1068 = vmatprep.subr.bf16.mxu0 0
    %1069 = vmatpush2.bf16.msra.mxu0 0
    %1070 = vmatprep.subr.bf16.mxu0 0
    %1071 = vmatpush2.bf16.msra.mxu0 0
    %1072 = vmatprep.subr.bf16.mxu0 0
    %1073 = vmatpush2.bf16.msra.mxu0 0
    %1074 = vmatprep.subr.bf16.mxu0 0
    %1075 = vmatpush2.bf16.msra.mxu0 0
    %1076 = vmatprep.mubr.bf16.mxu0 0
    %1077 = vmatmul.mubr.bf16.gmra.mxu0 %v636
    %v1078 = vpop.f32.mrf.mxu0
    %v1079 = vadd.f32 0.0, %v1078
    %v1080 = vpop.f32.mrf.mxu0
    %v1081 = vadd.f32 0.0, %v1080
    %v1082 = vpop.f32.mrf.mxu0
    %v1083 = vadd.f32 0.0, %v1082
    %v1084 = vpop.f32.mrf.mxu0
    %v1085 = vadd.f32 0.0, %v1084
    %1086 = vdwg.mxu0
    %1087 = vmatprep.subr.bf16.mxu0 %v893
    %1088 = vmatpush1.bf16.msra.mxu0 %v892
    %1089 = vmatprep.subr.bf16.mxu0 %v885
    %1090 = vmatpush1.bf16.msra.mxu0 %v884
    %1091 = vmatprep.subr.bf16.mxu0 %v877
    %1092 = vmatpush1.bf16.msra.mxu0 %v876
    %1093 = vmatprep.subr.bf16.mxu0 %v869
    %1094 = vmatpush1.bf16.msra.mxu0 %v868
    %1095 = vmatprep.subr.bf16.mxu0 %v861
    %1096 = vmatpush1.bf16.msra.mxu0 %v860
    %1097 = vmatprep.subr.bf16.mxu0 %v853
    %1098 = vmatpush1.bf16.msra.mxu0 %v852
    %1099 = vmatprep.subr.bf16.mxu0 %v845
    %1100 = vmatpush1.bf16.msra.mxu0 %v844
    %1101 = vmatprep.subr.bf16.mxu0 %v837
    %1102 = vmatpush1.bf16.msra.mxu0 %v836
    %1103 = vmatprep.subr.bf16.mxu0 0
    %1104 = vmatpush2.bf16.msra.mxu0 0
    %1105 = vmatprep.subr.bf16.mxu0 0
    %1106 = vmatpush2.bf16.msra.mxu0 0
    %1107 = vmatprep.subr.bf16.mxu0 0
    %1108 = vmatpush2.bf16.msra.mxu0 0
    %1109 = vmatprep.subr.bf16.mxu0 0
    %1110 = vmatpush2.bf16.msra.mxu0 0
    %1111 = vmatprep.subr.bf16.mxu0 0
    %1112 = vmatpush2.bf16.msra.mxu0 0
    %1113 = vmatprep.subr.bf16.mxu0 0
    %1114 = vmatpush2.bf16.msra.mxu0 0
    %1115 = vmatprep.subr.bf16.mxu0 0
    %1116 = vmatpush2.bf16.msra.mxu0 0
    %1117 = vmatprep.subr.bf16.mxu0 0
    %1118 = vmatpush2.bf16.msra.mxu0 0
    %1119 = vmatprep.mubr.bf16.mxu0 0
    %1120 = vmatmul.mubr.bf16.gmra.mxu0 %v636
    %v1121 = vpop.f32.mrf.mxu0
    %v1122 = vadd.f32 0.0, %v1121
    %v1123 = vpop.f32.mrf.mxu0
    %v1124 = vadd.f32 0.0, %v1123
    %v1125 = vpop.f32.mrf.mxu0
    %v1126 = vadd.f32 0.0, %v1125
    %v1127 = vpop.f32.mrf.mxu0
    %v1128 = vadd.f32 0.0, %v1127
    %1129 = vdwg.mxu0
    %v1522 = vunpack.c.l.b16 %v174
    %v1523 = vunpack.c.h.b16 %v174
    %v1524 = vunpack.c.l.b16 %v175
    %v1525 = vunpack.c.h.b16 %v175
    %v1526 = vunpack.c.l.b16 %v176
    %v1527 = vunpack.c.h.b16 %v176
    %v1528 = vunpack.c.l.b16 %v177
    %v1529 = vunpack.c.h.b16 %v177
    %v1530 = vunpack.c.l.b16 %v178
    %v1531 = vunpack.c.h.b16 %v178
    %v1532 = vunpack.c.l.b16 %v179
    %v1533 = vunpack.c.h.b16 %v179
    %v1534 = vunpack.c.l.b16 %v180
    %v1535 = vunpack.c.h.b16 %v180
    %v1536 = vunpack.c.l.b16 %v181
    %v1537 = vunpack.c.h.b16 %v181
    %v1538 = vunpack.c.l.b16 %v182
    %v1539 = vunpack.c.h.b16 %v182
    %v1540 = vunpack.c.l.b16 %v183
    %v1541 = vunpack.c.h.b16 %v183
    %v1542 = vunpack.c.l.b16 %v184
    %v1543 = vunpack.c.h.b16 %v184
    %v1544 = vunpack.c.l.b16 %v185
    %v1545 = vunpack.c.h.b16 %v185
    %v1546 = vunpack.c.l.b16 %v186
    %v1547 = vunpack.c.h.b16 %v186
    %v1548 = vunpack.c.l.b16 %v187
    %v1549 = vunpack.c.h.b16 %v187
    %v1550 = vunpack.c.l.b16 %v188
    %v1551 = vunpack.c.h.b16 %v188
    %v1552 = vunpack.c.l.b16 %v189
    %v1553 = vunpack.c.h.b16 %v189
    %v1554 = vunpack.c.l.b16 %v190
    %v1555 = vunpack.c.h.b16 %v190
    %v1556 = vunpack.c.l.b16 %v191
    %v1557 = vunpack.c.h.b16 %v191
    %v1558 = vunpack.c.l.b16 %v192
    %v1559 = vunpack.c.h.b16 %v192
    %v1560 = vunpack.c.l.b16 %v193
    %v1561 = vunpack.c.h.b16 %v193
    %v1562 = vunpack.c.l.b16 %v194
    %v1563 = vunpack.c.h.b16 %v194
    %v1564 = vunpack.c.l.b16 %v195
    %v1565 = vunpack.c.h.b16 %v195
    %v1566 = vunpack.c.l.b16 %v196
    %v1567 = vunpack.c.h.b16 %v196
    %v1568 = vunpack.c.l.b16 %v197
    %v1569 = vunpack.c.h.b16 %v197
    %v1570 = vunpack.c.l.b16 %v198
    %v1571 = vunpack.c.h.b16 %v198
    %v1572 = vunpack.c.l.b16 %v199
    %v1573 = vunpack.c.h.b16 %v199
    %v1574 = vunpack.c.l.b16 %v200
    %v1575 = vunpack.c.h.b16 %v200
    %v1576 = vunpack.c.l.b16 %v201
    %v1577 = vunpack.c.h.b16 %v201
    %v1578 = vunpack.c.l.b16 %v202
    %v1579 = vunpack.c.h.b16 %v202
    %v1580 = vunpack.c.l.b16 %v203
    %v1581 = vunpack.c.h.b16 %v203
    %v1582 = vunpack.c.l.b16 %v204
    %v1583 = vunpack.c.h.b16 %v204
    %v1584 = vunpack.c.l.b16 %v205
    %v1585 = vunpack.c.h.b16 %v205
    %v1586 = vunpack.c.l.b16 %v206
    %v1587 = vunpack.c.h.b16 %v206
    %v1588 = vunpack.c.l.b16 %v207
    %v1589 = vunpack.c.h.b16 %v207
    %v1590 = vunpack.c.l.b16 %v208
    %v1591 = vunpack.c.h.b16 %v208
    %v1592 = vunpack.c.l.b16 %v209
    %v1593 = vunpack.c.h.b16 %v209
    %v1594 = vunpack.c.l.b16 %v210
    %v1595 = vunpack.c.h.b16 %v210
    %v1596 = vunpack.c.l.b16 %v211
    %v1597 = vunpack.c.h.b16 %v211
    %v1598 = vunpack.c.l.b16 %v212
    %v1599 = vunpack.c.h.b16 %v212
    %v1600 = vunpack.c.l.b16 %v213
    %v1601 = vunpack.c.h.b16 %v213
    %v1602 = vunpack.c.l.b16 %v214
    %v1603 = vunpack.c.h.b16 %v214
    %v1604 = vunpack.c.l.b16 %v215
    %v1605 = vunpack.c.h.b16 %v215
    %v1606 = vunpack.c.l.b16 %v216
    %v1607 = vunpack.c.h.b16 %v216
    %v1608 = vunpack.c.l.b16 %v217
    %v1609 = vunpack.c.h.b16 %v217
    %v1610 = vunpack.c.l.b16 %v218
    %v1611 = vunpack.c.h.b16 %v218
    %v1612 = vunpack.c.l.b16 %v219
    %v1613 = vunpack.c.h.b16 %v219
    %v1614 = vunpack.c.l.b16 %v220
    %v1615 = vunpack.c.h.b16 %v220
    %v1616 = vunpack.c.l.b16 %v221
    %v1617 = vunpack.c.h.b16 %v221
    %v1618 = vunpack.c.l.b16 %v222
    %v1619 = vunpack.c.h.b16 %v222
    %v1620 = vunpack.c.l.b16 %v223
    %v1621 = vunpack.c.h.b16 %v223
    %v1622 = vunpack.c.l.b16 %v224
    %v1623 = vunpack.c.h.b16 %v224
    %v1624 = vunpack.c.l.b16 %v225
    %v1625 = vunpack.c.h.b16 %v225
    %v1626 = vunpack.c.l.b16 %v226
    %v1627 = vunpack.c.h.b16 %v226
    %v1628 = vunpack.c.l.b16 %v227
    %v1629 = vunpack.c.h.b16 %v227
    %v1630 = vunpack.c.l.b16 %v228
    %v1631 = vunpack.c.h.b16 %v228
    %v1632 = vunpack.c.l.b16 %v229
    %v1633 = vunpack.c.h.b16 %v229
    %v1634 = vunpack.c.l.b16 %v230
    %v1635 = vunpack.c.h.b16 %v230
    %v1636 = vunpack.c.l.b16 %v231
    %v1637 = vunpack.c.h.b16 %v231
    %v1638 = vunpack.c.l.b16 %v232
    %v1639 = vunpack.c.h.b16 %v232
    %v1640 = vunpack.c.l.b16 %v233
    %v1641 = vunpack.c.h.b16 %v233
    %v1642 = vunpack.c.l.b16 %v234
    %v1643 = vunpack.c.h.b16 %v234
    %v1644 = vunpack.c.l.b16 %v235
    %v1645 = vunpack.c.h.b16 %v235
    %v1646 = vunpack.c.l.b16 %v236
    %v1647 = vunpack.c.h.b16 %v236
    %v1648 = vunpack.c.l.b16 %v237
    %v1649 = vunpack.c.h.b16 %v237
    %v1650 = vunpack.c.l.b16 %v238
    %v1651 = vunpack.c.h.b16 %v238
    %v1652 = vunpack.c.l.b16 %v239
    %v1653 = vunpack.c.h.b16 %v239
    %v1654 = vunpack.c.l.b16 %v240
    %v1655 = vunpack.c.h.b16 %v240
    %v1656 = vunpack.c.l.b16 %v241
    %v1657 = vunpack.c.h.b16 %v241
    %v1658 = vunpack.c.l.b16 %v242
    %v1659 = vunpack.c.h.b16 %v242
    %v1660 = vunpack.c.l.b16 %v243
    %v1661 = vunpack.c.h.b16 %v243
    %v1662 = vunpack.c.l.b16 %v244
    %v1663 = vunpack.c.h.b16 %v244
    %v1664 = vunpack.c.l.b16 %v245
    %v1665 = vunpack.c.h.b16 %v245
    %v1666 = vunpack.c.l.b16 %v246
    %v1667 = vunpack.c.h.b16 %v246
    %v1668 = vunpack.c.l.b16 %v247
    %v1669 = vunpack.c.h.b16 %v247
    %v1670 = vunpack.c.l.b16 %v248
    %v1671 = vunpack.c.h.b16 %v248
    %v1672 = vunpack.c.l.b16 %v249
    %v1673 = vunpack.c.h.b16 %v249
    %v1674 = vunpack.c.l.b16 %v250
    %v1675 = vunpack.c.h.b16 %v250
    %v1676 = vunpack.c.l.b16 %v251
    %v1677 = vunpack.c.h.b16 %v251
    %v1678 = vunpack.c.l.b16 %v252
    %v1679 = vunpack.c.h.b16 %v252
    %v1680 = vunpack.c.l.b16 %v253
    %v1681 = vunpack.c.h.b16 %v253
    %v1682 = vunpack.c.l.b16 %v254
    %v1683 = vunpack.c.h.b16 %v254
    %v1684 = vunpack.c.l.b16 %v255
    %v1685 = vunpack.c.h.b16 %v255
    %v1686 = vunpack.c.l.b16 %v256
    %v1687 = vunpack.c.h.b16 %v256
    %v1688 = vunpack.c.l.b16 %v257
    %v1689 = vunpack.c.h.b16 %v257
    %v1690 = vunpack.c.l.b16 %v258
    %v1691 = vunpack.c.h.b16 %v258
    %v1692 = vunpack.c.l.b16 %v259
    %v1693 = vunpack.c.h.b16 %v259
    %v1694 = vunpack.c.l.b16 %v260
    %v1695 = vunpack.c.h.b16 %v260
    %v1696 = vunpack.c.l.b16 %v261
    %v1697 = vunpack.c.h.b16 %v261
    %v1698 = vunpack.c.l.b16 %v262
    %v1699 = vunpack.c.h.b16 %v262
    %v1700 = vunpack.c.l.b16 %v263
    %v1701 = vunpack.c.h.b16 %v263
    %v1702 = vunpack.c.l.b16 %v264
    %v1703 = vunpack.c.h.b16 %v264
    %v1704 = vunpack.c.l.b16 %v265
    %v1705 = vunpack.c.h.b16 %v265
    %v1706 = vunpack.c.l.b16 %v266
    %v1707 = vunpack.c.h.b16 %v266
    %v1708 = vunpack.c.l.b16 %v267
    %v1709 = vunpack.c.h.b16 %v267
    %v1710 = vunpack.c.l.b16 %v268
    %v1711 = vunpack.c.h.b16 %v268
    %v1712 = vunpack.c.l.b16 %v269
    %v1713 = vunpack.c.h.b16 %v269
    %v1714 = vunpack.c.l.b16 %v270
    %v1715 = vunpack.c.h.b16 %v270
    %v1716 = vunpack.c.l.b16 %v271
    %v1717 = vunpack.c.h.b16 %v271
    %v1718 = vunpack.c.l.b16 %v272
    %v1719 = vunpack.c.h.b16 %v272
    %v1720 = vunpack.c.l.b16 %v273
    %v1721 = vunpack.c.h.b16 %v273
    %v1722 = vunpack.c.l.b16 %v274
    %v1723 = vunpack.c.h.b16 %v274
    %v1724 = vunpack.c.l.b16 %v275
    %v1725 = vunpack.c.h.b16 %v275
    %v1726 = vunpack.c.l.b16 %v276
    %v1727 = vunpack.c.h.b16 %v276
    %v1728 = vunpack.c.l.b16 %v277
    %v1729 = vunpack.c.h.b16 %v277
    %v1730 = vunpack.c.l.b16 %v278
    %v1731 = vunpack.c.h.b16 %v278
    %v1732 = vunpack.c.l.b16 %v279
    %v1733 = vunpack.c.h.b16 %v279
    %v1734 = vunpack.c.l.b16 %v280
    %v1735 = vunpack.c.h.b16 %v280
    %v1736 = vunpack.c.l.b16 %v281
    %v1737 = vunpack.c.h.b16 %v281
    %v1738 = vunpack.c.l.b16 %v282
    %v1739 = vunpack.c.h.b16 %v282
    %v1740 = vunpack.c.l.b16 %v283
    %v1741 = vunpack.c.h.b16 %v283
    %v1742 = vunpack.c.l.b16 %v284
    %v1743 = vunpack.c.h.b16 %v284
    %v1744 = vunpack.c.l.b16 %v285
    %v1745 = vunpack.c.h.b16 %v285
    %v1746 = vunpack.c.l.b16 %v286
    %v1747 = vunpack.c.h.b16 %v286
    %v1748 = vunpack.c.l.b16 %v287
    %v1749 = vunpack.c.h.b16 %v287
    %v1750 = vunpack.c.l.b16 %v288
    %v1751 = vunpack.c.h.b16 %v288
    %v1752 = vunpack.c.l.b16 %v289
    %v1753 = vunpack.c.h.b16 %v289
    %v1754 = vunpack.c.l.b16 %v290
    %v1755 = vunpack.c.h.b16 %v290
    %v1756 = vunpack.c.l.b16 %v291
    %v1757 = vunpack.c.h.b16 %v291
    %v1758 = vunpack.c.l.b16 %v292
    %v1759 = vunpack.c.h.b16 %v292
    %v1760 = vunpack.c.l.b16 %v293
    %v1761 = vunpack.c.h.b16 %v293
    %v1762 = vunpack.c.l.b16 %v294
    %v1763 = vunpack.c.h.b16 %v294
    %v1764 = vunpack.c.l.b16 %v295
    %v1765 = vunpack.c.h.b16 %v295
    %v1766 = vunpack.c.l.b16 %v296
    %v1767 = vunpack.c.h.b16 %v296
    %v1768 = vunpack.c.l.b16 %v297
    %v1769 = vunpack.c.h.b16 %v297
    %v1770 = vunpack.c.l.b16 %v298
    %v1771 = vunpack.c.h.b16 %v298
    %v1772 = vunpack.c.l.b16 %v299
    %v1773 = vunpack.c.h.b16 %v299
    %v1774 = vunpack.c.l.b16 %v300
    %v1775 = vunpack.c.h.b16 %v300
    %v1776 = vunpack.c.l.b16 %v301
    %v1777 = vunpack.c.h.b16 %v301
    %v1778 = vunpack.c.l.b16 %v302
    %v1779 = vunpack.c.h.b16 %v302
    %v1780 = vunpack.c.l.b16 %v303
    %v1781 = vunpack.c.h.b16 %v303
    %v1782 = vunpack.c.l.b16 %v304
    %v1783 = vunpack.c.h.b16 %v304
    %v1784 = vunpack.c.l.b16 %v305
    %v1785 = vunpack.c.h.b16 %v305
    %v1786 = vunpack.c.l.b16 %v306
    %v1787 = vunpack.c.h.b16 %v306
    %v1788 = vunpack.c.l.b16 %v307
    %v1789 = vunpack.c.h.b16 %v307
    %v1790 = vunpack.c.l.b16 %v308
    %v1791 = vunpack.c.h.b16 %v308
    %v1792 = vunpack.c.l.b16 %v309
    %v1793 = vunpack.c.h.b16 %v309
    %v1794 = vunpack.c.l.b16 %v310
    %v1795 = vunpack.c.h.b16 %v310
    %v1796 = vunpack.c.l.b16 %v311
    %v1797 = vunpack.c.h.b16 %v311
    %v1798 = vunpack.c.l.b16 %v312
    %v1799 = vunpack.c.h.b16 %v312
    %v1800 = vunpack.c.l.b16 %v313
    %v1801 = vunpack.c.h.b16 %v313
    %v1802 = vunpack.c.l.b16 %v314
    %v1803 = vunpack.c.h.b16 %v314
    %v1804 = vunpack.c.l.b16 %v315
    %v1805 = vunpack.c.h.b16 %v315
    %v1806 = vunpack.c.l.b16 %v316
    %v1807 = vunpack.c.h.b16 %v316
    %v1808 = vunpack.c.l.b16 %v317
    %v1809 = vunpack.c.h.b16 %v317
    %v1810 = vunpack.c.l.b16 %v318
    %v1811 = vunpack.c.h.b16 %v318
    %v1812 = vunpack.c.l.b16 %v319
    %v1813 = vunpack.c.h.b16 %v319
    %v1814 = vunpack.c.l.b16 %v320
    %v1815 = vunpack.c.h.b16 %v320
    %v1816 = vunpack.c.l.b16 %v321
    %v1817 = vunpack.c.h.b16 %v321
    %v1818 = vunpack.c.l.b16 %v322
    %v1819 = vunpack.c.h.b16 %v322
    %v1820 = vunpack.c.l.b16 %v323
    %v1821 = vunpack.c.h.b16 %v323
    %v1822 = vunpack.c.l.b16 %v324
    %v1823 = vunpack.c.h.b16 %v324
    %v1824 = vunpack.c.l.b16 %v325
    %v1825 = vunpack.c.h.b16 %v325
    %v1826 = vunpack.c.l.b16 %v326
    %v1827 = vunpack.c.h.b16 %v326
    %v1828 = vunpack.c.l.b16 %v327
    %v1829 = vunpack.c.h.b16 %v327
    %v1830 = vunpack.c.l.b16 %v328
    %v1831 = vunpack.c.h.b16 %v328
    %v1832 = vunpack.c.l.b16 %v329
    %v1833 = vunpack.c.h.b16 %v329
    %v1834 = vunpack.c.l.b16 %v330
    %v1835 = vunpack.c.h.b16 %v330
    %v1836 = vunpack.c.l.b16 %v331
    %v1837 = vunpack.c.h.b16 %v331
    %v1838 = vunpack.c.l.b16 %v332
    %v1839 = vunpack.c.h.b16 %v332
    %v1840 = vunpack.c.l.b16 %v333
    %v1841 = vunpack.c.h.b16 %v333
    %v1842 = vunpack.c.l.b16 %v334
    %v1843 = vunpack.c.h.b16 %v334
    %v1844 = vunpack.c.l.b16 %v335
    %v1845 = vunpack.c.h.b16 %v335
    %v1846 = vunpack.c.l.b16 %v336
    %v1847 = vunpack.c.h.b16 %v336
    %v1848 = vunpack.c.l.b16 %v337
    %v1849 = vunpack.c.h.b16 %v337
    %v1850 = vunpack.c.l.b16 %v338
    %v1851 = vunpack.c.h.b16 %v338
    %v1852 = vunpack.c.l.b16 %v339
    %v1853 = vunpack.c.h.b16 %v339
    %v1854 = vunpack.c.l.b16 %v340
    %v1855 = vunpack.c.h.b16 %v340
    %v1856 = vunpack.c.l.b16 %v341
    %v1857 = vunpack.c.h.b16 %v341
    %v1858 = vunpack.c.l.b16 %v342
    %v1859 = vunpack.c.h.b16 %v342
    %v1860 = vunpack.c.l.b16 %v343
    %v1861 = vunpack.c.h.b16 %v343
    %v1862 = vunpack.c.l.b16 %v344
    %v1863 = vunpack.c.h.b16 %v344
    %v1864 = vunpack.c.l.b16 %v345
    %v1865 = vunpack.c.h.b16 %v345
    %v1866 = vunpack.c.l.b16 %v346
    %v1867 = vunpack.c.h.b16 %v346
    %v1868 = vunpack.c.l.b16 %v347
    %v1869 = vunpack.c.h.b16 %v347
    %v1870 = vunpack.c.l.b16 %v348
    %v1871 = vunpack.c.h.b16 %v348
    %v1872 = vunpack.c.l.b16 %v349
    %v1873 = vunpack.c.h.b16 %v349
    %v1874 = vunpack.c.l.b16 %v350
    %v1875 = vunpack.c.h.b16 %v350
    %v1876 = vunpack.c.l.b16 %v351
    %v1877 = vunpack.c.h.b16 %v351
    %v1878 = vunpack.c.l.b16 %v352
    %v1879 = vunpack.c.h.b16 %v352
    %v1880 = vunpack.c.l.b16 %v353
    %v1881 = vunpack.c.h.b16 %v353
    %v1882 = vunpack.c.l.b16 %v354
    %v1883 = vunpack.c.h.b16 %v354
    %v1884 = vunpack.c.l.b16 %v355
    %v1885 = vunpack.c.h.b16 %v355
    %v1886 = vunpack.c.l.b16 %v356
    %v1887 = vunpack.c.h.b16 %v356
    %v1888 = vunpack.c.l.b16 %v357
    %v1889 = vunpack.c.h.b16 %v357
    %v1890 = vunpack.c.l.b16 %v358
    %v1891 = vunpack.c.h.b16 %v358
    %v1892 = vunpack.c.l.b16 %v359
    %v1893 = vunpack.c.h.b16 %v359
    %v1894 = vunpack.c.l.b16 %v360
    %v1895 = vunpack.c.h.b16 %v360
    %v1896 = vunpack.c.l.b16 %v361
    %v1897 = vunpack.c.h.b16 %v361
    %v1898 = vunpack.c.l.b16 %v362
    %v1899 = vunpack.c.h.b16 %v362
    %v1900 = vunpack.c.l.b16 %v363
    %v1901 = vunpack.c.h.b16 %v363
    %v1902 = vunpack.c.l.b16 %v364
    %v1903 = vunpack.c.h.b16 %v364
    %v1904 = vunpack.c.l.b16 %v365
    %v1905 = vunpack.c.h.b16 %v365
    %v1906 = vunpack.c.l.b16 %v366
    %v1907 = vunpack.c.h.b16 %v366
    %v1908 = vunpack.c.l.b16 %v367
    %v1909 = vunpack.c.h.b16 %v367
    %v1910 = vunpack.c.l.b16 %v368
    %v1911 = vunpack.c.h.b16 %v368
    %v1912 = vunpack.c.l.b16 %v369
    %v1913 = vunpack.c.h.b16 %v369
    %v1914 = vunpack.c.l.b16 %v370
    %v1915 = vunpack.c.h.b16 %v370
    %v1916 = vunpack.c.l.b16 %v371
    %v1917 = vunpack.c.h.b16 %v371
    %v1918 = vunpack.c.l.b16 %v372
    %v1919 = vunpack.c.h.b16 %v372
    %v1920 = vunpack.c.l.b16 %v373
    %v1921 = vunpack.c.h.b16 %v373
    %v1922 = vunpack.c.l.b16 %v374
    %v1923 = vunpack.c.h.b16 %v374
    %v1924 = vunpack.c.l.b16 %v375
    %v1925 = vunpack.c.h.b16 %v375
    %v1926 = vunpack.c.l.b16 %v376
    %v1927 = vunpack.c.h.b16 %v376
    %v1928 = vunpack.c.l.b16 %v377
    %v1929 = vunpack.c.h.b16 %v377
    %v1930 = vunpack.c.l.b16 %v378
    %v1931 = vunpack.c.h.b16 %v378
    %v1932 = vunpack.c.l.b16 %v379
    %v1933 = vunpack.c.h.b16 %v379
    %v1934 = vunpack.c.l.b16 %v380
    %v1935 = vunpack.c.h.b16 %v380
    %v1936 = vunpack.c.l.b16 %v381
    %v1937 = vunpack.c.h.b16 %v381
    %v1938 = vunpack.c.l.b16 %v382
    %v1939 = vunpack.c.h.b16 %v382
    %v1940 = vunpack.c.l.b16 %v383
    %v1941 = vunpack.c.h.b16 %v383
    %v1942 = vunpack.c.l.b16 %v384
    %v1943 = vunpack.c.h.b16 %v384
    %v1944 = vunpack.c.l.b16 %v385
    %v1945 = vunpack.c.h.b16 %v385
    %v1946 = vunpack.c.l.b16 %v386
    %v1947 = vunpack.c.h.b16 %v386
    %v1948 = vunpack.c.l.b16 %v387
    %v1949 = vunpack.c.h.b16 %v387
    %v1950 = vunpack.c.l.b16 %v388
    %v1951 = vunpack.c.h.b16 %v388
    %v1952 = vunpack.c.l.b16 %v389
    %v1953 = vunpack.c.h.b16 %v389
    %v1954 = vunpack.c.l.b16 %v390
    %v1955 = vunpack.c.h.b16 %v390
    %v1956 = vunpack.c.l.b16 %v391
    %v1957 = vunpack.c.h.b16 %v391
    %v1958 = vunpack.c.l.b16 %v392
    %v1959 = vunpack.c.h.b16 %v392
    %v1960 = vunpack.c.l.b16 %v393
    %v1961 = vunpack.c.h.b16 %v393
    %v1962 = vunpack.c.l.b16 %v394
    %v1963 = vunpack.c.h.b16 %v394
    %v1964 = vunpack.c.l.b16 %v395
    %v1965 = vunpack.c.h.b16 %v395
    %v1966 = vunpack.c.l.b16 %v396
    %v1967 = vunpack.c.h.b16 %v396
    %v1968 = vunpack.c.l.b16 %v397
    %v1969 = vunpack.c.h.b16 %v397
    %v1970 = vunpack.c.l.b16 %v398
    %v1971 = vunpack.c.h.b16 %v398
    %v1972 = vunpack.c.l.b16 %v399
    %v1973 = vunpack.c.h.b16 %v399
    %v1974 = vunpack.c.l.b16 %v400
    %v1975 = vunpack.c.h.b16 %v400
    %v1976 = vunpack.c.l.b16 %v401
    %v1977 = vunpack.c.h.b16 %v401
    %v1978 = vunpack.c.l.b16 %v402
    %v1979 = vunpack.c.h.b16 %v402
    %v1980 = vunpack.c.l.b16 %v403
    %v1981 = vunpack.c.h.b16 %v403
    %v1982 = vunpack.c.l.b16 %v404
    %v1983 = vunpack.c.h.b16 %v404
    %v1984 = vunpack.c.l.b16 %v405
    %v1985 = vunpack.c.h.b16 %v405
    %v1986 = vunpack.c.l.b16 %v406
    %v1987 = vunpack.c.h.b16 %v406
    %v1988 = vunpack.c.l.b16 %v407
    %v1989 = vunpack.c.h.b16 %v407
    %v1990 = vunpack.c.l.b16 %v408
    %v1991 = vunpack.c.h.b16 %v408
    %v1992 = vunpack.c.l.b16 %v409
    %v1993 = vunpack.c.h.b16 %v409
    %v1994 = vunpack.c.l.b16 %v410
    %v1995 = vunpack.c.h.b16 %v410
    %v1996 = vunpack.c.l.b16 %v411
    %v1997 = vunpack.c.h.b16 %v411
    %v1998 = vunpack.c.l.b16 %v412
    %v1999 = vunpack.c.h.b16 %v412
    %v2000 = vunpack.c.l.b16 %v413
    %v2001 = vunpack.c.h.b16 %v413
    %v2002 = vunpack.c.l.b16 %v414
    %v2003 = vunpack.c.h.b16 %v414
    %v2004 = vunpack.c.l.b16 %v415
    %v2005 = vunpack.c.h.b16 %v415
    %v2006 = vunpack.c.l.b16 %v416
    %v2007 = vunpack.c.h.b16 %v416
    %v2008 = vunpack.c.l.b16 %v417
    %v2009 = vunpack.c.h.b16 %v417
    %v2010 = vunpack.c.l.b16 %v418
    %v2011 = vunpack.c.h.b16 %v418
    %v2012 = vunpack.c.l.b16 %v419
    %v2013 = vunpack.c.h.b16 %v419
    %v2014 = vunpack.c.l.b16 %v420
    %v2015 = vunpack.c.h.b16 %v420
    %v2016 = vunpack.c.l.b16 %v421
    %v2017 = vunpack.c.h.b16 %v421
    %v2018 = vunpack.c.l.b16 %v422
    %v2019 = vunpack.c.h.b16 %v422
    %v2020 = vunpack.c.l.b16 %v423
    %v2021 = vunpack.c.h.b16 %v423
    %v2022 = vunpack.c.l.b16 %v424
    %v2023 = vunpack.c.h.b16 %v424
    %v2024 = vunpack.c.l.b16 %v425
    %v2025 = vunpack.c.h.b16 %v425
    %v2026 = vunpack.c.l.b16 %v426
    %v2027 = vunpack.c.h.b16 %v426
    %v2028 = vunpack.c.l.b16 %v427
    %v2029 = vunpack.c.h.b16 %v427
    %v2030 = vunpack.c.l.b16 %v428
    %v2031 = vunpack.c.h.b16 %v428
    %v2032 = vunpack.c.l.b16 %v429
    %v2033 = vunpack.c.h.b16 %v429
    %v2034 = vunpack.c.l.b16 %v430
    %v2035 = vunpack.c.h.b16 %v430
    %v2036 = vunpack.c.l.b16 %v431
    %v2037 = vunpack.c.h.b16 %v431
    %v2038 = vunpack.c.l.b16 %v432
    %v2039 = vunpack.c.h.b16 %v432
    %v2040 = vunpack.c.l.b16 %v433
    %v2041 = vunpack.c.h.b16 %v433
    %v2042 = vunpack.c.l.b16 %v434
    %v2043 = vunpack.c.h.b16 %v434
    %v2044 = vunpack.c.l.b16 %v435
    %v2045 = vunpack.c.h.b16 %v435
    %v2046 = vunpack.c.l.b16 %v436
    %v2047 = vunpack.c.h.b16 %v436
    %v2048 = vunpack.c.l.b16 %v437
    %v2049 = vunpack.c.h.b16 %v437
    %v2050 = vunpack.c.l.b16 %v438
    %v2051 = vunpack.c.h.b16 %v438
    %v2052 = vunpack.c.l.b16 %v439
    %v2053 = vunpack.c.h.b16 %v439
    %v2054 = vunpack.c.l.b16 %v440
    %v2055 = vunpack.c.h.b16 %v440
    %v2056 = vunpack.c.l.b16 %v441
    %v2057 = vunpack.c.h.b16 %v441
    %v2058 = vunpack.c.l.b16 %v442
    %v2059 = vunpack.c.h.b16 %v442
    %v2060 = vunpack.c.l.b16 %v443
    %v2061 = vunpack.c.h.b16 %v443
    %v2062 = vunpack.c.l.b16 %v444
    %v2063 = vunpack.c.h.b16 %v444
    %v2064 = vunpack.c.l.b16 %v445
    %v2065 = vunpack.c.h.b16 %v445
    %v2066 = vunpack.c.l.b16 %v446
    %v2067 = vunpack.c.h.b16 %v446
    %v2068 = vunpack.c.l.b16 %v447
    %v2069 = vunpack.c.h.b16 %v447
    %v2070 = vunpack.c.l.b16 %v448
    %v2071 = vunpack.c.h.b16 %v448
    %v2072 = vunpack.c.l.b16 %v449
    %v2073 = vunpack.c.h.b16 %v449
    %v2074 = vunpack.c.l.b16 %v450
    %v2075 = vunpack.c.h.b16 %v450
    %v2076 = vunpack.c.l.b16 %v451
    %v2077 = vunpack.c.h.b16 %v451
    %v2078 = vunpack.c.l.b16 %v452
    %v2079 = vunpack.c.h.b16 %v452
    %v2080 = vunpack.c.l.b16 %v453
    %v2081 = vunpack.c.h.b16 %v453
    %v2082 = vunpack.c.l.b16 %v454
    %v2083 = vunpack.c.h.b16 %v454
    %v2084 = vunpack.c.l.b16 %v455
    %v2085 = vunpack.c.h.b16 %v455
    %v2086 = vunpack.c.l.b16 %v456
    %v2087 = vunpack.c.h.b16 %v456
    %v2088 = vunpack.c.l.b16 %v457
    %v2089 = vunpack.c.h.b16 %v457
    %v2090 = vunpack.c.l.b16 %v458
    %v2091 = vunpack.c.h.b16 %v458
    %v2092 = vunpack.c.l.b16 %v459
    %v2093 = vunpack.c.h.b16 %v459
    %v2094 = vunpack.c.l.b16 %v460
    %v2095 = vunpack.c.h.b16 %v460
    %v2096 = vunpack.c.l.b16 %v461
    %v2097 = vunpack.c.h.b16 %v461
    %v2098 = vunpack.c.l.b16 %v462
    %v2099 = vunpack.c.h.b16 %v462
    %v2100 = vunpack.c.l.b16 %v463
    %v2101 = vunpack.c.h.b16 %v463
    %v2102 = vunpack.c.l.b16 %v464
    %v2103 = vunpack.c.h.b16 %v464
    %v2104 = vunpack.c.l.b16 %v465
    %v2105 = vunpack.c.h.b16 %v465
    %v2106 = vunpack.c.l.b16 %v466
    %v2107 = vunpack.c.h.b16 %v466
    %v2108 = vunpack.c.l.b16 %v467
    %v2109 = vunpack.c.h.b16 %v467
    %v2110 = vunpack.c.l.b16 %v468
    %v2111 = vunpack.c.h.b16 %v468
    %v2112 = vunpack.c.l.b16 %v469
    %v2113 = vunpack.c.h.b16 %v469
    %v2114 = vunpack.c.l.b16 %v470
    %v2115 = vunpack.c.h.b16 %v470
    %v2116 = vunpack.c.l.b16 %v471
    %v2117 = vunpack.c.h.b16 %v471
    %v2118 = vunpack.c.l.b16 %v472
    %v2119 = vunpack.c.h.b16 %v472
    %v2120 = vunpack.c.l.b16 %v473
    %v2121 = vunpack.c.h.b16 %v473
    %v2122 = vunpack.c.l.b16 %v474
    %v2123 = vunpack.c.h.b16 %v474
    %v2124 = vunpack.c.l.b16 %v475
    %v2125 = vunpack.c.h.b16 %v475
    %v2126 = vunpack.c.l.b16 %v476
    %v2127 = vunpack.c.h.b16 %v476
    %v2128 = vunpack.c.l.b16 %v477
    %v2129 = vunpack.c.h.b16 %v477
    %v2130 = vunpack.c.l.b16 %v478
    %v2131 = vunpack.c.h.b16 %v478
    %v2132 = vunpack.c.l.b16 %v479
    %v2133 = vunpack.c.h.b16 %v479
    %v2134 = vunpack.c.l.b16 %v480
    %v2135 = vunpack.c.h.b16 %v480
    %v2136 = vunpack.c.l.b16 %v481
    %v2137 = vunpack.c.h.b16 %v481
    %v2138 = vunpack.c.l.b16 %v482
    %v2139 = vunpack.c.h.b16 %v482
    %v2140 = vunpack.c.l.b16 %v483
    %v2141 = vunpack.c.h.b16 %v483
    %v2142 = vunpack.c.l.b16 %v484
    %v2143 = vunpack.c.h.b16 %v484
    %v2144 = vunpack.c.l.b16 %v485
    %v2145 = vunpack.c.h.b16 %v485
    %v2146 = vunpack.c.l.b16 %v486
    %v2147 = vunpack.c.h.b16 %v486
    %v2148 = vunpack.c.l.b16 %v487
    %v2149 = vunpack.c.h.b16 %v487
    %v2150 = vunpack.c.l.b16 %v488
    %v2151 = vunpack.c.h.b16 %v488
    %v2152 = vunpack.c.l.b16 %v489
    %v2153 = vunpack.c.h.b16 %v489
    %v2154 = vunpack.c.l.b16 %v490
    %v2155 = vunpack.c.h.b16 %v490
    %v2156 = vunpack.c.l.b16 %v491
    %v2157 = vunpack.c.h.b16 %v491
    %v2158 = vunpack.c.l.b16 %v492
    %v2159 = vunpack.c.h.b16 %v492
    %v2160 = vunpack.c.l.b16 %v493
    %v2161 = vunpack.c.h.b16 %v493
    %v2162 = vunpack.c.l.b16 %v494
    %v2163 = vunpack.c.h.b16 %v494
    %v2164 = vunpack.c.l.b16 %v495
    %v2165 = vunpack.c.h.b16 %v495
    %v2166 = vunpack.c.l.b16 %v496
    %v2167 = vunpack.c.h.b16 %v496
    %v2168 = vunpack.c.l.b16 %v497
    %v2169 = vunpack.c.h.b16 %v497
    %v2170 = vunpack.c.l.b16 %v498
    %v2171 = vunpack.c.h.b16 %v498
    %v2172 = vunpack.c.l.b16 %v499
    %v2173 = vunpack.c.h.b16 %v499
    %v2174 = vunpack.c.l.b16 %v500
    %v2175 = vunpack.c.h.b16 %v500
    %v2176 = vunpack.c.l.b16 %v501
    %v2177 = vunpack.c.h.b16 %v501
    %v2178 = vunpack.c.l.b16 %v502
    %v2179 = vunpack.c.h.b16 %v502
    %v2180 = vunpack.c.l.b16 %v503
    %v2181 = vunpack.c.h.b16 %v503
    %v2182 = vunpack.c.l.b16 %v504
    %v2183 = vunpack.c.h.b16 %v504
    %v2184 = vunpack.c.l.b16 %v505
    %v2185 = vunpack.c.h.b16 %v505
    %v2186 = vunpack.c.l.b16 %v506
    %v2187 = vunpack.c.h.b16 %v506
    %v2188 = vunpack.c.l.b16 %v507
    %v2189 = vunpack.c.h.b16 %v507
    %v2190 = vunpack.c.l.b16 %v508
    %v2191 = vunpack.c.h.b16 %v508
    %v2192 = vunpack.c.l.b16 %v509
    %v2193 = vunpack.c.h.b16 %v509
    %v2194 = vunpack.c.l.b16 %v510
    %v2195 = vunpack.c.h.b16 %v510
    %v2196 = vunpack.c.l.b16 %v511
    %v2197 = vunpack.c.h.b16 %v511
    %v2198 = vunpack.c.l.b16 %v512
    %v2199 = vunpack.c.h.b16 %v512
    %v2200 = vunpack.c.l.b16 %v513
    %v2201 = vunpack.c.h.b16 %v513
    %v2202 = vunpack.c.l.b16 %v514
    %v2203 = vunpack.c.h.b16 %v514
    %v2204 = vunpack.c.l.b16 %v515
    %v2205 = vunpack.c.h.b16 %v515
    %v2206 = vunpack.c.l.b16 %v516
    %v2207 = vunpack.c.h.b16 %v516
    %v2208 = vunpack.c.l.b16 %v517
    %v2209 = vunpack.c.h.b16 %v517
    %v2210 = vunpack.c.l.b16 %v518
    %v2211 = vunpack.c.h.b16 %v518
    %v2212 = vunpack.c.l.b16 %v519
    %v2213 = vunpack.c.h.b16 %v519
    %v2214 = vunpack.c.l.b16 %v520
    %v2215 = vunpack.c.h.b16 %v520
    %v2216 = vunpack.c.l.b16 %v521
    %v2217 = vunpack.c.h.b16 %v521
    %v2218 = vunpack.c.l.b16 %v522
    %v2219 = vunpack.c.h.b16 %v522
    %v2220 = vunpack.c.l.b16 %v523
    %v2221 = vunpack.c.h.b16 %v523
    %v2222 = vunpack.c.l.b16 %v524
    %v2223 = vunpack.c.h.b16 %v524
    %v2224 = vunpack.c.l.b16 %v525
    %v2225 = vunpack.c.h.b16 %v525
    %v2226 = vunpack.c.l.b16 %v526
    %v2227 = vunpack.c.h.b16 %v526
    %v2228 = vunpack.c.l.b16 %v527
    %v2229 = vunpack.c.h.b16 %v527
    %v2230 = vunpack.c.l.b16 %v528
    %v2231 = vunpack.c.h.b16 %v528
    %v2232 = vunpack.c.l.b16 %v529
    %v2233 = vunpack.c.h.b16 %v529
    %v2234 = vunpack.c.l.b16 %v530
    %v2235 = vunpack.c.h.b16 %v530
    %v2236 = vunpack.c.l.b16 %v531
    %v2237 = vunpack.c.h.b16 %v531
    %v2238 = vunpack.c.l.b16 %v532
    %v2239 = vunpack.c.h.b16 %v532
    %v2240 = vunpack.c.l.b16 %v533
    %v2241 = vunpack.c.h.b16 %v533
    %v2242 = vunpack.c.l.b16 %v534
    %v2243 = vunpack.c.h.b16 %v534
    %v2244 = vunpack.c.l.b16 %v535
    %v2245 = vunpack.c.h.b16 %v535
    %v2246 = vunpack.c.l.b16 %v536
    %v2247 = vunpack.c.h.b16 %v536
    %v2248 = vunpack.c.l.b16 %v537
    %v2249 = vunpack.c.h.b16 %v537
    %v2250 = vunpack.c.l.b16 %v538
    %v2251 = vunpack.c.h.b16 %v538
    %v2252 = vunpack.c.l.b16 %v539
    %v2253 = vunpack.c.h.b16 %v539
    %v2254 = vunpack.c.l.b16 %v540
    %v2255 = vunpack.c.h.b16 %v540
    %v2256 = vunpack.c.l.b16 %v541
    %v2257 = vunpack.c.h.b16 %v541
    %v2258 = vunpack.c.l.b16 %v542
    %v2259 = vunpack.c.h.b16 %v542
    %v2260 = vunpack.c.l.b16 %v543
    %v2261 = vunpack.c.h.b16 %v543
    %v2262 = vunpack.c.l.b16 %v544
    %v2263 = vunpack.c.h.b16 %v544
    %v2264 = vunpack.c.l.b16 %v545
    %v2265 = vunpack.c.h.b16 %v545
    %v2266 = vunpack.c.l.b16 %v546
    %v2267 = vunpack.c.h.b16 %v546
    %v2268 = vunpack.c.l.b16 %v547
    %v2269 = vunpack.c.h.b16 %v547
    %v2270 = vunpack.c.l.b16 %v548
    %v2271 = vunpack.c.h.b16 %v548
    %v2272 = vunpack.c.l.b16 %v549
    %v2273 = vunpack.c.h.b16 %v549
    %v2274 = vunpack.c.l.b16 %v550
    %v2275 = vunpack.c.h.b16 %v550
    %v2276 = vunpack.c.l.b16 %v551
    %v2277 = vunpack.c.h.b16 %v551
    %v2278 = vunpack.c.l.b16 %v552
    %v2279 = vunpack.c.h.b16 %v552
    %v2280 = vunpack.c.l.b16 %v553
    %v2281 = vunpack.c.h.b16 %v553
    %v2282 = vunpack.c.l.b16 %v554
    %v2283 = vunpack.c.h.b16 %v554
    %v2284 = vunpack.c.l.b16 %v555
    %v2285 = vunpack.c.h.b16 %v555
    %v2286 = vunpack.c.l.b16 %v556
    %v2287 = vunpack.c.h.b16 %v556
    %v2288 = vunpack.c.l.b16 %v557
    %v2289 = vunpack.c.h.b16 %v557
    %v2290 = vunpack.c.l.b16 %v558
    %v2291 = vunpack.c.h.b16 %v558
    %v2292 = vunpack.c.l.b16 %v559
    %v2293 = vunpack.c.h.b16 %v559
    %v2294 = vunpack.c.l.b16 %v560
    %v2295 = vunpack.c.h.b16 %v560
    %v2296 = vunpack.c.l.b16 %v561
    %v2297 = vunpack.c.h.b16 %v561
    %v2298 = vunpack.c.l.b16 %v562
    %v2299 = vunpack.c.h.b16 %v562
    %v2300 = vunpack.c.l.b16 %v563
    %v2301 = vunpack.c.h.b16 %v563
    %v2302 = vunpack.c.l.b16 %v564
    %v2303 = vunpack.c.h.b16 %v564
    %v2304 = vunpack.c.l.b16 %v565
    %v2305 = vunpack.c.h.b16 %v565
    %v2306 = vpack.c.b16 %v1530, %v1522
    %v2307 = vpack.c.b16 %v1531, %v1523
    %v2308 = vpack.c.b16 %v1532, %v1524
    %v2309 = vpack.c.b16 %v1533, %v1525
    %v2310 = vpack.c.b16 %v1534, %v1526
    %v2311 = vpack.c.b16 %v1535, %v1527
    %v2312 = vpack.c.b16 %v1536, %v1528
    %v2313 = vpack.c.b16 %v1537, %v1529
    %v2314 = vpack.c.b16 %v1546, %v1538
    %v2315 = vpack.c.b16 %v1547, %v1539
    %v2316 = vpack.c.b16 %v1548, %v1540
    %v2317 = vpack.c.b16 %v1549, %v1541
    %v2318 = vpack.c.b16 %v1550, %v1542
    %v2319 = vpack.c.b16 %v1551, %v1543
    %v2320 = vpack.c.b16 %v1552, %v1544
    %v2321 = vpack.c.b16 %v1553, %v1545
    %v2322 = vpack.c.b16 %v1562, %v1554
    %v2323 = vpack.c.b16 %v1563, %v1555
    %v2324 = vpack.c.b16 %v1564, %v1556
    %v2325 = vpack.c.b16 %v1565, %v1557
    %v2326 = vpack.c.b16 %v1566, %v1558
    %v2327 = vpack.c.b16 %v1567, %v1559
    %v2328 = vpack.c.b16 %v1568, %v1560
    %v2329 = vpack.c.b16 %v1569, %v1561
    %v2330 = vpack.c.b16 %v1578, %v1570
    %v2331 = vpack.c.b16 %v1579, %v1571
    %v2332 = vpack.c.b16 %v1580, %v1572
    %v2333 = vpack.c.b16 %v1581, %v1573
    %v2334 = vpack.c.b16 %v1582, %v1574
    %v2335 = vpack.c.b16 %v1583, %v1575
    %v2336 = vpack.c.b16 %v1584, %v1576
    %v2337 = vpack.c.b16 %v1585, %v1577
    %v2338 = vpack.c.b16 %v1594, %v1586
    %v2339 = vpack.c.b16 %v1595, %v1587
    %v2340 = vpack.c.b16 %v1596, %v1588
    %v2341 = vpack.c.b16 %v1597, %v1589
    %v2342 = vpack.c.b16 %v1598, %v1590
    %v2343 = vpack.c.b16 %v1599, %v1591
    %v2344 = vpack.c.b16 %v1600, %v1592
    %v2345 = vpack.c.b16 %v1601, %v1593
    %v2346 = vpack.c.b16 %v1610, %v1602
    %v2347 = vpack.c.b16 %v1611, %v1603
    %v2348 = vpack.c.b16 %v1612, %v1604
    %v2349 = vpack.c.b16 %v1613, %v1605
    %v2350 = vpack.c.b16 %v1614, %v1606
    %v2351 = vpack.c.b16 %v1615, %v1607
    %v2352 = vpack.c.b16 %v1616, %v1608
    %v2353 = vpack.c.b16 %v1617, %v1609
    %v2354 = vpack.c.b16 %v1626, %v1618
    %v2355 = vpack.c.b16 %v1627, %v1619
    %v2356 = vpack.c.b16 %v1628, %v1620
    %v2357 = vpack.c.b16 %v1629, %v1621
    %v2358 = vpack.c.b16 %v1630, %v1622
    %v2359 = vpack.c.b16 %v1631, %v1623
    %v2360 = vpack.c.b16 %v1632, %v1624
    %v2361 = vpack.c.b16 %v1633, %v1625
    %v2362 = vpack.c.b16 %v1642, %v1634
    %v2363 = vpack.c.b16 %v1643, %v1635
    %v2364 = vpack.c.b16 %v1644, %v1636
    %v2365 = vpack.c.b16 %v1645, %v1637
    %v2366 = vpack.c.b16 %v1646, %v1638
    %v2367 = vpack.c.b16 %v1647, %v1639
    %v2368 = vpack.c.b16 %v1648, %v1640
    %v2369 = vpack.c.b16 %v1649, %v1641
    %v2370 = vpack.c.b16 %v1658, %v1650
    %v2371 = vpack.c.b16 %v1659, %v1651
    %v2372 = vpack.c.b16 %v1660, %v1652
    %v2373 = vpack.c.b16 %v1661, %v1653
    %v2374 = vpack.c.b16 %v1662, %v1654
    %v2375 = vpack.c.b16 %v1663, %v1655
    %v2376 = vpack.c.b16 %v1664, %v1656
    %v2377 = vpack.c.b16 %v1665, %v1657
    %v2378 = vpack.c.b16 %v1674, %v1666
    %v2379 = vpack.c.b16 %v1675, %v1667
    %v2380 = vpack.c.b16 %v1676, %v1668
    %v2381 = vpack.c.b16 %v1677, %v1669
    %v2382 = vpack.c.b16 %v1678, %v1670
    %v2383 = vpack.c.b16 %v1679, %v1671
    %v2384 = vpack.c.b16 %v1680, %v1672
    %v2385 = vpack.c.b16 %v1681, %v1673
    %v2386 = vpack.c.b16 %v1690, %v1682
    %v2387 = vpack.c.b16 %v1691, %v1683
    %v2388 = vpack.c.b16 %v1692, %v1684
    %v2389 = vpack.c.b16 %v1693, %v1685
    %v2390 = vpack.c.b16 %v1694, %v1686
    %v2391 = vpack.c.b16 %v1695, %v1687
    %v2392 = vpack.c.b16 %v1696, %v1688
    %v2393 = vpack.c.b16 %v1697, %v1689
    %v2394 = vpack.c.b16 %v1706, %v1698
    %v2395 = vpack.c.b16 %v1707, %v1699
    %v2396 = vpack.c.b16 %v1708, %v1700
    %v2397 = vpack.c.b16 %v1709, %v1701
    %v2398 = vpack.c.b16 %v1710, %v1702
    %v2399 = vpack.c.b16 %v1711, %v1703
    %v2400 = vpack.c.b16 %v1712, %v1704
    %v2401 = vpack.c.b16 %v1713, %v1705
    %v2402 = vpack.c.b16 %v1722, %v1714
    %v2403 = vpack.c.b16 %v1723, %v1715
    %v2404 = vpack.c.b16 %v1724, %v1716
    %v2405 = vpack.c.b16 %v1725, %v1717
    %v2406 = vpack.c.b16 %v1726, %v1718
    %v2407 = vpack.c.b16 %v1727, %v1719
    %v2408 = vpack.c.b16 %v1728, %v1720
    %v2409 = vpack.c.b16 %v1729, %v1721
    %v2410 = vpack.c.b16 %v1738, %v1730
    %v2411 = vpack.c.b16 %v1739, %v1731
    %v2412 = vpack.c.b16 %v1740, %v1732
    %v2413 = vpack.c.b16 %v1741, %v1733
    %v2414 = vpack.c.b16 %v1742, %v1734
    %v2415 = vpack.c.b16 %v1743, %v1735
    %v2416 = vpack.c.b16 %v1744, %v1736
    %v2417 = vpack.c.b16 %v1745, %v1737
    %v2418 = vpack.c.b16 %v1754, %v1746
    %v2419 = vpack.c.b16 %v1755, %v1747
    %v2420 = vpack.c.b16 %v1756, %v1748
    %v2421 = vpack.c.b16 %v1757, %v1749
    %v2422 = vpack.c.b16 %v1758, %v1750
    %v2423 = vpack.c.b16 %v1759, %v1751
    %v2424 = vpack.c.b16 %v1760, %v1752
    %v2425 = vpack.c.b16 %v1761, %v1753
    %v2426 = vpack.c.b16 %v1770, %v1762
    %v2427 = vpack.c.b16 %v1771, %v1763
    %v2428 = vpack.c.b16 %v1772, %v1764
    %v2429 = vpack.c.b16 %v1773, %v1765
    %v2430 = vpack.c.b16 %v1774, %v1766
    %v2431 = vpack.c.b16 %v1775, %v1767
    %v2432 = vpack.c.b16 %v1776, %v1768
    %v2433 = vpack.c.b16 %v1777, %v1769
    %v2434 = vpack.c.b16 %v1786, %v1778
    %v2435 = vpack.c.b16 %v1787, %v1779
    %v2436 = vpack.c.b16 %v1788, %v1780
    %v2437 = vpack.c.b16 %v1789, %v1781
    %v2438 = vpack.c.b16 %v1790, %v1782
    %v2439 = vpack.c.b16 %v1791, %v1783
    %v2440 = vpack.c.b16 %v1792, %v1784
    %v2441 = vpack.c.b16 %v1793, %v1785
    %v2442 = vpack.c.b16 %v1802, %v1794
    %v2443 = vpack.c.b16 %v1803, %v1795
    %v2444 = vpack.c.b16 %v1804, %v1796
    %v2445 = vpack.c.b16 %v1805, %v1797
    %v2446 = vpack.c.b16 %v1806, %v1798
    %v2447 = vpack.c.b16 %v1807, %v1799
    %v2448 = vpack.c.b16 %v1808, %v1800
    %v2449 = vpack.c.b16 %v1809, %v1801
    %v2450 = vpack.c.b16 %v1818, %v1810
    %v2451 = vpack.c.b16 %v1819, %v1811
    %v2452 = vpack.c.b16 %v1820, %v1812
    %v2453 = vpack.c.b16 %v1821, %v1813
    %v2454 = vpack.c.b16 %v1822, %v1814
    %v2455 = vpack.c.b16 %v1823, %v1815
    %v2456 = vpack.c.b16 %v1824, %v1816
    %v2457 = vpack.c.b16 %v1825, %v1817
    %v2458 = vpack.c.b16 %v1834, %v1826
    %v2459 = vpack.c.b16 %v1835, %v1827
    %v2460 = vpack.c.b16 %v1836, %v1828
    %v2461 = vpack.c.b16 %v1837, %v1829
    %v2462 = vpack.c.b16 %v1838, %v1830
    %v2463 = vpack.c.b16 %v1839, %v1831
    %v2464 = vpack.c.b16 %v1840, %v1832
    %v2465 = vpack.c.b16 %v1841, %v1833
    %v2466 = vpack.c.b16 %v1850, %v1842
    %v2467 = vpack.c.b16 %v1851, %v1843
    %v2468 = vpack.c.b16 %v1852, %v1844
    %v2469 = vpack.c.b16 %v1853, %v1845
    %v2470 = vpack.c.b16 %v1854, %v1846
    %v2471 = vpack.c.b16 %v1855, %v1847
    %v2472 = vpack.c.b16 %v1856, %v1848
    %v2473 = vpack.c.b16 %v1857, %v1849
    %v2474 = vpack.c.b16 %v1866, %v1858
    %v2475 = vpack.c.b16 %v1867, %v1859
    %v2476 = vpack.c.b16 %v1868, %v1860
    %v2477 = vpack.c.b16 %v1869, %v1861
    %v2478 = vpack.c.b16 %v1870, %v1862
    %v2479 = vpack.c.b16 %v1871, %v1863
    %v2480 = vpack.c.b16 %v1872, %v1864
    %v2481 = vpack.c.b16 %v1873, %v1865
    %v2482 = vpack.c.b16 %v1882, %v1874
    %v2483 = vpack.c.b16 %v1883, %v1875
    %v2484 = vpack.c.b16 %v1884, %v1876
    %v2485 = vpack.c.b16 %v1885, %v1877
    %v2486 = vpack.c.b16 %v1886, %v1878
    %v2487 = vpack.c.b16 %v1887, %v1879
    %v2488 = vpack.c.b16 %v1888, %v1880
    %v2489 = vpack.c.b16 %v1889, %v1881
    %v2490 = vpack.c.b16 %v1898, %v1890
    %v2491 = vpack.c.b16 %v1899, %v1891
    %v2492 = vpack.c.b16 %v1900, %v1892
    %v2493 = vpack.c.b16 %v1901, %v1893
    %v2494 = vpack.c.b16 %v1902, %v1894
    %v2495 = vpack.c.b16 %v1903, %v1895
    %v2496 = vpack.c.b16 %v1904, %v1896
    %v2497 = vpack.c.b16 %v1905, %v1897
    %v2498 = vpack.c.b16 %v1914, %v1906
    %v2499 = vpack.c.b16 %v1915, %v1907
    %v2500 = vpack.c.b16 %v1916, %v1908
    %v2501 = vpack.c.b16 %v1917, %v1909
    %v2502 = vpack.c.b16 %v1918, %v1910
    %v2503 = vpack.c.b16 %v1919, %v1911
    %v2504 = vpack.c.b16 %v1920, %v1912
    %v2505 = vpack.c.b16 %v1921, %v1913
    %v2506 = vpack.c.b16 %v1930, %v1922
    %v2507 = vpack.c.b16 %v1931, %v1923
    %v2508 = vpack.c.b16 %v1932, %v1924
    %v2509 = vpack.c.b16 %v1933, %v1925
    %v2510 = vpack.c.b16 %v1934, %v1926
    %v2511 = vpack.c.b16 %v1935, %v1927
    %v2512 = vpack.c.b16 %v1936, %v1928
    %v2513 = vpack.c.b16 %v1937, %v1929
    %v2514 = vpack.c.b16 %v1946, %v1938
    %v2515 = vpack.c.b16 %v1947, %v1939
    %v2516 = vpack.c.b16 %v1948, %v1940
    %v2517 = vpack.c.b16 %v1949, %v1941
    %v2518 = vpack.c.b16 %v1950, %v1942
    %v2519 = vpack.c.b16 %v1951, %v1943
    %v2520 = vpack.c.b16 %v1952, %v1944
    %v2521 = vpack.c.b16 %v1953, %v1945
    %v2522 = vpack.c.b16 %v1962, %v1954
    %v2523 = vpack.c.b16 %v1963, %v1955
    %v2524 = vpack.c.b16 %v1964, %v1956
    %v2525 = vpack.c.b16 %v1965, %v1957
    %v2526 = vpack.c.b16 %v1966, %v1958
    %v2527 = vpack.c.b16 %v1967, %v1959
    %v2528 = vpack.c.b16 %v1968, %v1960
    %v2529 = vpack.c.b16 %v1969, %v1961
    %v2530 = vpack.c.b16 %v1978, %v1970
    %v2531 = vpack.c.b16 %v1979, %v1971
    %v2532 = vpack.c.b16 %v1980, %v1972
    %v2533 = vpack.c.b16 %v1981, %v1973
    %v2534 = vpack.c.b16 %v1982, %v1974
    %v2535 = vpack.c.b16 %v1983, %v1975
    %v2536 = vpack.c.b16 %v1984, %v1976
    %v2537 = vpack.c.b16 %v1985, %v1977
    %v2538 = vpack.c.b16 %v1994, %v1986
    %v2539 = vpack.c.b16 %v1995, %v1987
    %v2540 = vpack.c.b16 %v1996, %v1988
    %v2541 = vpack.c.b16 %v1997, %v1989
    %v2542 = vpack.c.b16 %v1998, %v1990
    %v2543 = vpack.c.b16 %v1999, %v1991
    %v2544 = vpack.c.b16 %v2000, %v1992
    %v2545 = vpack.c.b16 %v2001, %v1993
    %v2546 = vpack.c.b16 %v2010, %v2002
    %v2547 = vpack.c.b16 %v2011, %v2003
    %v2548 = vpack.c.b16 %v2012, %v2004
    %v2549 = vpack.c.b16 %v2013, %v2005
    %v2550 = vpack.c.b16 %v2014, %v2006
    %v2551 = vpack.c.b16 %v2015, %v2007
    %v2552 = vpack.c.b16 %v2016, %v2008
    %v2553 = vpack.c.b16 %v2017, %v2009
    %v2554 = vpack.c.b16 %v2026, %v2018
    %v2555 = vpack.c.b16 %v2027, %v2019
    %v2556 = vpack.c.b16 %v2028, %v2020
    %v2557 = vpack.c.b16 %v2029, %v2021
    %v2558 = vpack.c.b16 %v2030, %v2022
    %v2559 = vpack.c.b16 %v2031, %v2023
    %v2560 = vpack.c.b16 %v2032, %v2024
    %v2561 = vpack.c.b16 %v2033, %v2025
    %v2562 = vpack.c.b16 %v2042, %v2034
    %v2563 = vpack.c.b16 %v2043, %v2035
    %v2564 = vpack.c.b16 %v2044, %v2036
    %v2565 = vpack.c.b16 %v2045, %v2037
    %v2566 = vpack.c.b16 %v2046, %v2038
    %v2567 = vpack.c.b16 %v2047, %v2039
    %v2568 = vpack.c.b16 %v2048, %v2040
    %v2569 = vpack.c.b16 %v2049, %v2041
    %v2570 = vpack.c.b16 %v2058, %v2050
    %v2571 = vpack.c.b16 %v2059, %v2051
    %v2572 = vpack.c.b16 %v2060, %v2052
    %v2573 = vpack.c.b16 %v2061, %v2053
    %v2574 = vpack.c.b16 %v2062, %v2054
    %v2575 = vpack.c.b16 %v2063, %v2055
    %v2576 = vpack.c.b16 %v2064, %v2056
    %v2577 = vpack.c.b16 %v2065, %v2057
    %v2578 = vpack.c.b16 %v2074, %v2066
    %v2579 = vpack.c.b16 %v2075, %v2067
    %v2580 = vpack.c.b16 %v2076, %v2068
    %v2581 = vpack.c.b16 %v2077, %v2069
    %v2582 = vpack.c.b16 %v2078, %v2070
    %v2583 = vpack.c.b16 %v2079, %v2071
    %v2584 = vpack.c.b16 %v2080, %v2072
    %v2585 = vpack.c.b16 %v2081, %v2073
    %v2586 = vpack.c.b16 %v2090, %v2082
    %v2587 = vpack.c.b16 %v2091, %v2083
    %v2588 = vpack.c.b16 %v2092, %v2084
    %v2589 = vpack.c.b16 %v2093, %v2085
    %v2590 = vpack.c.b16 %v2094, %v2086
    %v2591 = vpack.c.b16 %v2095, %v2087
    %v2592 = vpack.c.b16 %v2096, %v2088
    %v2593 = vpack.c.b16 %v2097, %v2089
    %v2594 = vpack.c.b16 %v2106, %v2098
    %v2595 = vpack.c.b16 %v2107, %v2099
    %v2596 = vpack.c.b16 %v2108, %v2100
    %v2597 = vpack.c.b16 %v2109, %v2101
    %v2598 = vpack.c.b16 %v2110, %v2102
    %v2599 = vpack.c.b16 %v2111, %v2103
    %v2600 = vpack.c.b16 %v2112, %v2104
    %v2601 = vpack.c.b16 %v2113, %v2105
    %v2602 = vpack.c.b16 %v2122, %v2114
    %v2603 = vpack.c.b16 %v2123, %v2115
    %v2604 = vpack.c.b16 %v2124, %v2116
    %v2605 = vpack.c.b16 %v2125, %v2117
    %v2606 = vpack.c.b16 %v2126, %v2118
    %v2607 = vpack.c.b16 %v2127, %v2119
    %v2608 = vpack.c.b16 %v2128, %v2120
    %v2609 = vpack.c.b16 %v2129, %v2121
    %v2610 = vpack.c.b16 %v2138, %v2130
    %v2611 = vpack.c.b16 %v2139, %v2131
    %v2612 = vpack.c.b16 %v2140, %v2132
    %v2613 = vpack.c.b16 %v2141, %v2133
    %v2614 = vpack.c.b16 %v2142, %v2134
    %v2615 = vpack.c.b16 %v2143, %v2135
    %v2616 = vpack.c.b16 %v2144, %v2136
    %v2617 = vpack.c.b16 %v2145, %v2137
    %v2618 = vpack.c.b16 %v2154, %v2146
    %v2619 = vpack.c.b16 %v2155, %v2147
    %v2620 = vpack.c.b16 %v2156, %v2148
    %v2621 = vpack.c.b16 %v2157, %v2149
    %v2622 = vpack.c.b16 %v2158, %v2150
    %v2623 = vpack.c.b16 %v2159, %v2151
    %v2624 = vpack.c.b16 %v2160, %v2152
    %v2625 = vpack.c.b16 %v2161, %v2153
    %v2626 = vpack.c.b16 %v2170, %v2162
    %v2627 = vpack.c.b16 %v2171, %v2163
    %v2628 = vpack.c.b16 %v2172, %v2164
    %v2629 = vpack.c.b16 %v2173, %v2165
    %v2630 = vpack.c.b16 %v2174, %v2166
    %v2631 = vpack.c.b16 %v2175, %v2167
    %v2632 = vpack.c.b16 %v2176, %v2168
    %v2633 = vpack.c.b16 %v2177, %v2169
    %v2634 = vpack.c.b16 %v2186, %v2178
    %v2635 = vpack.c.b16 %v2187, %v2179
    %v2636 = vpack.c.b16 %v2188, %v2180
    %v2637 = vpack.c.b16 %v2189, %v2181
    %v2638 = vpack.c.b16 %v2190, %v2182
    %v2639 = vpack.c.b16 %v2191, %v2183
    %v2640 = vpack.c.b16 %v2192, %v2184
    %v2641 = vpack.c.b16 %v2193, %v2185
    %v2642 = vpack.c.b16 %v2202, %v2194
    %v2643 = vpack.c.b16 %v2203, %v2195
    %v2644 = vpack.c.b16 %v2204, %v2196
    %v2645 = vpack.c.b16 %v2205, %v2197
    %v2646 = vpack.c.b16 %v2206, %v2198
    %v2647 = vpack.c.b16 %v2207, %v2199
    %v2648 = vpack.c.b16 %v2208, %v2200
    %v2649 = vpack.c.b16 %v2209, %v2201
    %v2650 = vpack.c.b16 %v2218, %v2210
    %v2651 = vpack.c.b16 %v2219, %v2211
    %v2652 = vpack.c.b16 %v2220, %v2212
    %v2653 = vpack.c.b16 %v2221, %v2213
    %v2654 = vpack.c.b16 %v2222, %v2214
    %v2655 = vpack.c.b16 %v2223, %v2215
    %v2656 = vpack.c.b16 %v2224, %v2216
    %v2657 = vpack.c.b16 %v2225, %v2217
    %v2658 = vpack.c.b16 %v2234, %v2226
    %v2659 = vpack.c.b16 %v2235, %v2227
    %v2660 = vpack.c.b16 %v2236, %v2228
    %v2661 = vpack.c.b16 %v2237, %v2229
    %v2662 = vpack.c.b16 %v2238, %v2230
    %v2663 = vpack.c.b16 %v2239, %v2231
    %v2664 = vpack.c.b16 %v2240, %v2232
    %v2665 = vpack.c.b16 %v2241, %v2233
    %v2666 = vpack.c.b16 %v2250, %v2242
    %v2667 = vpack.c.b16 %v2251, %v2243
    %v2668 = vpack.c.b16 %v2252, %v2244
    %v2669 = vpack.c.b16 %v2253, %v2245
    %v2670 = vpack.c.b16 %v2254, %v2246
    %v2671 = vpack.c.b16 %v2255, %v2247
    %v2672 = vpack.c.b16 %v2256, %v2248
    %v2673 = vpack.c.b16 %v2257, %v2249
    %v2674 = vpack.c.b16 %v2266, %v2258
    %v2675 = vpack.c.b16 %v2267, %v2259
    %v2676 = vpack.c.b16 %v2268, %v2260
    %v2677 = vpack.c.b16 %v2269, %v2261
    %v2678 = vpack.c.b16 %v2270, %v2262
    %v2679 = vpack.c.b16 %v2271, %v2263
    %v2680 = vpack.c.b16 %v2272, %v2264
    %v2681 = vpack.c.b16 %v2273, %v2265
    %v2682 = vpack.c.b16 %v2282, %v2274
    %v2683 = vpack.c.b16 %v2283, %v2275
    %v2684 = vpack.c.b16 %v2284, %v2276
    %v2685 = vpack.c.b16 %v2285, %v2277
    %v2686 = vpack.c.b16 %v2286, %v2278
    %v2687 = vpack.c.b16 %v2287, %v2279
    %v2688 = vpack.c.b16 %v2288, %v2280
    %v2689 = vpack.c.b16 %v2289, %v2281
    %v2690 = vpack.c.b16 %v2298, %v2290
    %v2691 = vpack.c.b16 %v2299, %v2291
    %v2692 = vpack.c.b16 %v2300, %v2292
    %v2693 = vpack.c.b16 %v2301, %v2293
    %v2694 = vpack.c.b16 %v2302, %v2294
    %v2695 = vpack.c.b16 %v2303, %v2295
    %v2696 = vpack.c.b16 %v2304, %v2296
    %v2697 = vpack.c.b16 %v2305, %v2297
    %vm3090 = vcmask 130048
    %v3092 = vsel %vm3090, %v173, 0
    %3094 = vmatprep.subr.bf16.mxu0 %v2363
    %3095 = vmatpush1.bf16.msra.mxu0 %v2362
    %3096 = vmatprep.subr.bf16.mxu0 %v2355
    %3097 = vmatpush1.bf16.msra.mxu0 %v2354
    %3098 = vmatprep.subr.bf16.mxu0 %v2347
    %3099 = vmatpush1.bf16.msra.mxu0 %v2346
    %3100 = vmatprep.subr.bf16.mxu0 %v2339
    %3101 = vmatpush1.bf16.msra.mxu0 %v2338
    %3102 = vmatprep.subr.bf16.mxu0 %v2331
    %3103 = vmatpush1.bf16.msra.mxu0 %v2330
    %3104 = vmatprep.subr.bf16.mxu0 %v2323
    %3105 = vmatpush1.bf16.msra.mxu0 %v2322
    %3106 = vmatprep.subr.bf16.mxu0 %v2315
    %3107 = vmatpush1.bf16.msra.mxu0 %v2314
    %3108 = vmatprep.subr.bf16.mxu0 %v2307
    %3109 = vmatpush1.bf16.msra.mxu0 %v2306
    %3110 = vmatprep.subr.bf16.mxu0 %v2427
    %3111 = vmatpush2.bf16.msra.mxu0 %v2426
    %3112 = vmatprep.subr.bf16.mxu0 %v2419
    %3113 = vmatpush2.bf16.msra.mxu0 %v2418
    %3114 = vmatprep.subr.bf16.mxu0 %v2411
    %3115 = vmatpush2.bf16.msra.mxu0 %v2410
    %3116 = vmatprep.subr.bf16.mxu0 %v2403
    %3117 = vmatpush2.bf16.msra.mxu0 %v2402
    %3118 = vmatprep.subr.bf16.mxu0 %v2395
    %3119 = vmatpush2.bf16.msra.mxu0 %v2394
    %3120 = vmatprep.subr.bf16.mxu0 %v2387
    %3121 = vmatpush2.bf16.msra.mxu0 %v2386
    %3122 = vmatprep.subr.bf16.mxu0 %v2379
    %3123 = vmatpush2.bf16.msra.mxu0 %v2378
    %3124 = vmatprep.subr.bf16.mxu0 %v2371
    %3125 = vmatpush2.bf16.msra.mxu0 %v2370
    %3126 = vmatprep.mubr.bf16.mxu0 %v168
    %3127 = vmatmul.mubr.bf16.gmra.mxu0 %v167
    %v3128 = vpop.f32.mrf.mxu0
    %v3129 = vadd.f32 %v993, %v3128
    %v3130 = vpop.f32.mrf.mxu0
    %v3131 = vadd.f32 %v995, %v3130
    %v3132 = vpop.f32.mrf.mxu0
    %v3133 = vadd.f32 %v997, %v3132
    %v3134 = vpop.f32.mrf.mxu0
    %v3135 = vadd.f32 %v999, %v3134
    %3136 = vdwg.mxu0
    %3137 = vmatprep.subr.bf16.mxu0 %v2491
    %3138 = vmatpush1.bf16.msra.mxu0 %v2490
    %3139 = vmatprep.subr.bf16.mxu0 %v2483
    %3140 = vmatpush1.bf16.msra.mxu0 %v2482
    %3141 = vmatprep.subr.bf16.mxu0 %v2475
    %3142 = vmatpush1.bf16.msra.mxu0 %v2474
    %3143 = vmatprep.subr.bf16.mxu0 %v2467
    %3144 = vmatpush1.bf16.msra.mxu0 %v2466
    %3145 = vmatprep.subr.bf16.mxu0 %v2459
    %3146 = vmatpush1.bf16.msra.mxu0 %v2458
    %3147 = vmatprep.subr.bf16.mxu0 %v2451
    %3148 = vmatpush1.bf16.msra.mxu0 %v2450
    %3149 = vmatprep.subr.bf16.mxu0 %v2443
    %3150 = vmatpush1.bf16.msra.mxu0 %v2442
    %3151 = vmatprep.subr.bf16.mxu0 %v2435
    %3152 = vmatpush1.bf16.msra.mxu0 %v2434
    %3153 = vmatprep.subr.bf16.mxu0 %v2555
    %3154 = vmatpush2.bf16.msra.mxu0 %v2554
    %3155 = vmatprep.subr.bf16.mxu0 %v2547
    %3156 = vmatpush2.bf16.msra.mxu0 %v2546
    %3157 = vmatprep.subr.bf16.mxu0 %v2539
    %3158 = vmatpush2.bf16.msra.mxu0 %v2538
    %3159 = vmatprep.subr.bf16.mxu0 %v2531
    %3160 = vmatpush2.bf16.msra.mxu0 %v2530
    %3161 = vmatprep.subr.bf16.mxu0 %v2523
    %3162 = vmatpush2.bf16.msra.mxu0 %v2522
    %3163 = vmatprep.subr.bf16.mxu0 %v2515
    %3164 = vmatpush2.bf16.msra.mxu0 %v2514
    %3165 = vmatprep.subr.bf16.mxu0 %v2507
    %3166 = vmatpush2.bf16.msra.mxu0 %v2506
    %3167 = vmatprep.subr.bf16.mxu0 %v2499
    %3168 = vmatpush2.bf16.msra.mxu0 %v2498
    %3169 = vmatprep.mubr.bf16.mxu0 %v170
    %3170 = vmatmul.mubr.bf16.gmra.mxu0 %v169
    %v3171 = vpop.f32.mrf.mxu0
    %v3172 = vadd.f32 %v3129, %v3171
    %v3173 = vpop.f32.mrf.mxu0
    %v3174 = vadd.f32 %v3131, %v3173
    %v3175 = vpop.f32.mrf.mxu0
    %v3176 = vadd.f32 %v3133, %v3175
    %v3177 = vpop.f32.mrf.mxu0
    %v3178 = vadd.f32 %v3135, %v3177
    %3179 = vdwg.mxu0
    %3180 = vmatprep.subr.bf16.mxu0 %v2619
    %3181 = vmatpush1.bf16.msra.mxu0 %v2618
    %3182 = vmatprep.subr.bf16.mxu0 %v2611
    %3183 = vmatpush1.bf16.msra.mxu0 %v2610
    %3184 = vmatprep.subr.bf16.mxu0 %v2603
    %3185 = vmatpush1.bf16.msra.mxu0 %v2602
    %3186 = vmatprep.subr.bf16.mxu0 %v2595
    %3187 = vmatpush1.bf16.msra.mxu0 %v2594
    %3188 = vmatprep.subr.bf16.mxu0 %v2587
    %3189 = vmatpush1.bf16.msra.mxu0 %v2586
    %3190 = vmatprep.subr.bf16.mxu0 %v2579
    %3191 = vmatpush1.bf16.msra.mxu0 %v2578
    %3192 = vmatprep.subr.bf16.mxu0 %v2571
    %3193 = vmatpush1.bf16.msra.mxu0 %v2570
    %3194 = vmatprep.subr.bf16.mxu0 %v2563
    %3195 = vmatpush1.bf16.msra.mxu0 %v2562
    %3196 = vmatprep.subr.bf16.mxu0 %v2683
    %3197 = vmatpush2.bf16.msra.mxu0 %v2682
    %3198 = vmatprep.subr.bf16.mxu0 %v2675
    %3199 = vmatpush2.bf16.msra.mxu0 %v2674
    %3200 = vmatprep.subr.bf16.mxu0 %v2667
    %3201 = vmatpush2.bf16.msra.mxu0 %v2666
    %3202 = vmatprep.subr.bf16.mxu0 %v2659
    %3203 = vmatpush2.bf16.msra.mxu0 %v2658
    %3204 = vmatprep.subr.bf16.mxu0 %v2651
    %3205 = vmatpush2.bf16.msra.mxu0 %v2650
    %3206 = vmatprep.subr.bf16.mxu0 %v2643
    %3207 = vmatpush2.bf16.msra.mxu0 %v2642
    %3208 = vmatprep.subr.bf16.mxu0 %v2635
    %3209 = vmatpush2.bf16.msra.mxu0 %v2634
    %3210 = vmatprep.subr.bf16.mxu0 %v2627
    %3211 = vmatpush2.bf16.msra.mxu0 %v2626
    %3212 = vmatprep.mubr.bf16.mxu0 %v172
    %3213 = vmatmul.mubr.bf16.gmra.mxu0 %v171
    %v3214 = vpop.f32.mrf.mxu0
    %v3215 = vadd.f32 %v3172, %v3214
    %v3216 = vpop.f32.mrf.mxu0
    %v3217 = vadd.f32 %v3174, %v3216
    %v3218 = vpop.f32.mrf.mxu0
    %v3219 = vadd.f32 %v3176, %v3218
    %v3220 = vpop.f32.mrf.mxu0
    %v3221 = vadd.f32 %v3178, %v3220
    %3222 = vdwg.mxu0
    %3223 = vmatprep.subr.bf16.mxu0 0
    %3224 = vmatpush1.bf16.msra.mxu0 0
    %3225 = vmatprep.subr.bf16.mxu0 0
    %3226 = vmatpush1.bf16.msra.mxu0 0
    %3227 = vmatprep.subr.bf16.mxu0 0
    %3228 = vmatpush1.bf16.msra.mxu0 0
    %3229 = vmatprep.subr.bf16.mxu0 0
    %3230 = vmatpush1.bf16.msra.mxu0 0
    %3231 = vmatprep.subr.bf16.mxu0 0
    %3232 = vmatpush1.bf16.msra.mxu0 0
    %3233 = vmatprep.subr.bf16.mxu0 0
    %3234 = vmatpush1.bf16.msra.mxu0 0
    %3235 = vmatprep.subr.bf16.mxu0 0
    %3236 = vmatpush1.bf16.msra.mxu0 0
    %3237 = vmatprep.subr.bf16.mxu0 %v2691
    %3238 = vmatpush1.bf16.msra.mxu0 %v2690
    %3239 = vmatprep.subr.bf16.mxu0 0
    %3240 = vmatpush2.bf16.msra.mxu0 0
    %3241 = vmatprep.subr.bf16.mxu0 0
    %3242 = vmatpush2.bf16.msra.mxu0 0
    %3243 = vmatprep.subr.bf16.mxu0 0
    %3244 = vmatpush2.bf16.msra.mxu0 0
    %3245 = vmatprep.subr.bf16.mxu0 0
    %3246 = vmatpush2.bf16.msra.mxu0 0
    %3247 = vmatprep.subr.bf16.mxu0 0
    %3248 = vmatpush2.bf16.msra.mxu0 0
    %3249 = vmatprep.subr.bf16.mxu0 0
    %3250 = vmatpush2.bf16.msra.mxu0 0
    %3251 = vmatprep.subr.bf16.mxu0 0
    %3252 = vmatpush2.bf16.msra.mxu0 0
    %3253 = vmatprep.subr.bf16.mxu0 0
    %3254 = vmatpush2.bf16.msra.mxu0 0
    %3255 = vmatprep.mubr.bf16.mxu0 0
    %3256 = vmatmul.mubr.bf16.gmra.mxu0 %v3092
    %v3257 = vpop.f32.mrf.mxu0
    %v3258 = vadd.f32 %v3215, %v3257
    %v3259 = vpop.f32.mrf.mxu0
    %v3260 = vadd.f32 %v3217, %v3259
    %v3261 = vpop.f32.mrf.mxu0
    %v3262 = vadd.f32 %v3219, %v3261
    %v3263 = vpop.f32.mrf.mxu0
    %v3264 = vadd.f32 %v3221, %v3263
    %3265 = vdwg.mxu0
    %3266 = vmatprep.subr.bf16.mxu0 %v2365
    %3267 = vmatpush1.bf16.msra.mxu0 %v2364
    %3268 = vmatprep.subr.bf16.mxu0 %v2357
    %3269 = vmatpush1.bf16.msra.mxu0 %v2356
    %3270 = vmatprep.subr.bf16.mxu0 %v2349
    %3271 = vmatpush1.bf16.msra.mxu0 %v2348
    %3272 = vmatprep.subr.bf16.mxu0 %v2341
    %3273 = vmatpush1.bf16.msra.mxu0 %v2340
    %3274 = vmatprep.subr.bf16.mxu0 %v2333
    %3275 = vmatpush1.bf16.msra.mxu0 %v2332
    %3276 = vmatprep.subr.bf16.mxu0 %v2325
    %3277 = vmatpush1.bf16.msra.mxu0 %v2324
    %3278 = vmatprep.subr.bf16.mxu0 %v2317
    %3279 = vmatpush1.bf16.msra.mxu0 %v2316
    %3280 = vmatprep.subr.bf16.mxu0 %v2309
    %3281 = vmatpush1.bf16.msra.mxu0 %v2308
    %3282 = vmatprep.subr.bf16.mxu0 %v2429
    %3283 = vmatpush2.bf16.msra.mxu0 %v2428
    %3284 = vmatprep.subr.bf16.mxu0 %v2421
    %3285 = vmatpush2.bf16.msra.mxu0 %v2420
    %3286 = vmatprep.subr.bf16.mxu0 %v2413
    %3287 = vmatpush2.bf16.msra.mxu0 %v2412
    %3288 = vmatprep.subr.bf16.mxu0 %v2405
    %3289 = vmatpush2.bf16.msra.mxu0 %v2404
    %3290 = vmatprep.subr.bf16.mxu0 %v2397
    %3291 = vmatpush2.bf16.msra.mxu0 %v2396
    %3292 = vmatprep.subr.bf16.mxu0 %v2389
    %3293 = vmatpush2.bf16.msra.mxu0 %v2388
    %3294 = vmatprep.subr.bf16.mxu0 %v2381
    %3295 = vmatpush2.bf16.msra.mxu0 %v2380
    %3296 = vmatprep.subr.bf16.mxu0 %v2373
    %3297 = vmatpush2.bf16.msra.mxu0 %v2372
    %3298 = vmatprep.mubr.bf16.mxu0 %v168
    %3299 = vmatmul.mubr.bf16.gmra.mxu0 %v167
    %v3300 = vpop.f32.mrf.mxu0
    %v3301 = vadd.f32 %v1036, %v3300
    %v3302 = vpop.f32.mrf.mxu0
    %v3303 = vadd.f32 %v1038, %v3302
    %v3304 = vpop.f32.mrf.mxu0
    %v3305 = vadd.f32 %v1040, %v3304
    %v3306 = vpop.f32.mrf.mxu0
    %v3307 = vadd.f32 %v1042, %v3306
    %3308 = vdwg.mxu0
    %3309 = vmatprep.subr.bf16.mxu0 %v2493
    %3310 = vmatpush1.bf16.msra.mxu0 %v2492
    %3311 = vmatprep.subr.bf16.mxu0 %v2485
    %3312 = vmatpush1.bf16.msra.mxu0 %v2484
    %3313 = vmatprep.subr.bf16.mxu0 %v2477
    %3314 = vmatpush1.bf16.msra.mxu0 %v2476
    %3315 = vmatprep.subr.bf16.mxu0 %v2469
    %3316 = vmatpush1.bf16.msra.mxu0 %v2468
    %3317 = vmatprep.subr.bf16.mxu0 %v2461
    %3318 = vmatpush1.bf16.msra.mxu0 %v2460
    %3319 = vmatprep.subr.bf16.mxu0 %v2453
    %3320 = vmatpush1.bf16.msra.mxu0 %v2452
    %3321 = vmatprep.subr.bf16.mxu0 %v2445
    %3322 = vmatpush1.bf16.msra.mxu0 %v2444
    %3323 = vmatprep.subr.bf16.mxu0 %v2437
    %3324 = vmatpush1.bf16.msra.mxu0 %v2436
    %3325 = vmatprep.subr.bf16.mxu0 %v2557
    %3326 = vmatpush2.bf16.msra.mxu0 %v2556
    %3327 = vmatprep.subr.bf16.mxu0 %v2549
    %3328 = vmatpush2.bf16.msra.mxu0 %v2548
    %3329 = vmatprep.subr.bf16.mxu0 %v2541
    %3330 = vmatpush2.bf16.msra.mxu0 %v2540
    %3331 = vmatprep.subr.bf16.mxu0 %v2533
    %3332 = vmatpush2.bf16.msra.mxu0 %v2532
    %3333 = vmatprep.subr.bf16.mxu0 %v2525
    %3334 = vmatpush2.bf16.msra.mxu0 %v2524
    %3335 = vmatprep.subr.bf16.mxu0 %v2517
    %3336 = vmatpush2.bf16.msra.mxu0 %v2516
    %3337 = vmatprep.subr.bf16.mxu0 %v2509
    %3338 = vmatpush2.bf16.msra.mxu0 %v2508
    %3339 = vmatprep.subr.bf16.mxu0 %v2501
    %3340 = vmatpush2.bf16.msra.mxu0 %v2500
    %3341 = vmatprep.mubr.bf16.mxu0 %v170
    %3342 = vmatmul.mubr.bf16.gmra.mxu0 %v169
    %v3343 = vpop.f32.mrf.mxu0
    %v3344 = vadd.f32 %v3301, %v3343
    %v3345 = vpop.f32.mrf.mxu0
    %v3346 = vadd.f32 %v3303, %v3345
    %v3347 = vpop.f32.mrf.mxu0
    %v3348 = vadd.f32 %v3305, %v3347
    %v3349 = vpop.f32.mrf.mxu0
    %v3350 = vadd.f32 %v3307, %v3349
    %3351 = vdwg.mxu0
    %3352 = vmatprep.subr.bf16.mxu0 %v2621
    %3353 = vmatpush1.bf16.msra.mxu0 %v2620
    %3354 = vmatprep.subr.bf16.mxu0 %v2613
    %3355 = vmatpush1.bf16.msra.mxu0 %v2612
    %3356 = vmatprep.subr.bf16.mxu0 %v2605
    %3357 = vmatpush1.bf16.msra.mxu0 %v2604
    %3358 = vmatprep.subr.bf16.mxu0 %v2597
    %3359 = vmatpush1.bf16.msra.mxu0 %v2596
    %3360 = vmatprep.subr.bf16.mxu0 %v2589
    %3361 = vmatpush1.bf16.msra.mxu0 %v2588
    %3362 = vmatprep.subr.bf16.mxu0 %v2581
    %3363 = vmatpush1.bf16.msra.mxu0 %v2580
    %3364 = vmatprep.subr.bf16.mxu0 %v2573
    %3365 = vmatpush1.bf16.msra.mxu0 %v2572
    %3366 = vmatprep.subr.bf16.mxu0 %v2565
    %3367 = vmatpush1.bf16.msra.mxu0 %v2564
    %3368 = vmatprep.subr.bf16.mxu0 %v2685
    %3369 = vmatpush2.bf16.msra.mxu0 %v2684
    %3370 = vmatprep.subr.bf16.mxu0 %v2677
    %3371 = vmatpush2.bf16.msra.mxu0 %v2676
    %3372 = vmatprep.subr.bf16.mxu0 %v2669
    %3373 = vmatpush2.bf16.msra.mxu0 %v2668
    %3374 = vmatprep.subr.bf16.mxu0 %v2661
    %3375 = vmatpush2.bf16.msra.mxu0 %v2660
    %3376 = vmatprep.subr.bf16.mxu0 %v2653
    %3377 = vmatpush2.bf16.msra.mxu0 %v2652
    %3378 = vmatprep.subr.bf16.mxu0 %v2645
    %3379 = vmatpush2.bf16.msra.mxu0 %v2644
    %3380 = vmatprep.subr.bf16.mxu0 %v2637
    %3381 = vmatpush2.bf16.msra.mxu0 %v2636
    %3382 = vmatprep.subr.bf16.mxu0 %v2629
    %3383 = vmatpush2.bf16.msra.mxu0 %v2628
    %3384 = vmatprep.mubr.bf16.mxu0 %v172
    %3385 = vmatmul.mubr.bf16.gmra.mxu0 %v171
    %v3386 = vpop.f32.mrf.mxu0
    %v3387 = vadd.f32 %v3344, %v3386
    %v3388 = vpop.f32.mrf.mxu0
    %v3389 = vadd.f32 %v3346, %v3388
    %v3390 = vpop.f32.mrf.mxu0
    %v3391 = vadd.f32 %v3348, %v3390
    %v3392 = vpop.f32.mrf.mxu0
    %v3393 = vadd.f32 %v3350, %v3392
    %3394 = vdwg.mxu0
    %3395 = vmatprep.subr.bf16.mxu0 0
    %3396 = vmatpush1.bf16.msra.mxu0 0
    %3397 = vmatprep.subr.bf16.mxu0 0
    %3398 = vmatpush1.bf16.msra.mxu0 0
    %3399 = vmatprep.subr.bf16.mxu0 0
    %3400 = vmatpush1.bf16.msra.mxu0 0
    %3401 = vmatprep.subr.bf16.mxu0 0
    %3402 = vmatpush1.bf16.msra.mxu0 0
    %3403 = vmatprep.subr.bf16.mxu0 0
    %3404 = vmatpush1.bf16.msra.mxu0 0
    %3405 = vmatprep.subr.bf16.mxu0 0
    %3406 = vmatpush1.bf16.msra.mxu0 0
    %3407 = vmatprep.subr.bf16.mxu0 0
    %3408 = vmatpush1.bf16.msra.mxu0 0
    %3409 = vmatprep.subr.bf16.mxu0 %v2693
    %3410 = vmatpush1.bf16.msra.mxu0 %v2692
    %3411 = vmatprep.subr.bf16.mxu0 0
    %3412 = vmatpush2.bf16.msra.mxu0 0
    %3413 = vmatprep.subr.bf16.mxu0 0
    %3414 = vmatpush2.bf16.msra.mxu0 0
    %3415 = vmatprep.subr.bf16.mxu0 0
    %3416 = vmatpush2.bf16.msra.mxu0 0
    %3417 = vmatprep.subr.bf16.mxu0 0
    %3418 = vmatpush2.bf16.msra.mxu0 0
    %3419 = vmatprep.subr.bf16.mxu0 0
    %3420 = vmatpush2.bf16.msra.mxu0 0
    %3421 = vmatprep.subr.bf16.mxu0 0
    %3422 = vmatpush2.bf16.msra.mxu0 0
    %3423 = vmatprep.subr.bf16.mxu0 0
    %3424 = vmatpush2.bf16.msra.mxu0 0
    %3425 = vmatprep.subr.bf16.mxu0 0
    %3426 = vmatpush2.bf16.msra.mxu0 0
    %3427 = vmatprep.mubr.bf16.mxu0 0
    %3428 = vmatmul.mubr.bf16.gmra.mxu0 %v3092
    %v3429 = vpop.f32.mrf.mxu0
    %v3430 = vadd.f32 %v3387, %v3429
    %v3431 = vpop.f32.mrf.mxu0
    %v3432 = vadd.f32 %v3389, %v3431
    %v3433 = vpop.f32.mrf.mxu0
    %v3434 = vadd.f32 %v3391, %v3433
    %v3435 = vpop.f32.mrf.mxu0
    %v3436 = vadd.f32 %v3393, %v3435
    %3437 = vdwg.mxu0
    %3438 = vmatprep.subr.bf16.mxu0 %v2367
    %3439 = vmatpush1.bf16.msra.mxu0 %v2366
    %3440 = vmatprep.subr.bf16.mxu0 %v2359
    %3441 = vmatpush1.bf16.msra.mxu0 %v2358
    %3442 = vmatprep.subr.bf16.mxu0 %v2351
    %3443 = vmatpush1.bf16.msra.mxu0 %v2350
    %3444 = vmatprep.subr.bf16.mxu0 %v2343
    %3445 = vmatpush1.bf16.msra.mxu0 %v2342
    %3446 = vmatprep.subr.bf16.mxu0 %v2335
    %3447 = vmatpush1.bf16.msra.mxu0 %v2334
    %3448 = vmatprep.subr.bf16.mxu0 %v2327
    %3449 = vmatpush1.bf16.msra.mxu0 %v2326
    %3450 = vmatprep.subr.bf16.mxu0 %v2319
    %3451 = vmatpush1.bf16.msra.mxu0 %v2318
    %3452 = vmatprep.subr.bf16.mxu0 %v2311
    %3453 = vmatpush1.bf16.msra.mxu0 %v2310
    %3454 = vmatprep.subr.bf16.mxu0 %v2431
    %3455 = vmatpush2.bf16.msra.mxu0 %v2430
    %3456 = vmatprep.subr.bf16.mxu0 %v2423
    %3457 = vmatpush2.bf16.msra.mxu0 %v2422
    %3458 = vmatprep.subr.bf16.mxu0 %v2415
    %3459 = vmatpush2.bf16.msra.mxu0 %v2414
    %3460 = vmatprep.subr.bf16.mxu0 %v2407
    %3461 = vmatpush2.bf16.msra.mxu0 %v2406
    %3462 = vmatprep.subr.bf16.mxu0 %v2399
    %3463 = vmatpush2.bf16.msra.mxu0 %v2398
    %3464 = vmatprep.subr.bf16.mxu0 %v2391
    %3465 = vmatpush2.bf16.msra.mxu0 %v2390
    %3466 = vmatprep.subr.bf16.mxu0 %v2383
    %3467 = vmatpush2.bf16.msra.mxu0 %v2382
    %3468 = vmatprep.subr.bf16.mxu0 %v2375
    %3469 = vmatpush2.bf16.msra.mxu0 %v2374
    %3470 = vmatprep.mubr.bf16.mxu0 %v168
    %3471 = vmatmul.mubr.bf16.gmra.mxu0 %v167
    %v3472 = vpop.f32.mrf.mxu0
    %v3473 = vadd.f32 %v1079, %v3472
    %v3474 = vpop.f32.mrf.mxu0
    %v3475 = vadd.f32 %v1081, %v3474
    %v3476 = vpop.f32.mrf.mxu0
    %v3477 = vadd.f32 %v1083, %v3476
    %v3478 = vpop.f32.mrf.mxu0
    %v3479 = vadd.f32 %v1085, %v3478
    %3480 = vdwg.mxu0
    %3481 = vmatprep.subr.bf16.mxu0 %v2495
    %3482 = vmatpush1.bf16.msra.mxu0 %v2494
    %3483 = vmatprep.subr.bf16.mxu0 %v2487
    %3484 = vmatpush1.bf16.msra.mxu0 %v2486
    %3485 = vmatprep.subr.bf16.mxu0 %v2479
    %3486 = vmatpush1.bf16.msra.mxu0 %v2478
    %3487 = vmatprep.subr.bf16.mxu0 %v2471
    %3488 = vmatpush1.bf16.msra.mxu0 %v2470
    %3489 = vmatprep.subr.bf16.mxu0 %v2463
    %3490 = vmatpush1.bf16.msra.mxu0 %v2462
    %3491 = vmatprep.subr.bf16.mxu0 %v2455
    %3492 = vmatpush1.bf16.msra.mxu0 %v2454
    %3493 = vmatprep.subr.bf16.mxu0 %v2447
    %3494 = vmatpush1.bf16.msra.mxu0 %v2446
    %3495 = vmatprep.subr.bf16.mxu0 %v2439
    %3496 = vmatpush1.bf16.msra.mxu0 %v2438
    %3497 = vmatprep.subr.bf16.mxu0 %v2559
    %3498 = vmatpush2.bf16.msra.mxu0 %v2558
    %3499 = vmatprep.subr.bf16.mxu0 %v2551
    %3500 = vmatpush2.bf16.msra.mxu0 %v2550
    %3501 = vmatprep.subr.bf16.mxu0 %v2543
    %3502 = vmatpush2.bf16.msra.mxu0 %v2542
    %3503 = vmatprep.subr.bf16.mxu0 %v2535
    %3504 = vmatpush2.bf16.msra.mxu0 %v2534
    %3505 = vmatprep.subr.bf16.mxu0 %v2527
    %3506 = vmatpush2.bf16.msra.mxu0 %v2526
    %3507 = vmatprep.subr.bf16.mxu0 %v2519
    %3508 = vmatpush2.bf16.msra.mxu0 %v2518
    %3509 = vmatprep.subr.bf16.mxu0 %v2511
    %3510 = vmatpush2.bf16.msra.mxu0 %v2510
    %3511 = vmatprep.subr.bf16.mxu0 %v2503
    %3512 = vmatpush2.bf16.msra.mxu0 %v2502
    %3513 = vmatprep.mubr.bf16.mxu0 %v170
    %3514 = vmatmul.mubr.bf16.gmra.mxu0 %v169
    %v3515 = vpop.f32.mrf.mxu0
    %v3516 = vadd.f32 %v3473, %v3515
    %v3517 = vpop.f32.mrf.mxu0
    %v3518 = vadd.f32 %v3475, %v3517
    %v3519 = vpop.f32.mrf.mxu0
    %v3520 = vadd.f32 %v3477, %v3519
    %v3521 = vpop.f32.mrf.mxu0
    %v3522 = vadd.f32 %v3479, %v3521
    %3523 = vdwg.mxu0
    %3524 = vmatprep.subr.bf16.mxu0 %v2623
    %3525 = vmatpush1.bf16.msra.mxu0 %v2622
    %3526 = vmatprep.subr.bf16.mxu0 %v2615
    %3527 = vmatpush1.bf16.msra.mxu0 %v2614
    %3528 = vmatprep.subr.bf16.mxu0 %v2607
    %3529 = vmatpush1.bf16.msra.mxu0 %v2606
    %3530 = vmatprep.subr.bf16.mxu0 %v2599
    %3531 = vmatpush1.bf16.msra.mxu0 %v2598
    %3532 = vmatprep.subr.bf16.mxu0 %v2591
    %3533 = vmatpush1.bf16.msra.mxu0 %v2590
    %3534 = vmatprep.subr.bf16.mxu0 %v2583
    %3535 = vmatpush1.bf16.msra.mxu0 %v2582
    %3536 = vmatprep.subr.bf16.mxu0 %v2575
    %3537 = vmatpush1.bf16.msra.mxu0 %v2574
    %3538 = vmatprep.subr.bf16.mxu0 %v2567
    %3539 = vmatpush1.bf16.msra.mxu0 %v2566
    %3540 = vmatprep.subr.bf16.mxu0 %v2687
    %3541 = vmatpush2.bf16.msra.mxu0 %v2686
    %3542 = vmatprep.subr.bf16.mxu0 %v2679
    %3543 = vmatpush2.bf16.msra.mxu0 %v2678
    %3544 = vmatprep.subr.bf16.mxu0 %v2671
    %3545 = vmatpush2.bf16.msra.mxu0 %v2670
    %3546 = vmatprep.subr.bf16.mxu0 %v2663
    %3547 = vmatpush2.bf16.msra.mxu0 %v2662
    %3548 = vmatprep.subr.bf16.mxu0 %v2655
    %3549 = vmatpush2.bf16.msra.mxu0 %v2654
    %3550 = vmatprep.subr.bf16.mxu0 %v2647
    %3551 = vmatpush2.bf16.msra.mxu0 %v2646
    %3552 = vmatprep.subr.bf16.mxu0 %v2639
    %3553 = vmatpush2.bf16.msra.mxu0 %v2638
    %3554 = vmatprep.subr.bf16.mxu0 %v2631
    %3555 = vmatpush2.bf16.msra.mxu0 %v2630
    %3556 = vmatprep.mubr.bf16.mxu0 %v172
    %3557 = vmatmul.mubr.bf16.gmra.mxu0 %v171
    %v3558 = vpop.f32.mrf.mxu0
    %v3559 = vadd.f32 %v3516, %v3558
    %v3560 = vpop.f32.mrf.mxu0
    %v3561 = vadd.f32 %v3518, %v3560
    %v3562 = vpop.f32.mrf.mxu0
    %v3563 = vadd.f32 %v3520, %v3562
    %v3564 = vpop.f32.mrf.mxu0
    %v3565 = vadd.f32 %v3522, %v3564
    %3566 = vdwg.mxu0
    %3567 = vmatprep.subr.bf16.mxu0 0
    %3568 = vmatpush1.bf16.msra.mxu0 0
    %3569 = vmatprep.subr.bf16.mxu0 0
    %3570 = vmatpush1.bf16.msra.mxu0 0
    %3571 = vmatprep.subr.bf16.mxu0 0
    %3572 = vmatpush1.bf16.msra.mxu0 0
    %3573 = vmatprep.subr.bf16.mxu0 0
    %3574 = vmatpush1.bf16.msra.mxu0 0
    %3575 = vmatprep.subr.bf16.mxu0 0
    %3576 = vmatpush1.bf16.msra.mxu0 0
    %3577 = vmatprep.subr.bf16.mxu0 0
    %3578 = vmatpush1.bf16.msra.mxu0 0
    %3579 = vmatprep.subr.bf16.mxu0 0
    %3580 = vmatpush1.bf16.msra.mxu0 0
    %3581 = vmatprep.subr.bf16.mxu0 %v2695
    %3582 = vmatpush1.bf16.msra.mxu0 %v2694
    %3583 = vmatprep.subr.bf16.mxu0 0
    %3584 = vmatpush2.bf16.msra.mxu0 0
    %3585 = vmatprep.subr.bf16.mxu0 0
    %3586 = vmatpush2.bf16.msra.mxu0 0
    %3587 = vmatprep.subr.bf16.mxu0 0
    %3588 = vmatpush2.bf16.msra.mxu0 0
    %3589 = vmatprep.subr.bf16.mxu0 0
    %3590 = vmatpush2.bf16.msra.mxu0 0
    %3591 = vmatprep.subr.bf16.mxu0 0
    %3592 = vmatpush2.bf16.msra.mxu0 0
    %3593 = vmatprep.subr.bf16.mxu0 0
    %3594 = vmatpush2.bf16.msra.mxu0 0
    %3595 = vmatprep.subr.bf16.mxu0 0
    %3596 = vmatpush2.bf16.msra.mxu0 0
    %3597 = vmatprep.subr.bf16.mxu0 0
    %3598 = vmatpush2.bf16.msra.mxu0 0
    %3599 = vmatprep.mubr.bf16.mxu0 0
    %3600 = vmatmul.mubr.bf16.gmra.mxu0 %v3092
    %v3601 = vpop.f32.mrf.mxu0
    %v3602 = vadd.f32 %v3559, %v3601
    %v3603 = vpop.f32.mrf.mxu0
    %v3604 = vadd.f32 %v3561, %v3603
    %v3605 = vpop.f32.mrf.mxu0
    %v3606 = vadd.f32 %v3563, %v3605
    %v3607 = vpop.f32.mrf.mxu0
    %v3608 = vadd.f32 %v3565, %v3607
    %3609 = vdwg.mxu0
    %3610 = vmatprep.subr.bf16.mxu0 %v2369
    %3611 = vmatpush1.bf16.msra.mxu0 %v2368
    %3612 = vmatprep.subr.bf16.mxu0 %v2361
    %3613 = vmatpush1.bf16.msra.mxu0 %v2360
    %3614 = vmatprep.subr.bf16.mxu0 %v2353
    %3615 = vmatpush1.bf16.msra.mxu0 %v2352
    %3616 = vmatprep.subr.bf16.mxu0 %v2345
    %3617 = vmatpush1.bf16.msra.mxu0 %v2344
    %3618 = vmatprep.subr.bf16.mxu0 %v2337
    %3619 = vmatpush1.bf16.msra.mxu0 %v2336
    %3620 = vmatprep.subr.bf16.mxu0 %v2329
    %3621 = vmatpush1.bf16.msra.mxu0 %v2328
    %3622 = vmatprep.subr.bf16.mxu0 %v2321
    %3623 = vmatpush1.bf16.msra.mxu0 %v2320
    %3624 = vmatprep.subr.bf16.mxu0 %v2313
    %3625 = vmatpush1.bf16.msra.mxu0 %v2312
    %3626 = vmatprep.subr.bf16.mxu0 %v2433
    %3627 = vmatpush2.bf16.msra.mxu0 %v2432
    %3628 = vmatprep.subr.bf16.mxu0 %v2425
    %3629 = vmatpush2.bf16.msra.mxu0 %v2424
    %3630 = vmatprep.subr.bf16.mxu0 %v2417
    %3631 = vmatpush2.bf16.msra.mxu0 %v2416
    %3632 = vmatprep.subr.bf16.mxu0 %v2409
    %3633 = vmatpush2.bf16.msra.mxu0 %v2408
    %3634 = vmatprep.subr.bf16.mxu0 %v2401
    %3635 = vmatpush2.bf16.msra.mxu0 %v2400
    %3636 = vmatprep.subr.bf16.mxu0 %v2393
    %3637 = vmatpush2.bf16.msra.mxu0 %v2392
    %3638 = vmatprep.subr.bf16.mxu0 %v2385
    %3639 = vmatpush2.bf16.msra.mxu0 %v2384
    %3640 = vmatprep.subr.bf16.mxu0 %v2377
    %3641 = vmatpush2.bf16.msra.mxu0 %v2376
    %3642 = vmatprep.mubr.bf16.mxu0 %v168
    %3643 = vmatmul.mubr.bf16.gmra.mxu0 %v167
    %v3644 = vpop.f32.mrf.mxu0
    %v3645 = vadd.f32 %v1122, %v3644
    %v3646 = vpop.f32.mrf.mxu0
    %v3647 = vadd.f32 %v1124, %v3646
    %v3648 = vpop.f32.mrf.mxu0
    %v3649 = vadd.f32 %v1126, %v3648
    %v3650 = vpop.f32.mrf.mxu0
    %v3651 = vadd.f32 %v1128, %v3650
    %3652 = vdwg.mxu0
    %3653 = vmatprep.subr.bf16.mxu0 %v2497
    %3654 = vmatpush1.bf16.msra.mxu0 %v2496
    %3655 = vmatprep.subr.bf16.mxu0 %v2489
    %3656 = vmatpush1.bf16.msra.mxu0 %v2488
    %3657 = vmatprep.subr.bf16.mxu0 %v2481
    %3658 = vmatpush1.bf16.msra.mxu0 %v2480
    %3659 = vmatprep.subr.bf16.mxu0 %v2473
    %3660 = vmatpush1.bf16.msra.mxu0 %v2472
    %3661 = vmatprep.subr.bf16.mxu0 %v2465
    %3662 = vmatpush1.bf16.msra.mxu0 %v2464
    %3663 = vmatprep.subr.bf16.mxu0 %v2457
    %3664 = vmatpush1.bf16.msra.mxu0 %v2456
    %3665 = vmatprep.subr.bf16.mxu0 %v2449
    %3666 = vmatpush1.bf16.msra.mxu0 %v2448
    %3667 = vmatprep.subr.bf16.mxu0 %v2441
    %3668 = vmatpush1.bf16.msra.mxu0 %v2440
    %3669 = vmatprep.subr.bf16.mxu0 %v2561
    %3670 = vmatpush2.bf16.msra.mxu0 %v2560
    %3671 = vmatprep.subr.bf16.mxu0 %v2553
    %3672 = vmatpush2.bf16.msra.mxu0 %v2552
    %3673 = vmatprep.subr.bf16.mxu0 %v2545
    %3674 = vmatpush2.bf16.msra.mxu0 %v2544
    %3675 = vmatprep.subr.bf16.mxu0 %v2537
    %3676 = vmatpush2.bf16.msra.mxu0 %v2536
    %3677 = vmatprep.subr.bf16.mxu0 %v2529
    %3678 = vmatpush2.bf16.msra.mxu0 %v2528
    %3679 = vmatprep.subr.bf16.mxu0 %v2521
    %3680 = vmatpush2.bf16.msra.mxu0 %v2520
    %3681 = vmatprep.subr.bf16.mxu0 %v2513
    %3682 = vmatpush2.bf16.msra.mxu0 %v2512
    %3683 = vmatprep.subr.bf16.mxu0 %v2505
    %3684 = vmatpush2.bf16.msra.mxu0 %v2504
    %3685 = vmatprep.mubr.bf16.mxu0 %v170
    %3686 = vmatmul.mubr.bf16.gmra.mxu0 %v169
    %v3687 = vpop.f32.mrf.mxu0
    %v3688 = vadd.f32 %v3645, %v3687
    %v3689 = vpop.f32.mrf.mxu0
    %v3690 = vadd.f32 %v3647, %v3689
    %v3691 = vpop.f32.mrf.mxu0
    %v3692 = vadd.f32 %v3649, %v3691
    %v3693 = vpop.f32.mrf.mxu0
    %v3694 = vadd.f32 %v3651, %v3693
    %3695 = vdwg.mxu0
    %3696 = vmatprep.subr.bf16.mxu0 %v2625
    %3697 = vmatpush1.bf16.msra.mxu0 %v2624
    %3698 = vmatprep.subr.bf16.mxu0 %v2617
    %3699 = vmatpush1.bf16.msra.mxu0 %v2616
    %3700 = vmatprep.subr.bf16.mxu0 %v2609
    %3701 = vmatpush1.bf16.msra.mxu0 %v2608
    %3702 = vmatprep.subr.bf16.mxu0 %v2601
    %3703 = vmatpush1.bf16.msra.mxu0 %v2600
    %3704 = vmatprep.subr.bf16.mxu0 %v2593
    %3705 = vmatpush1.bf16.msra.mxu0 %v2592
    %3706 = vmatprep.subr.bf16.mxu0 %v2585
    %3707 = vmatpush1.bf16.msra.mxu0 %v2584
    %3708 = vmatprep.subr.bf16.mxu0 %v2577
    %3709 = vmatpush1.bf16.msra.mxu0 %v2576
    %3710 = vmatprep.subr.bf16.mxu0 %v2569
    %3711 = vmatpush1.bf16.msra.mxu0 %v2568
    %3712 = vmatprep.subr.bf16.mxu0 %v2689
    %3713 = vmatpush2.bf16.msra.mxu0 %v2688
    %3714 = vmatprep.subr.bf16.mxu0 %v2681
    %3715 = vmatpush2.bf16.msra.mxu0 %v2680
    %3716 = vmatprep.subr.bf16.mxu0 %v2673
    %3717 = vmatpush2.bf16.msra.mxu0 %v2672
    %3718 = vmatprep.subr.bf16.mxu0 %v2665
    %3719 = vmatpush2.bf16.msra.mxu0 %v2664
    %3720 = vmatprep.subr.bf16.mxu0 %v2657
    %3721 = vmatpush2.bf16.msra.mxu0 %v2656
    %3722 = vmatprep.subr.bf16.mxu0 %v2649
    %3723 = vmatpush2.bf16.msra.mxu0 %v2648
    %3724 = vmatprep.subr.bf16.mxu0 %v2641
    %3725 = vmatpush2.bf16.msra.mxu0 %v2640
    %3726 = vmatprep.subr.bf16.mxu0 %v2633
    %3727 = vmatpush2.bf16.msra.mxu0 %v2632
    %3728 = vmatprep.mubr.bf16.mxu0 %v172
    %3729 = vmatmul.mubr.bf16.gmra.mxu0 %v171
    %v3730 = vpop.f32.mrf.mxu0
    %v3731 = vadd.f32 %v3688, %v3730
    %v3732 = vpop.f32.mrf.mxu0
    %v3733 = vadd.f32 %v3690, %v3732
    %v3734 = vpop.f32.mrf.mxu0
    %v3735 = vadd.f32 %v3692, %v3734
    %v3736 = vpop.f32.mrf.mxu0
    %v3737 = vadd.f32 %v3694, %v3736
    %3738 = vdwg.mxu0
    %3739 = vmatprep.subr.bf16.mxu0 0
    %3740 = vmatpush1.bf16.msra.mxu0 0
    %3741 = vmatprep.subr.bf16.mxu0 0
    %3742 = vmatpush1.bf16.msra.mxu0 0
    %3743 = vmatprep.subr.bf16.mxu0 0
    %3744 = vmatpush1.bf16.msra.mxu0 0
    %3745 = vmatprep.subr.bf16.mxu0 0
    %3746 = vmatpush1.bf16.msra.mxu0 0
    %3747 = vmatprep.subr.bf16.mxu0 0
    %3748 = vmatpush1.bf16.msra.mxu0 0
    %3749 = vmatprep.subr.bf16.mxu0 0
    %3750 = vmatpush1.bf16.msra.mxu0 0
    %3751 = vmatprep.subr.bf16.mxu0 0
    %3752 = vmatpush1.bf16.msra.mxu0 0
    %3753 = vmatprep.subr.bf16.mxu0 %v2697
    %3754 = vmatpush1.bf16.msra.mxu0 %v2696
    %3755 = vmatprep.subr.bf16.mxu0 0
    %3756 = vmatpush2.bf16.msra.mxu0 0
    %3757 = vmatprep.subr.bf16.mxu0 0
    %3758 = vmatpush2.bf16.msra.mxu0 0
    %3759 = vmatprep.subr.bf16.mxu0 0
    %3760 = vmatpush2.bf16.msra.mxu0 0
    %3761 = vmatprep.subr.bf16.mxu0 0
    %3762 = vmatpush2.bf16.msra.mxu0 0
    %3763 = vmatprep.subr.bf16.mxu0 0
    %3764 = vmatpush2.bf16.msra.mxu0 0
    %3765 = vmatprep.subr.bf16.mxu0 0
    %3766 = vmatpush2.bf16.msra.mxu0 0
    %3767 = vmatprep.subr.bf16.mxu0 0
    %3768 = vmatpush2.bf16.msra.mxu0 0
    %3769 = vmatprep.subr.bf16.mxu0 0
    %3770 = vmatpush2.bf16.msra.mxu0 0
    %3771 = vmatprep.mubr.bf16.mxu0 0
    %3772 = vmatmul.mubr.bf16.gmra.mxu0 %v3092
    %v3773 = vpop.f32.mrf.mxu0
    %v3774 = vadd.f32 %v3731, %v3773
    %v3775 = vpop.f32.mrf.mxu0
    %v3776 = vadd.f32 %v3733, %v3775
    %v3777 = vpop.f32.mrf.mxu0
    %v3778 = vadd.f32 %v3735, %v3777
    %v3779 = vpop.f32.mrf.mxu0
    %v3780 = vadd.f32 %v3737, %v3779
    %3781 = vdwg.mxu0
    %v3782 = vld [vmem:[#allocation6] sm:$0xff]
    %v3784 = vlaneseq
    %v3785 = vshrl.u32 %v3784, 7
    %v3786 = vsub.s32 0, %v3785
    %v3787 = vrot.slane %v3782, %v3786
    %v3788 = vlaneseq
    %v3789 = vshrl.u32 %v3788, 7
    %v3790 = vsub.s32 1, %v3789
    %v3791 = vrot.slane %v3782, %v3790
    %v3792 = vlaneseq
    %v3793 = vshrl.u32 %v3792, 7
    %v3794 = vsub.s32 2, %v3793
    %v3795 = vrot.slane %v3782, %v3794
    %v3796 = vlaneseq
    %v3797 = vshrl.u32 %v3796, 7
    %v3798 = vsub.s32 3, %v3797
    %v3799 = vrot.slane %v3782, %v3798
    %v3800 = vlaneseq
    %v3801 = vshrl.u32 %v3800, 7
    %v3802 = vsub.s32 4, %v3801
    %v3803 = vrot.slane %v3782, %v3802
    %v3804 = vlaneseq
    %v3805 = vshrl.u32 %v3804, 7
    %v3806 = vsub.s32 5, %v3805
    %v3807 = vrot.slane %v3782, %v3806
    %v3808 = vlaneseq
    %v3809 = vshrl.u32 %v3808, 7
    %v3810 = vsub.s32 6, %v3809
    %v3811 = vrot.slane %v3782, %v3810
    %v3812 = vlaneseq
    %v3813 = vshrl.u32 %v3812, 7
    %v3814 = vsub.s32 7, %v3813
    %v3815 = vrot.slane %v3782, %v3814
    %v3824 = vadd.f32 %v3258, %v3787
    %v3825 = vadd.f32 %v3260, %v3791
    %v3826 = vadd.f32 %v3430, %v3795
    %v3827 = vadd.f32 %v3432, %v3799
    %v3828 = vadd.f32 %v3602, %v3803
    %v3829 = vadd.f32 %v3604, %v3807
    %v3830 = vadd.f32 %v3774, %v3811
    %v3831 = vadd.f32 %v3776, %v3815
    %v3832 = vadd.f32 %v3262, %v3787
    %v3833 = vadd.f32 %v3264, %v3791
    %v3834 = vadd.f32 %v3434, %v3795
    %v3835 = vadd.f32 %v3436, %v3799
    %v3836 = vadd.f32 %v3606, %v3803
    %v3837 = vadd.f32 %v3608, %v3807
    %v3838 = vadd.f32 %v3778, %v3811
    %v3839 = vadd.f32 %v3780, %v3815
    %vm3840 = vcmp.ge.f32.partialorder %v3824, 0.0
    %vm3841 = vcmp.ge.f32.partialorder %v3825, 0.0
    %vm3842 = vcmp.ge.f32.partialorder %v3826, 0.0
    %vm3843 = vcmp.ge.f32.partialorder %v3827, 0.0
    %vm3844 = vcmp.ge.f32.partialorder %v3828, 0.0
    %vm3845 = vcmp.ge.f32.partialorder %v3829, 0.0
    %vm3846 = vcmp.ge.f32.partialorder %v3830, 0.0
    %vm3847 = vcmp.ge.f32.partialorder %v3831, 0.0
    %vm3848 = vcmp.ge.f32.partialorder %v3832, 0.0
    %vm3849 = vcmp.ge.f32.partialorder %v3833, 0.0
    %vm3850 = vcmp.ge.f32.partialorder %v3834, 0.0
    %vm3851 = vcmp.ge.f32.partialorder %v3835, 0.0
    %vm3852 = vcmp.ge.f32.partialorder %v3836, 0.0
    %vm3853 = vcmp.ge.f32.partialorder %v3837, 0.0
    %vm3854 = vcmp.ge.f32.partialorder %v3838, 0.0
    %vm3855 = vcmp.ge.f32.partialorder %v3839, 0.0
    %v3856 = vmul.f32 %v3824, 0.2
    %v3857 = vmul.f32 %v3825, 0.2
    %v3858 = vmul.f32 %v3826, 0.2
    %v3859 = vmul.f32 %v3827, 0.2
    %v3860 = vmul.f32 %v3828, 0.2
    %v3861 = vmul.f32 %v3829, 0.2
    %v3862 = vmul.f32 %v3830, 0.2
    %v3863 = vmul.f32 %v3831, 0.2
    %v3864 = vmul.f32 %v3832, 0.2
    %v3865 = vmul.f32 %v3833, 0.2
    %v3866 = vmul.f32 %v3834, 0.2
    %v3867 = vmul.f32 %v3835, 0.2
    %v3868 = vmul.f32 %v3836, 0.2
    %v3869 = vmul.f32 %v3837, 0.2
    %v3870 = vmul.f32 %v3838, 0.2
    %v3871 = vmul.f32 %v3839, 0.2
    %v3872 = vsel %vm3840, %v3824, %v3856
    %v3873 = vsel %vm3841, %v3825, %v3857
    %v3874 = vsel %vm3842, %v3826, %v3858
    %v3875 = vsel %vm3843, %v3827, %v3859
    %v3876 = vsel %vm3844, %v3828, %v3860
    %v3877 = vsel %vm3845, %v3829, %v3861
    %v3878 = vsel %vm3846, %v3830, %v3862
    %v3879 = vsel %vm3847, %v3831, %v3863
    %v3880 = vsel %vm3848, %v3832, %v3864
    %v3881 = vsel %vm3849, %v3833, %v3865
    %v3882 = vsel %vm3850, %v3834, %v3866
    %v3883 = vsel %vm3851, %v3835, %v3867
    %v3884 = vsel %vm3852, %v3836, %v3868
    %v3885 = vsel %vm3853, %v3837, %v3869
    %v3886 = vsel %vm3854, %v3838, %v3870
    %v3887 = vsel %vm3855, %v3839, %v3871
    %v3888 = vpack.c.bf16 %v3880, %v3872
    %v3889 = vpack.c.bf16 %v3881, %v3873
    %v3890 = vpack.c.bf16 %v3882, %v3874
    %v3891 = vpack.c.bf16 %v3883, %v3875
    %v3892 = vpack.c.bf16 %v3884, %v3876
    %v3893 = vpack.c.bf16 %v3885, %v3877
    %v3894 = vpack.c.bf16 %v3886, %v3878
    %v3895 = vpack.c.bf16 %v3887, %v3879
    %v3896 = vld [vmem:[#allocation7] sm:$0xff]
    %v3897 = vld [vmem:[#allocation7 + $0x8] sm:$0xff]
    %v3898 = vld [vmem:[#allocation7 + $0x10] sm:$0xff]
    %v3899 = vld [vmem:[#allocation7 + $0x18] sm:$0xff]
    %v3900 = vld [vmem:[#allocation7 + $0x20] sm:$0xff]
    %v3901 = vld [vmem:[#allocation7 + $0x28] sm:$0xff]
    %v3902 = vld [vmem:[#allocation7 + $0x30] sm:$0xff]
    %v3903 = vld [vmem:[#allocation7 + $0x38] sm:$0xff]
    %v3904 = vld [vmem:[#allocation7 + $0x40] sm:$0xff]
    %v3905 = vld [vmem:[#allocation7 + $0x48] sm:$0xff]
    %v3906 = vld [vmem:[#allocation7 + $0x50] sm:$0xff]
    %v3907 = vld [vmem:[#allocation7 + $0x58] sm:$0xff]
    %v3908 = vld [vmem:[#allocation7 + $0x60] sm:$0xff]
    %v3909 = vld [vmem:[#allocation7 + $0x68] sm:$0xff]
    %v3910 = vld [vmem:[#allocation7 + $0x70] sm:$0xff]
    %v3911 = vld [vmem:[#allocation7 + $0x78] sm:$0xff]
    %v3912 = vld [vmem:[#allocation7 + $0x80] sm:$0xff]
    %v3913 = vld [vmem:[#allocation7 + $0x88] sm:$0xff]
    %v3914 = vld [vmem:[#allocation7 + $0x90] sm:$0xff]
    %v3915 = vld [vmem:[#allocation7 + $0x98] sm:$0xff]
    %v3916 = vld [vmem:[#allocation7 + $0xa0] sm:$0xff]
    %v3917 = vld [vmem:[#allocation7 + $0xa8] sm:$0xff]
    %v3918 = vld [vmem:[#allocation7 + $0xb0] sm:$0xff]
    %v3919 = vld [vmem:[#allocation7 + $0xb8] sm:$0xff]
    %v3920 = vld [vmem:[#allocation7 + $0xc0] sm:$0xff]
    %v3921 = vld [vmem:[#allocation7 + $0xc8] sm:$0xff]
    %v3922 = vld [vmem:[#allocation7 + $0xd0] sm:$0xff]
    %v3923 = vld [vmem:[#allocation7 + $0xd8] sm:$0xff]
    %v3924 = vld [vmem:[#allocation7 + $0xe0] sm:$0xff]
    %v3925 = vld [vmem:[#allocation7 + $0xe8] sm:$0xff]
    %v3926 = vld [vmem:[#allocation7 + $0xf0] sm:$0xff]
    %v3927 = vld [vmem:[#allocation7 + $0xf8] sm:$0xff]
    %v3928 = vld [vmem:[#allocation7 + $0x100] sm:$0xff]
    %v3929 = vld [vmem:[#allocation7 + $0x108] sm:$0xff]
    %v3930 = vld [vmem:[#allocation7 + $0x110] sm:$0xff]
    %v3931 = vld [vmem:[#allocation7 + $0x118] sm:$0xff]
    %v3932 = vld [vmem:[#allocation7 + $0x120] sm:$0xff]
    %v3933 = vld [vmem:[#allocation7 + $0x128] sm:$0xff]
    %v3934 = vld [vmem:[#allocation7 + $0x130] sm:$0xff]
    %v3935 = vld [vmem:[#allocation7 + $0x138] sm:$0xff]
    %v3936 = vld [vmem:[#allocation7 + $0x140] sm:$0xff]
    %v3937 = vld [vmem:[#allocation7 + $0x148] sm:$0xff]
    %v3938 = vld [vmem:[#allocation7 + $0x150] sm:$0xff]
    %v3939 = vld [vmem:[#allocation7 + $0x158] sm:$0xff]
    %v3940 = vld [vmem:[#allocation7 + $0x160] sm:$0xff]
    %v3941 = vld [vmem:[#allocation7 + $0x168] sm:$0xff]
    %v3942 = vld [vmem:[#allocation7 + $0x170] sm:$0xff]
    %v3943 = vld [vmem:[#allocation7 + $0x178] sm:$0xff]
    %v3944 = vld [vmem:[#allocation7 + $0x180] sm:$0xff]
    %v3945 = vld [vmem:[#allocation7 + $0x188] sm:$0xff]
    %v3946 = vld [vmem:[#allocation7 + $0x190] sm:$0xff]
    %v3947 = vld [vmem:[#allocation7 + $0x198] sm:$0xff]
    %v3948 = vld [vmem:[#allocation7 + $0x1a0] sm:$0xff]
    %v3949 = vld [vmem:[#allocation7 + $0x1a8] sm:$0xff]
    %v3950 = vld [vmem:[#allocation7 + $0x1b0] sm:$0xff]
    %v3951 = vld [vmem:[#allocation7 + $0x1b8] sm:$0xff]
    %v3952 = vld [vmem:[#allocation7 + $0x1c0] sm:$0xff]
    %v3953 = vld [vmem:[#allocation7 + $0x1c8] sm:$0xff]
    %v3954 = vld [vmem:[#allocation7 + $0x1d0] sm:$0xff]
    %v3955 = vld [vmem:[#allocation7 + $0x1d8] sm:$0xff]
    %v3956 = vld [vmem:[#allocation7 + $0x1e0] sm:$0xff]
    %v3957 = vld [vmem:[#allocation7 + $0x1e8] sm:$0xff]
    %v3958 = vld [vmem:[#allocation7 + $0x1f0] sm:$0xff]
    %v3959 = vld [vmem:[#allocation7 + $0x1f8] sm:$0xff]
    %v3960 = vld [vmem:[#allocation7 + $0x200] sm:$0xff]
    %v3961 = vld [vmem:[#allocation7 + $0x208] sm:$0xff]
    %v3962 = vld [vmem:[#allocation7 + $0x210] sm:$0xff]
    %v3963 = vld [vmem:[#allocation7 + $0x218] sm:$0xff]
    %v3964 = vld [vmem:[#allocation7 + $0x220] sm:$0xff]
    %v3965 = vld [vmem:[#allocation7 + $0x228] sm:$0xff]
    %v3966 = vld [vmem:[#allocation7 + $0x230] sm:$0xff]
    %v3967 = vld [vmem:[#allocation7 + $0x238] sm:$0xff]
    %v3968 = vld [vmem:[#allocation7 + $0x240] sm:$0xff]
    %v3969 = vld [vmem:[#allocation7 + $0x248] sm:$0xff]
    %v3970 = vld [vmem:[#allocation7 + $0x250] sm:$0xff]
    %v3971 = vld [vmem:[#allocation7 + $0x258] sm:$0xff]
    %v3972 = vld [vmem:[#allocation7 + $0x260] sm:$0xff]
    %v3973 = vld [vmem:[#allocation7 + $0x268] sm:$0xff]
    %v3974 = vld [vmem:[#allocation7 + $0x270] sm:$0xff]
    %v3975 = vld [vmem:[#allocation7 + $0x278] sm:$0xff]
    %v3976 = vld [vmem:[#allocation7 + $0x280] sm:$0xff]
    %v3977 = vld [vmem:[#allocation7 + $0x288] sm:$0xff]
    %v3978 = vld [vmem:[#allocation7 + $0x290] sm:$0xff]
    %v3979 = vld [vmem:[#allocation7 + $0x298] sm:$0xff]
    %v3980 = vld [vmem:[#allocation7 + $0x2a0] sm:$0xff]
    %v3981 = vld [vmem:[#allocation7 + $0x2a8] sm:$0xff]
    %v3982 = vld [vmem:[#allocation7 + $0x2b0] sm:$0xff]
    %v3983 = vld [vmem:[#allocation7 + $0x2b8] sm:$0xff]
    %v3984 = vld [vmem:[#allocation7 + $0x2c0] sm:$0xff]
    %v3985 = vld [vmem:[#allocation7 + $0x2c8] sm:$0xff]
    %v3986 = vld [vmem:[#allocation7 + $0x2d0] sm:$0xff]
    %v3987 = vld [vmem:[#allocation7 + $0x2d8] sm:$0xff]
    %v3988 = vld [vmem:[#allocation7 + $0x2e0] sm:$0xff]
    %v3989 = vld [vmem:[#allocation7 + $0x2e8] sm:$0xff]
    %v3990 = vld [vmem:[#allocation7 + $0x2f0] sm:$0xff]
    %v3991 = vld [vmem:[#allocation7 + $0x2f8] sm:$0xff]
    %v3992 = vld [vmem:[#allocation7 + $0x300] sm:$0xff]
    %v3993 = vld [vmem:[#allocation7 + $0x308] sm:$0xff]
    %v3994 = vld [vmem:[#allocation7 + $0x310] sm:$0xff]
    %v3995 = vld [vmem:[#allocation7 + $0x318] sm:$0xff]
    %v3996 = vld [vmem:[#allocation7 + $0x320] sm:$0xff]
    %v3997 = vld [vmem:[#allocation7 + $0x328] sm:$0xff]
    %v3998 = vld [vmem:[#allocation7 + $0x330] sm:$0xff]
    %v3999 = vld [vmem:[#allocation7 + $0x338] sm:$0xff]
    %v4000 = vld [vmem:[#allocation7 + $0x340] sm:$0xff]
    %v4001 = vld [vmem:[#allocation7 + $0x348] sm:$0xff]
    %v4002 = vld [vmem:[#allocation7 + $0x350] sm:$0xff]
    %v4003 = vld [vmem:[#allocation7 + $0x358] sm:$0xff]
    %v4004 = vld [vmem:[#allocation7 + $0x360] sm:$0xff]
    %v4005 = vld [vmem:[#allocation7 + $0x368] sm:$0xff]
    %v4006 = vld [vmem:[#allocation7 + $0x370] sm:$0xff]
    %v4007 = vld [vmem:[#allocation7 + $0x378] sm:$0xff]
    %v4008 = vld [vmem:[#allocation7 + $0x380] sm:$0xff]
    %v4009 = vld [vmem:[#allocation7 + $0x388] sm:$0xff]
    %v4010 = vld [vmem:[#allocation7 + $0x390] sm:$0xff]
    %v4011 = vld [vmem:[#allocation7 + $0x398] sm:$0xff]
    %v4012 = vld [vmem:[#allocation7 + $0x3a0] sm:$0xff]
    %v4013 = vld [vmem:[#allocation7 + $0x3a8] sm:$0xff]
    %v4014 = vld [vmem:[#allocation7 + $0x3b0] sm:$0xff]
    %v4015 = vld [vmem:[#allocation7 + $0x3b8] sm:$0xff]
    %v4016 = vld [vmem:[#allocation7 + $0x3c0] sm:$0xff]
    %v4017 = vld [vmem:[#allocation7 + $0x3c8] sm:$0xff]
    %v4018 = vld [vmem:[#allocation7 + $0x3d0] sm:$0xff]
    %v4019 = vld [vmem:[#allocation7 + $0x3d8] sm:$0xff]
    %v4020 = vld [vmem:[#allocation7 + $0x3e0] sm:$0xff]
    %v4021 = vld [vmem:[#allocation7 + $0x3e8] sm:$0xff]
    %v4022 = vld [vmem:[#allocation7 + $0x3f0] sm:$0xff]
    %v4023 = vld [vmem:[#allocation7 + $0x3f8] sm:$0xff]
    %v4024 = vld [vmem:[#allocation7 + $0x400] sm:$0xff]
    %v4025 = vld [vmem:[#allocation7 + $0x408] sm:$0xff]
    %v4026 = vld [vmem:[#allocation7 + $0x410] sm:$0xff]
    %v4027 = vld [vmem:[#allocation7 + $0x418] sm:$0xff]
    %v4028 = vld [vmem:[#allocation7 + $0x420] sm:$0xff]
    %v4029 = vld [vmem:[#allocation7 + $0x428] sm:$0xff]
    %v4030 = vld [vmem:[#allocation7 + $0x430] sm:$0xff]
    %v4031 = vld [vmem:[#allocation7 + $0x438] sm:$0xff]
    %v4032 = vld [vmem:[#allocation7 + $0x440] sm:$0xff]
    %v4033 = vld [vmem:[#allocation7 + $0x448] sm:$0xff]
    %v4034 = vld [vmem:[#allocation7 + $0x450] sm:$0xff]
    %v4035 = vld [vmem:[#allocation7 + $0x458] sm:$0xff]
    %v4036 = vld [vmem:[#allocation7 + $0x460] sm:$0xff]
    %v4037 = vld [vmem:[#allocation7 + $0x468] sm:$0xff]
    %v4038 = vld [vmem:[#allocation7 + $0x470] sm:$0xff]
    %v4039 = vld [vmem:[#allocation7 + $0x478] sm:$0xff]
    %v4040 = vld [vmem:[#allocation7 + $0x480] sm:$0xff]
    %v4041 = vld [vmem:[#allocation7 + $0x488] sm:$0xff]
    %v4042 = vld [vmem:[#allocation7 + $0x490] sm:$0xff]
    %v4043 = vld [vmem:[#allocation7 + $0x498] sm:$0xff]
    %v4044 = vld [vmem:[#allocation7 + $0x4a0] sm:$0xff]
    %v4045 = vld [vmem:[#allocation7 + $0x4a8] sm:$0xff]
    %v4046 = vld [vmem:[#allocation7 + $0x4b0] sm:$0xff]
    %v4047 = vld [vmem:[#allocation7 + $0x4b8] sm:$0xff]
    %v4048 = vld [vmem:[#allocation7 + $0x4c0] sm:$0xff]
    %v4049 = vld [vmem:[#allocation7 + $0x4c8] sm:$0xff]
    %v4050 = vld [vmem:[#allocation7 + $0x4d0] sm:$0xff]
    %v4051 = vld [vmem:[#allocation7 + $0x4d8] sm:$0xff]
    %v4052 = vld [vmem:[#allocation7 + $0x4e0] sm:$0xff]
    %v4053 = vld [vmem:[#allocation7 + $0x4e8] sm:$0xff]
    %v4054 = vld [vmem:[#allocation7 + $0x4f0] sm:$0xff]
    %v4055 = vld [vmem:[#allocation7 + $0x4f8] sm:$0xff]
    %v4056 = vld [vmem:[#allocation7 + $0x500] sm:$0xff]
    %v4057 = vld [vmem:[#allocation7 + $0x508] sm:$0xff]
    %v4058 = vld [vmem:[#allocation7 + $0x510] sm:$0xff]
    %v4059 = vld [vmem:[#allocation7 + $0x518] sm:$0xff]
    %v4060 = vld [vmem:[#allocation7 + $0x520] sm:$0xff]
    %v4061 = vld [vmem:[#allocation7 + $0x528] sm:$0xff]
    %v4062 = vld [vmem:[#allocation7 + $0x530] sm:$0xff]
    %v4063 = vld [vmem:[#allocation7 + $0x538] sm:$0xff]
    %v4064 = vld [vmem:[#allocation7 + $0x540] sm:$0xff]
    %v4065 = vld [vmem:[#allocation7 + $0x548] sm:$0xff]
    %v4066 = vld [vmem:[#allocation7 + $0x550] sm:$0xff]
    %v4067 = vld [vmem:[#allocation7 + $0x558] sm:$0xff]
    %v4068 = vld [vmem:[#allocation7 + $0x560] sm:$0xff]
    %v4069 = vld [vmem:[#allocation7 + $0x568] sm:$0xff]
    %v4070 = vld [vmem:[#allocation7 + $0x570] sm:$0xff]
    %v4071 = vld [vmem:[#allocation7 + $0x578] sm:$0xff]
    %v4072 = vld [vmem:[#allocation7 + $0x580] sm:$0xff]
    %v4073 = vld [vmem:[#allocation7 + $0x588] sm:$0xff]
    %v4074 = vld [vmem:[#allocation7 + $0x590] sm:$0xff]
    %v4075 = vld [vmem:[#allocation7 + $0x598] sm:$0xff]
    %v4076 = vld [vmem:[#allocation7 + $0x5a0] sm:$0xff]
    %v4077 = vld [vmem:[#allocation7 + $0x5a8] sm:$0xff]
    %v4078 = vld [vmem:[#allocation7 + $0x5b0] sm:$0xff]
    %v4079 = vld [vmem:[#allocation7 + $0x5b8] sm:$0xff]
    %v4080 = vld [vmem:[#allocation7 + $0x5c0] sm:$0xff]
    %v4081 = vld [vmem:[#allocation7 + $0x5c8] sm:$0xff]
    %v4082 = vld [vmem:[#allocation7 + $0x5d0] sm:$0xff]
    %v4083 = vld [vmem:[#allocation7 + $0x5d8] sm:$0xff]
    %v4084 = vld [vmem:[#allocation7 + $0x5e0] sm:$0xff]
    %v4085 = vld [vmem:[#allocation7 + $0x5e8] sm:$0xff]
    %v4086 = vld [vmem:[#allocation7 + $0x5f0] sm:$0xff]
    %v4087 = vld [vmem:[#allocation7 + $0x5f8] sm:$0xff]
    %v4088 = vld [vmem:[#allocation7 + $0x600] sm:$0xff]
    %v4089 = vld [vmem:[#allocation7 + $0x608] sm:$0xff]
    %v4090 = vld [vmem:[#allocation7 + $0x610] sm:$0xff]
    %v4091 = vld [vmem:[#allocation7 + $0x618] sm:$0xff]
    %v4092 = vld [vmem:[#allocation7 + $0x620] sm:$0xff]
    %v4093 = vld [vmem:[#allocation7 + $0x628] sm:$0xff]
    %v4094 = vld [vmem:[#allocation7 + $0x630] sm:$0xff]
    %v4095 = vld [vmem:[#allocation7 + $0x638] sm:$0xff]
    %v4096 = vld [vmem:[#allocation7 + $0x640] sm:$0xff]
    %v4097 = vld [vmem:[#allocation7 + $0x648] sm:$0xff]
    %v4098 = vld [vmem:[#allocation7 + $0x650] sm:$0xff]
    %v4099 = vld [vmem:[#allocation7 + $0x658] sm:$0xff]
    %v4100 = vld [vmem:[#allocation7 + $0x660] sm:$0xff]
    %v4101 = vld [vmem:[#allocation7 + $0x668] sm:$0xff]
    %v4102 = vld [vmem:[#allocation7 + $0x670] sm:$0xff]
    %v4103 = vld [vmem:[#allocation7 + $0x678] sm:$0xff]
    %v4104 = vld [vmem:[#allocation7 + $0x680] sm:$0xff]
    %v4105 = vld [vmem:[#allocation7 + $0x688] sm:$0xff]
    %v4106 = vld [vmem:[#allocation7 + $0x690] sm:$0xff]
    %v4107 = vld [vmem:[#allocation7 + $0x698] sm:$0xff]
    %v4108 = vld [vmem:[#allocation7 + $0x6a0] sm:$0xff]
    %v4109 = vld [vmem:[#allocation7 + $0x6a8] sm:$0xff]
    %v4110 = vld [vmem:[#allocation7 + $0x6b0] sm:$0xff]
    %v4111 = vld [vmem:[#allocation7 + $0x6b8] sm:$0xff]
    %v4112 = vld [vmem:[#allocation7 + $0x6c0] sm:$0xff]
    %v4113 = vld [vmem:[#allocation7 + $0x6c8] sm:$0xff]
    %v4114 = vld [vmem:[#allocation7 + $0x6d0] sm:$0xff]
    %v4115 = vld [vmem:[#allocation7 + $0x6d8] sm:$0xff]
    %v4116 = vld [vmem:[#allocation7 + $0x6e0] sm:$0xff]
    %v4117 = vld [vmem:[#allocation7 + $0x6e8] sm:$0xff]
    %v4118 = vld [vmem:[#allocation7 + $0x6f0] sm:$0xff]
    %v4119 = vld [vmem:[#allocation7 + $0x6f8] sm:$0xff]
    %v4120 = vld [vmem:[#allocation7 + $0x700] sm:$0xff]
    %v4121 = vld [vmem:[#allocation7 + $0x708] sm:$0xff]
    %v4122 = vld [vmem:[#allocation7 + $0x710] sm:$0xff]
    %v4123 = vld [vmem:[#allocation7 + $0x718] sm:$0xff]
    %v4124 = vld [vmem:[#allocation7 + $0x720] sm:$0xff]
    %v4125 = vld [vmem:[#allocation7 + $0x728] sm:$0xff]
    %v4126 = vld [vmem:[#allocation7 + $0x730] sm:$0xff]
    %v4127 = vld [vmem:[#allocation7 + $0x738] sm:$0xff]
    %v4128 = vld [vmem:[#allocation7 + $0x740] sm:$0xff]
    %v4129 = vld [vmem:[#allocation7 + $0x748] sm:$0xff]
    %v4130 = vld [vmem:[#allocation7 + $0x750] sm:$0xff]
    %v4131 = vld [vmem:[#allocation7 + $0x758] sm:$0xff]
    %v4132 = vld [vmem:[#allocation7 + $0x760] sm:$0xff]
    %v4133 = vld [vmem:[#allocation7 + $0x768] sm:$0xff]
    %v4134 = vld [vmem:[#allocation7 + $0x770] sm:$0xff]
    %v4135 = vld [vmem:[#allocation7 + $0x778] sm:$0xff]
    %v4136 = vld [vmem:[#allocation7 + $0x780] sm:$0xff]
    %v4137 = vld [vmem:[#allocation7 + $0x788] sm:$0xff]
    %v4138 = vld [vmem:[#allocation7 + $0x790] sm:$0xff]
    %v4139 = vld [vmem:[#allocation7 + $0x798] sm:$0xff]
    %v4140 = vld [vmem:[#allocation7 + $0x7a0] sm:$0xff]
    %v4141 = vld [vmem:[#allocation7 + $0x7a8] sm:$0xff]
    %v4142 = vld [vmem:[#allocation7 + $0x7b0] sm:$0xff]
    %v4143 = vld [vmem:[#allocation7 + $0x7b8] sm:$0xff]
    %v4144 = vld [vmem:[#allocation7 + $0x7c0] sm:$0xff]
    %v4145 = vld [vmem:[#allocation7 + $0x7c8] sm:$0xff]
    %v4146 = vld [vmem:[#allocation7 + $0x7d0] sm:$0xff]
    %v4147 = vld [vmem:[#allocation7 + $0x7d8] sm:$0xff]
    %v4148 = vld [vmem:[#allocation7 + $0x7e0] sm:$0xff]
    %v4149 = vld [vmem:[#allocation7 + $0x7e8] sm:$0xff]
    %v4150 = vld [vmem:[#allocation7 + $0x7f0] sm:$0xff]
    %v4151 = vld [vmem:[#allocation7 + $0x7f8] sm:$0xff]
    %v4152 = vld [vmem:[#allocation9] sm:$0xf]
    %v4154 = vlaneseq
    %v4155 = vshrl.u32 %v4154, 7
    %v4156 = vsub.s32 0, %v4155
    %v4157 = vrot.slane %v4152, %v4156
    %v4158 = vlaneseq
    %v4159 = vshrl.u32 %v4158, 7
    %v4160 = vsub.s32 1, %v4159
    %v4161 = vrot.slane %v4152, %v4160
    %v4162 = vlaneseq
    %v4163 = vshrl.u32 %v4162, 7
    %v4164 = vsub.s32 2, %v4163
    %v4165 = vrot.slane %v4152, %v4164
    %v4166 = vlaneseq
    %v4167 = vshrl.u32 %v4166, 7
    %v4168 = vsub.s32 3, %v4167
    %v4169 = vrot.slane %v4152, %v4168
    %v4430 = vunpack.c.l.b16 %v3896
    %v4431 = vunpack.c.h.b16 %v3896
    %v4432 = vunpack.c.l.b16 %v3897
    %v4433 = vunpack.c.h.b16 %v3897
    %v4434 = vunpack.c.l.b16 %v3898
    %v4435 = vunpack.c.h.b16 %v3898
    %v4436 = vunpack.c.l.b16 %v3899
    %v4437 = vunpack.c.h.b16 %v3899
    %v4438 = vunpack.c.l.b16 %v3900
    %v4439 = vunpack.c.h.b16 %v3900
    %v4440 = vunpack.c.l.b16 %v3901
    %v4441 = vunpack.c.h.b16 %v3901
    %v4442 = vunpack.c.l.b16 %v3902
    %v4443 = vunpack.c.h.b16 %v3902
    %v4444 = vunpack.c.l.b16 %v3903
    %v4445 = vunpack.c.h.b16 %v3903
    %v4446 = vunpack.c.l.b16 %v3904
    %v4447 = vunpack.c.h.b16 %v3904
    %v4448 = vunpack.c.l.b16 %v3905
    %v4449 = vunpack.c.h.b16 %v3905
    %v4450 = vunpack.c.l.b16 %v3906
    %v4451 = vunpack.c.h.b16 %v3906
    %v4452 = vunpack.c.l.b16 %v3907
    %v4453 = vunpack.c.h.b16 %v3907
    %v4454 = vunpack.c.l.b16 %v3908
    %v4455 = vunpack.c.h.b16 %v3908
    %v4456 = vunpack.c.l.b16 %v3909
    %v4457 = vunpack.c.h.b16 %v3909
    %v4458 = vunpack.c.l.b16 %v3910
    %v4459 = vunpack.c.h.b16 %v3910
    %v4460 = vunpack.c.l.b16 %v3911
    %v4461 = vunpack.c.h.b16 %v3911
    %v4462 = vunpack.c.l.b16 %v3912
    %v4463 = vunpack.c.h.b16 %v3912
    %v4464 = vunpack.c.l.b16 %v3913
    %v4465 = vunpack.c.h.b16 %v3913
    %v4466 = vunpack.c.l.b16 %v3914
    %v4467 = vunpack.c.h.b16 %v3914
    %v4468 = vunpack.c.l.b16 %v3915
    %v4469 = vunpack.c.h.b16 %v3915
    %v4470 = vunpack.c.l.b16 %v3916
    %v4471 = vunpack.c.h.b16 %v3916
    %v4472 = vunpack.c.l.b16 %v3917
    %v4473 = vunpack.c.h.b16 %v3917
    %v4474 = vunpack.c.l.b16 %v3918
    %v4475 = vunpack.c.h.b16 %v3918
    %v4476 = vunpack.c.l.b16 %v3919
    %v4477 = vunpack.c.h.b16 %v3919
    %v4478 = vunpack.c.l.b16 %v3920
    %v4479 = vunpack.c.h.b16 %v3920
    %v4480 = vunpack.c.l.b16 %v3921
    %v4481 = vunpack.c.h.b16 %v3921
    %v4482 = vunpack.c.l.b16 %v3922
    %v4483 = vunpack.c.h.b16 %v3922
    %v4484 = vunpack.c.l.b16 %v3923
    %v4485 = vunpack.c.h.b16 %v3923
    %v4486 = vunpack.c.l.b16 %v3924
    %v4487 = vunpack.c.h.b16 %v3924
    %v4488 = vunpack.c.l.b16 %v3925
    %v4489 = vunpack.c.h.b16 %v3925
    %v4490 = vunpack.c.l.b16 %v3926
    %v4491 = vunpack.c.h.b16 %v3926
    %v4492 = vunpack.c.l.b16 %v3927
    %v4493 = vunpack.c.h.b16 %v3927
    %v4494 = vunpack.c.l.b16 %v3928
    %v4495 = vunpack.c.h.b16 %v3928
    %v4496 = vunpack.c.l.b16 %v3929
    %v4497 = vunpack.c.h.b16 %v3929
    %v4498 = vunpack.c.l.b16 %v3930
    %v4499 = vunpack.c.h.b16 %v3930
    %v4500 = vunpack.c.l.b16 %v3931
    %v4501 = vunpack.c.h.b16 %v3931
    %v4502 = vunpack.c.l.b16 %v3932
    %v4503 = vunpack.c.h.b16 %v3932
    %v4504 = vunpack.c.l.b16 %v3933
    %v4505 = vunpack.c.h.b16 %v3933
    %v4506 = vunpack.c.l.b16 %v3934
    %v4507 = vunpack.c.h.b16 %v3934
    %v4508 = vunpack.c.l.b16 %v3935
    %v4509 = vunpack.c.h.b16 %v3935
    %v4510 = vunpack.c.l.b16 %v3936
    %v4511 = vunpack.c.h.b16 %v3936
    %v4512 = vunpack.c.l.b16 %v3937
    %v4513 = vunpack.c.h.b16 %v3937
    %v4514 = vunpack.c.l.b16 %v3938
    %v4515 = vunpack.c.h.b16 %v3938
    %v4516 = vunpack.c.l.b16 %v3939
    %v4517 = vunpack.c.h.b16 %v3939
    %v4518 = vunpack.c.l.b16 %v3940
    %v4519 = vunpack.c.h.b16 %v3940
    %v4520 = vunpack.c.l.b16 %v3941
    %v4521 = vunpack.c.h.b16 %v3941
    %v4522 = vunpack.c.l.b16 %v3942
    %v4523 = vunpack.c.h.b16 %v3942
    %v4524 = vunpack.c.l.b16 %v3943
    %v4525 = vunpack.c.h.b16 %v3943
    %v4526 = vunpack.c.l.b16 %v3944
    %v4527 = vunpack.c.h.b16 %v3944
    %v4528 = vunpack.c.l.b16 %v3945
    %v4529 = vunpack.c.h.b16 %v3945
    %v4530 = vunpack.c.l.b16 %v3946
    %v4531 = vunpack.c.h.b16 %v3946
    %v4532 = vunpack.c.l.b16 %v3947
    %v4533 = vunpack.c.h.b16 %v3947
    %v4534 = vunpack.c.l.b16 %v3948
    %v4535 = vunpack.c.h.b16 %v3948
    %v4536 = vunpack.c.l.b16 %v3949
    %v4537 = vunpack.c.h.b16 %v3949
    %v4538 = vunpack.c.l.b16 %v3950
    %v4539 = vunpack.c.h.b16 %v3950
    %v4540 = vunpack.c.l.b16 %v3951
    %v4541 = vunpack.c.h.b16 %v3951
    %v4542 = vunpack.c.l.b16 %v3952
    %v4543 = vunpack.c.h.b16 %v3952
    %v4544 = vunpack.c.l.b16 %v3953
    %v4545 = vunpack.c.h.b16 %v3953
    %v4546 = vunpack.c.l.b16 %v3954
    %v4547 = vunpack.c.h.b16 %v3954
    %v4548 = vunpack.c.l.b16 %v3955
    %v4549 = vunpack.c.h.b16 %v3955
    %v4550 = vunpack.c.l.b16 %v3956
    %v4551 = vunpack.c.h.b16 %v3956
    %v4552 = vunpack.c.l.b16 %v3957
    %v4553 = vunpack.c.h.b16 %v3957
    %v4554 = vunpack.c.l.b16 %v3958
    %v4555 = vunpack.c.h.b16 %v3958
    %v4556 = vunpack.c.l.b16 %v3959
    %v4557 = vunpack.c.h.b16 %v3959
    %v4558 = vunpack.c.l.b16 %v3960
    %v4559 = vunpack.c.h.b16 %v3960
    %v4560 = vunpack.c.l.b16 %v3961
    %v4561 = vunpack.c.h.b16 %v3961
    %v4562 = vunpack.c.l.b16 %v3962
    %v4563 = vunpack.c.h.b16 %v3962
    %v4564 = vunpack.c.l.b16 %v3963
    %v4565 = vunpack.c.h.b16 %v3963
    %v4566 = vunpack.c.l.b16 %v3964
    %v4567 = vunpack.c.h.b16 %v3964
    %v4568 = vunpack.c.l.b16 %v3965
    %v4569 = vunpack.c.h.b16 %v3965
    %v4570 = vunpack.c.l.b16 %v3966
    %v4571 = vunpack.c.h.b16 %v3966
    %v4572 = vunpack.c.l.b16 %v3967
    %v4573 = vunpack.c.h.b16 %v3967
    %v4574 = vunpack.c.l.b16 %v3968
    %v4575 = vunpack.c.h.b16 %v3968
    %v4576 = vunpack.c.l.b16 %v3969
    %v4577 = vunpack.c.h.b16 %v3969
    %v4578 = vunpack.c.l.b16 %v3970
    %v4579 = vunpack.c.h.b16 %v3970
    %v4580 = vunpack.c.l.b16 %v3971
    %v4581 = vunpack.c.h.b16 %v3971
    %v4582 = vunpack.c.l.b16 %v3972
    %v4583 = vunpack.c.h.b16 %v3972
    %v4584 = vunpack.c.l.b16 %v3973
    %v4585 = vunpack.c.h.b16 %v3973
    %v4586 = vunpack.c.l.b16 %v3974
    %v4587 = vunpack.c.h.b16 %v3974
    %v4588 = vunpack.c.l.b16 %v3975
    %v4589 = vunpack.c.h.b16 %v3975
    %v4590 = vunpack.c.l.b16 %v3976
    %v4591 = vunpack.c.h.b16 %v3976
    %v4592 = vunpack.c.l.b16 %v3977
    %v4593 = vunpack.c.h.b16 %v3977
    %v4594 = vunpack.c.l.b16 %v3978
    %v4595 = vunpack.c.h.b16 %v3978
    %v4596 = vunpack.c.l.b16 %v3979
    %v4597 = vunpack.c.h.b16 %v3979
    %v4598 = vunpack.c.l.b16 %v3980
    %v4599 = vunpack.c.h.b16 %v3980
    %v4600 = vunpack.c.l.b16 %v3981
    %v4601 = vunpack.c.h.b16 %v3981
    %v4602 = vunpack.c.l.b16 %v3982
    %v4603 = vunpack.c.h.b16 %v3982
    %v4604 = vunpack.c.l.b16 %v3983
    %v4605 = vunpack.c.h.b16 %v3983
    %v4606 = vunpack.c.l.b16 %v3984
    %v4607 = vunpack.c.h.b16 %v3984
    %v4608 = vunpack.c.l.b16 %v3985
    %v4609 = vunpack.c.h.b16 %v3985
    %v4610 = vunpack.c.l.b16 %v3986
    %v4611 = vunpack.c.h.b16 %v3986
    %v4612 = vunpack.c.l.b16 %v3987
    %v4613 = vunpack.c.h.b16 %v3987
    %v4614 = vunpack.c.l.b16 %v3988
    %v4615 = vunpack.c.h.b16 %v3988
    %v4616 = vunpack.c.l.b16 %v3989
    %v4617 = vunpack.c.h.b16 %v3989
    %v4618 = vunpack.c.l.b16 %v3990
    %v4619 = vunpack.c.h.b16 %v3990
    %v4620 = vunpack.c.l.b16 %v3991
    %v4621 = vunpack.c.h.b16 %v3991
    %v4622 = vunpack.c.l.b16 %v3992
    %v4623 = vunpack.c.h.b16 %v3992
    %v4624 = vunpack.c.l.b16 %v3993
    %v4625 = vunpack.c.h.b16 %v3993
    %v4626 = vunpack.c.l.b16 %v3994
    %v4627 = vunpack.c.h.b16 %v3994
    %v4628 = vunpack.c.l.b16 %v3995
    %v4629 = vunpack.c.h.b16 %v3995
    %v4630 = vunpack.c.l.b16 %v3996
    %v4631 = vunpack.c.h.b16 %v3996
    %v4632 = vunpack.c.l.b16 %v3997
    %v4633 = vunpack.c.h.b16 %v3997
    %v4634 = vunpack.c.l.b16 %v3998
    %v4635 = vunpack.c.h.b16 %v3998
    %v4636 = vunpack.c.l.b16 %v3999
    %v4637 = vunpack.c.h.b16 %v3999
    %v4638 = vunpack.c.l.b16 %v4000
    %v4639 = vunpack.c.h.b16 %v4000
    %v4640 = vunpack.c.l.b16 %v4001
    %v4641 = vunpack.c.h.b16 %v4001
    %v4642 = vunpack.c.l.b16 %v4002
    %v4643 = vunpack.c.h.b16 %v4002
    %v4644 = vunpack.c.l.b16 %v4003
    %v4645 = vunpack.c.h.b16 %v4003
    %v4646 = vunpack.c.l.b16 %v4004
    %v4647 = vunpack.c.h.b16 %v4004
    %v4648 = vunpack.c.l.b16 %v4005
    %v4649 = vunpack.c.h.b16 %v4005
    %v4650 = vunpack.c.l.b16 %v4006
    %v4651 = vunpack.c.h.b16 %v4006
    %v4652 = vunpack.c.l.b16 %v4007
    %v4653 = vunpack.c.h.b16 %v4007
    %v4654 = vunpack.c.l.b16 %v4008
    %v4655 = vunpack.c.h.b16 %v4008
    %v4656 = vunpack.c.l.b16 %v4009
    %v4657 = vunpack.c.h.b16 %v4009
    %v4658 = vunpack.c.l.b16 %v4010
    %v4659 = vunpack.c.h.b16 %v4010
    %v4660 = vunpack.c.l.b16 %v4011
    %v4661 = vunpack.c.h.b16 %v4011
    %v4662 = vunpack.c.l.b16 %v4012
    %v4663 = vunpack.c.h.b16 %v4012
    %v4664 = vunpack.c.l.b16 %v4013
    %v4665 = vunpack.c.h.b16 %v4013
    %v4666 = vunpack.c.l.b16 %v4014
    %v4667 = vunpack.c.h.b16 %v4014
    %v4668 = vunpack.c.l.b16 %v4015
    %v4669 = vunpack.c.h.b16 %v4015
    %v4670 = vunpack.c.l.b16 %v4016
    %v4671 = vunpack.c.h.b16 %v4016
    %v4672 = vunpack.c.l.b16 %v4017
    %v4673 = vunpack.c.h.b16 %v4017
    %v4674 = vunpack.c.l.b16 %v4018
    %v4675 = vunpack.c.h.b16 %v4018
    %v4676 = vunpack.c.l.b16 %v4019
    %v4677 = vunpack.c.h.b16 %v4019
    %v4678 = vunpack.c.l.b16 %v4020
    %v4679 = vunpack.c.h.b16 %v4020
    %v4680 = vunpack.c.l.b16 %v4021
    %v4681 = vunpack.c.h.b16 %v4021
    %v4682 = vunpack.c.l.b16 %v4022
    %v4683 = vunpack.c.h.b16 %v4022
    %v4684 = vunpack.c.l.b16 %v4023
    %v4685 = vunpack.c.h.b16 %v4023
    %v4686 = vunpack.c.l.b16 %v4024
    %v4687 = vunpack.c.h.b16 %v4024
    %v4688 = vunpack.c.l.b16 %v4025
    %v4689 = vunpack.c.h.b16 %v4025
    %v4690 = vunpack.c.l.b16 %v4026
    %v4691 = vunpack.c.h.b16 %v4026
    %v4692 = vunpack.c.l.b16 %v4027
    %v4693 = vunpack.c.h.b16 %v4027
    %v4694 = vunpack.c.l.b16 %v4028
    %v4695 = vunpack.c.h.b16 %v4028
    %v4696 = vunpack.c.l.b16 %v4029
    %v4697 = vunpack.c.h.b16 %v4029
    %v4698 = vunpack.c.l.b16 %v4030
    %v4699 = vunpack.c.h.b16 %v4030
    %v4700 = vunpack.c.l.b16 %v4031
    %v4701 = vunpack.c.h.b16 %v4031
    %v4702 = vunpack.c.l.b16 %v4032
    %v4703 = vunpack.c.h.b16 %v4032
    %v4704 = vunpack.c.l.b16 %v4033
    %v4705 = vunpack.c.h.b16 %v4033
    %v4706 = vunpack.c.l.b16 %v4034
    %v4707 = vunpack.c.h.b16 %v4034
    %v4708 = vunpack.c.l.b16 %v4035
    %v4709 = vunpack.c.h.b16 %v4035
    %v4710 = vunpack.c.l.b16 %v4036
    %v4711 = vunpack.c.h.b16 %v4036
    %v4712 = vunpack.c.l.b16 %v4037
    %v4713 = vunpack.c.h.b16 %v4037
    %v4714 = vunpack.c.l.b16 %v4038
    %v4715 = vunpack.c.h.b16 %v4038
    %v4716 = vunpack.c.l.b16 %v4039
    %v4717 = vunpack.c.h.b16 %v4039
    %v4718 = vunpack.c.l.b16 %v4040
    %v4719 = vunpack.c.h.b16 %v4040
    %v4720 = vunpack.c.l.b16 %v4041
    %v4721 = vunpack.c.h.b16 %v4041
    %v4722 = vunpack.c.l.b16 %v4042
    %v4723 = vunpack.c.h.b16 %v4042
    %v4724 = vunpack.c.l.b16 %v4043
    %v4725 = vunpack.c.h.b16 %v4043
    %v4726 = vunpack.c.l.b16 %v4044
    %v4727 = vunpack.c.h.b16 %v4044
    %v4728 = vunpack.c.l.b16 %v4045
    %v4729 = vunpack.c.h.b16 %v4045
    %v4730 = vunpack.c.l.b16 %v4046
    %v4731 = vunpack.c.h.b16 %v4046
    %v4732 = vunpack.c.l.b16 %v4047
    %v4733 = vunpack.c.h.b16 %v4047
    %v4734 = vunpack.c.l.b16 %v4048
    %v4735 = vunpack.c.h.b16 %v4048
    %v4736 = vunpack.c.l.b16 %v4049
    %v4737 = vunpack.c.h.b16 %v4049
    %v4738 = vunpack.c.l.b16 %v4050
    %v4739 = vunpack.c.h.b16 %v4050
    %v4740 = vunpack.c.l.b16 %v4051
    %v4741 = vunpack.c.h.b16 %v4051
    %v4742 = vunpack.c.l.b16 %v4052
    %v4743 = vunpack.c.h.b16 %v4052
    %v4744 = vunpack.c.l.b16 %v4053
    %v4745 = vunpack.c.h.b16 %v4053
    %v4746 = vunpack.c.l.b16 %v4054
    %v4747 = vunpack.c.h.b16 %v4054
    %v4748 = vunpack.c.l.b16 %v4055
    %v4749 = vunpack.c.h.b16 %v4055
    %v4750 = vunpack.c.l.b16 %v4056
    %v4751 = vunpack.c.h.b16 %v4056
    %v4752 = vunpack.c.l.b16 %v4057
    %v4753 = vunpack.c.h.b16 %v4057
    %v4754 = vunpack.c.l.b16 %v4058
    %v4755 = vunpack.c.h.b16 %v4058
    %v4756 = vunpack.c.l.b16 %v4059
    %v4757 = vunpack.c.h.b16 %v4059
    %v4758 = vunpack.c.l.b16 %v4060
    %v4759 = vunpack.c.h.b16 %v4060
    %v4760 = vunpack.c.l.b16 %v4061
    %v4761 = vunpack.c.h.b16 %v4061
    %v4762 = vunpack.c.l.b16 %v4062
    %v4763 = vunpack.c.h.b16 %v4062
    %v4764 = vunpack.c.l.b16 %v4063
    %v4765 = vunpack.c.h.b16 %v4063
    %v4766 = vunpack.c.l.b16 %v4064
    %v4767 = vunpack.c.h.b16 %v4064
    %v4768 = vunpack.c.l.b16 %v4065
    %v4769 = vunpack.c.h.b16 %v4065
    %v4770 = vunpack.c.l.b16 %v4066
    %v4771 = vunpack.c.h.b16 %v4066
    %v4772 = vunpack.c.l.b16 %v4067
    %v4773 = vunpack.c.h.b16 %v4067
    %v4774 = vunpack.c.l.b16 %v4068
    %v4775 = vunpack.c.h.b16 %v4068
    %v4776 = vunpack.c.l.b16 %v4069
    %v4777 = vunpack.c.h.b16 %v4069
    %v4778 = vunpack.c.l.b16 %v4070
    %v4779 = vunpack.c.h.b16 %v4070
    %v4780 = vunpack.c.l.b16 %v4071
    %v4781 = vunpack.c.h.b16 %v4071
    %v4782 = vunpack.c.l.b16 %v4072
    %v4783 = vunpack.c.h.b16 %v4072
    %v4784 = vunpack.c.l.b16 %v4073
    %v4785 = vunpack.c.h.b16 %v4073
    %v4786 = vunpack.c.l.b16 %v4074
    %v4787 = vunpack.c.h.b16 %v4074
    %v4788 = vunpack.c.l.b16 %v4075
    %v4789 = vunpack.c.h.b16 %v4075
    %v4790 = vunpack.c.l.b16 %v4076
    %v4791 = vunpack.c.h.b16 %v4076
    %v4792 = vunpack.c.l.b16 %v4077
    %v4793 = vunpack.c.h.b16 %v4077
    %v4794 = vunpack.c.l.b16 %v4078
    %v4795 = vunpack.c.h.b16 %v4078
    %v4796 = vunpack.c.l.b16 %v4079
    %v4797 = vunpack.c.h.b16 %v4079
    %v4798 = vunpack.c.l.b16 %v4080
    %v4799 = vunpack.c.h.b16 %v4080
    %v4800 = vunpack.c.l.b16 %v4081
    %v4801 = vunpack.c.h.b16 %v4081
    %v4802 = vunpack.c.l.b16 %v4082
    %v4803 = vunpack.c.h.b16 %v4082
    %v4804 = vunpack.c.l.b16 %v4083
    %v4805 = vunpack.c.h.b16 %v4083
    %v4806 = vunpack.c.l.b16 %v4084
    %v4807 = vunpack.c.h.b16 %v4084
    %v4808 = vunpack.c.l.b16 %v4085
    %v4809 = vunpack.c.h.b16 %v4085
    %v4810 = vunpack.c.l.b16 %v4086
    %v4811 = vunpack.c.h.b16 %v4086
    %v4812 = vunpack.c.l.b16 %v4087
    %v4813 = vunpack.c.h.b16 %v4087
    %v4814 = vunpack.c.l.b16 %v4088
    %v4815 = vunpack.c.h.b16 %v4088
    %v4816 = vunpack.c.l.b16 %v4089
    %v4817 = vunpack.c.h.b16 %v4089
    %v4818 = vunpack.c.l.b16 %v4090
    %v4819 = vunpack.c.h.b16 %v4090
    %v4820 = vunpack.c.l.b16 %v4091
    %v4821 = vunpack.c.h.b16 %v4091
    %v4822 = vunpack.c.l.b16 %v4092
    %v4823 = vunpack.c.h.b16 %v4092
    %v4824 = vunpack.c.l.b16 %v4093
    %v4825 = vunpack.c.h.b16 %v4093
    %v4826 = vunpack.c.l.b16 %v4094
    %v4827 = vunpack.c.h.b16 %v4094
    %v4828 = vunpack.c.l.b16 %v4095
    %v4829 = vunpack.c.h.b16 %v4095
    %v4830 = vunpack.c.l.b16 %v4096
    %v4831 = vunpack.c.h.b16 %v4096
    %v4832 = vunpack.c.l.b16 %v4097
    %v4833 = vunpack.c.h.b16 %v4097
    %v4834 = vunpack.c.l.b16 %v4098
    %v4835 = vunpack.c.h.b16 %v4098
    %v4836 = vunpack.c.l.b16 %v4099
    %v4837 = vunpack.c.h.b16 %v4099
    %v4838 = vunpack.c.l.b16 %v4100
    %v4839 = vunpack.c.h.b16 %v4100
    %v4840 = vunpack.c.l.b16 %v4101
    %v4841 = vunpack.c.h.b16 %v4101
    %v4842 = vunpack.c.l.b16 %v4102
    %v4843 = vunpack.c.h.b16 %v4102
    %v4844 = vunpack.c.l.b16 %v4103
    %v4845 = vunpack.c.h.b16 %v4103
    %v4846 = vunpack.c.l.b16 %v4104
    %v4847 = vunpack.c.h.b16 %v4104
    %v4848 = vunpack.c.l.b16 %v4105
    %v4849 = vunpack.c.h.b16 %v4105
    %v4850 = vunpack.c.l.b16 %v4106
    %v4851 = vunpack.c.h.b16 %v4106
    %v4852 = vunpack.c.l.b16 %v4107
    %v4853 = vunpack.c.h.b16 %v4107
    %v4854 = vunpack.c.l.b16 %v4108
    %v4855 = vunpack.c.h.b16 %v4108
    %v4856 = vunpack.c.l.b16 %v4109
    %v4857 = vunpack.c.h.b16 %v4109
    %v4858 = vunpack.c.l.b16 %v4110
    %v4859 = vunpack.c.h.b16 %v4110
    %v4860 = vunpack.c.l.b16 %v4111
    %v4861 = vunpack.c.h.b16 %v4111
    %v4862 = vunpack.c.l.b16 %v4112
    %v4863 = vunpack.c.h.b16 %v4112
    %v4864 = vunpack.c.l.b16 %v4113
    %v4865 = vunpack.c.h.b16 %v4113
    %v4866 = vunpack.c.l.b16 %v4114
    %v4867 = vunpack.c.h.b16 %v4114
    %v4868 = vunpack.c.l.b16 %v4115
    %v4869 = vunpack.c.h.b16 %v4115
    %v4870 = vunpack.c.l.b16 %v4116
    %v4871 = vunpack.c.h.b16 %v4116
    %v4872 = vunpack.c.l.b16 %v4117
    %v4873 = vunpack.c.h.b16 %v4117
    %v4874 = vunpack.c.l.b16 %v4118
    %v4875 = vunpack.c.h.b16 %v4118
    %v4876 = vunpack.c.l.b16 %v4119
    %v4877 = vunpack.c.h.b16 %v4119
    %v4878 = vunpack.c.l.b16 %v4120
    %v4879 = vunpack.c.h.b16 %v4120
    %v4880 = vunpack.c.l.b16 %v4121
    %v4881 = vunpack.c.h.b16 %v4121
    %v4882 = vunpack.c.l.b16 %v4122
    %v4883 = vunpack.c.h.b16 %v4122
    %v4884 = vunpack.c.l.b16 %v4123
    %v4885 = vunpack.c.h.b16 %v4123
    %v4886 = vunpack.c.l.b16 %v4124
    %v4887 = vunpack.c.h.b16 %v4124
    %v4888 = vunpack.c.l.b16 %v4125
    %v4889 = vunpack.c.h.b16 %v4125
    %v4890 = vunpack.c.l.b16 %v4126
    %v4891 = vunpack.c.h.b16 %v4126
    %v4892 = vunpack.c.l.b16 %v4127
    %v4893 = vunpack.c.h.b16 %v4127
    %v4894 = vunpack.c.l.b16 %v4128
    %v4895 = vunpack.c.h.b16 %v4128
    %v4896 = vunpack.c.l.b16 %v4129
    %v4897 = vunpack.c.h.b16 %v4129
    %v4898 = vunpack.c.l.b16 %v4130
    %v4899 = vunpack.c.h.b16 %v4130
    %v4900 = vunpack.c.l.b16 %v4131
    %v4901 = vunpack.c.h.b16 %v4131
    %v4902 = vunpack.c.l.b16 %v4132
    %v4903 = vunpack.c.h.b16 %v4132
    %v4904 = vunpack.c.l.b16 %v4133
    %v4905 = vunpack.c.h.b16 %v4133
    %v4906 = vunpack.c.l.b16 %v4134
    %v4907 = vunpack.c.h.b16 %v4134
    %v4908 = vunpack.c.l.b16 %v4135
    %v4909 = vunpack.c.h.b16 %v4135
    %v4910 = vunpack.c.l.b16 %v4136
    %v4911 = vunpack.c.h.b16 %v4136
    %v4912 = vunpack.c.l.b16 %v4137
    %v4913 = vunpack.c.h.b16 %v4137
    %v4914 = vunpack.c.l.b16 %v4138
    %v4915 = vunpack.c.h.b16 %v4138
    %v4916 = vunpack.c.l.b16 %v4139
    %v4917 = vunpack.c.h.b16 %v4139
    %v4918 = vunpack.c.l.b16 %v4140
    %v4919 = vunpack.c.h.b16 %v4140
    %v4920 = vunpack.c.l.b16 %v4141
    %v4921 = vunpack.c.h.b16 %v4141
    %v4922 = vunpack.c.l.b16 %v4142
    %v4923 = vunpack.c.h.b16 %v4142
    %v4924 = vunpack.c.l.b16 %v4143
    %v4925 = vunpack.c.h.b16 %v4143
    %v4926 = vunpack.c.l.b16 %v4144
    %v4927 = vunpack.c.h.b16 %v4144
    %v4928 = vunpack.c.l.b16 %v4145
    %v4929 = vunpack.c.h.b16 %v4145
    %v4930 = vunpack.c.l.b16 %v4146
    %v4931 = vunpack.c.h.b16 %v4146
    %v4932 = vunpack.c.l.b16 %v4147
    %v4933 = vunpack.c.h.b16 %v4147
    %v4934 = vunpack.c.l.b16 %v4148
    %v4935 = vunpack.c.h.b16 %v4148
    %v4936 = vunpack.c.l.b16 %v4149
    %v4937 = vunpack.c.h.b16 %v4149
    %v4938 = vunpack.c.l.b16 %v4150
    %v4939 = vunpack.c.h.b16 %v4150
    %v4940 = vunpack.c.l.b16 %v4151
    %v4941 = vunpack.c.h.b16 %v4151
    %v4942 = vpack.c.b16 %v4434, %v4430
    %v4943 = vpack.c.b16 %v4435, %v4431
    %v4944 = vpack.c.b16 %v4436, %v4432
    %v4945 = vpack.c.b16 %v4437, %v4433
    %v4946 = vpack.c.b16 %v4442, %v4438
    %v4947 = vpack.c.b16 %v4443, %v4439
    %v4948 = vpack.c.b16 %v4444, %v4440
    %v4949 = vpack.c.b16 %v4445, %v4441
    %v4950 = vpack.c.b16 %v4450, %v4446
    %v4951 = vpack.c.b16 %v4451, %v4447
    %v4952 = vpack.c.b16 %v4452, %v4448
    %v4953 = vpack.c.b16 %v4453, %v4449
    %v4954 = vpack.c.b16 %v4458, %v4454
    %v4955 = vpack.c.b16 %v4459, %v4455
    %v4956 = vpack.c.b16 %v4460, %v4456
    %v4957 = vpack.c.b16 %v4461, %v4457
    %v4958 = vpack.c.b16 %v4466, %v4462
    %v4959 = vpack.c.b16 %v4467, %v4463
    %v4960 = vpack.c.b16 %v4468, %v4464
    %v4961 = vpack.c.b16 %v4469, %v4465
    %v4962 = vpack.c.b16 %v4474, %v4470
    %v4963 = vpack.c.b16 %v4475, %v4471
    %v4964 = vpack.c.b16 %v4476, %v4472
    %v4965 = vpack.c.b16 %v4477, %v4473
    %v4966 = vpack.c.b16 %v4482, %v4478
    %v4967 = vpack.c.b16 %v4483, %v4479
    %v4968 = vpack.c.b16 %v4484, %v4480
    %v4969 = vpack.c.b16 %v4485, %v4481
    %v4970 = vpack.c.b16 %v4490, %v4486
    %v4971 = vpack.c.b16 %v4491, %v4487
    %v4972 = vpack.c.b16 %v4492, %v4488
    %v4973 = vpack.c.b16 %v4493, %v4489
    %v4974 = vpack.c.b16 %v4498, %v4494
    %v4975 = vpack.c.b16 %v4499, %v4495
    %v4976 = vpack.c.b16 %v4500, %v4496
    %v4977 = vpack.c.b16 %v4501, %v4497
    %v4978 = vpack.c.b16 %v4506, %v4502
    %v4979 = vpack.c.b16 %v4507, %v4503
    %v4980 = vpack.c.b16 %v4508, %v4504
    %v4981 = vpack.c.b16 %v4509, %v4505
    %v4982 = vpack.c.b16 %v4514, %v4510
    %v4983 = vpack.c.b16 %v4515, %v4511
    %v4984 = vpack.c.b16 %v4516, %v4512
    %v4985 = vpack.c.b16 %v4517, %v4513
    %v4986 = vpack.c.b16 %v4522, %v4518
    %v4987 = vpack.c.b16 %v4523, %v4519
    %v4988 = vpack.c.b16 %v4524, %v4520
    %v4989 = vpack.c.b16 %v4525, %v4521
    %v4990 = vpack.c.b16 %v4530, %v4526
    %v4991 = vpack.c.b16 %v4531, %v4527
    %v4992 = vpack.c.b16 %v4532, %v4528
    %v4993 = vpack.c.b16 %v4533, %v4529
    %v4994 = vpack.c.b16 %v4538, %v4534
    %v4995 = vpack.c.b16 %v4539, %v4535
    %v4996 = vpack.c.b16 %v4540, %v4536
    %v4997 = vpack.c.b16 %v4541, %v4537
    %v4998 = vpack.c.b16 %v4546, %v4542
    %v4999 = vpack.c.b16 %v4547, %v4543
    %v5000 = vpack.c.b16 %v4548, %v4544
    %v5001 = vpack.c.b16 %v4549, %v4545
    %v5002 = vpack.c.b16 %v4554, %v4550
    %v5003 = vpack.c.b16 %v4555, %v4551
    %v5004 = vpack.c.b16 %v4556, %v4552
    %v5005 = vpack.c.b16 %v4557, %v4553
    %v5006 = vpack.c.b16 %v4562, %v4558
    %v5007 = vpack.c.b16 %v4563, %v4559
    %v5008 = vpack.c.b16 %v4564, %v4560
    %v5009 = vpack.c.b16 %v4565, %v4561
    %v5010 = vpack.c.b16 %v4570, %v4566
    %v5011 = vpack.c.b16 %v4571, %v4567
    %v5012 = vpack.c.b16 %v4572, %v4568
    %v5013 = vpack.c.b16 %v4573, %v4569
    %v5014 = vpack.c.b16 %v4578, %v4574
    %v5015 = vpack.c.b16 %v4579, %v4575
    %v5016 = vpack.c.b16 %v4580, %v4576
    %v5017 = vpack.c.b16 %v4581, %v4577
    %v5018 = vpack.c.b16 %v4586, %v4582
    %v5019 = vpack.c.b16 %v4587, %v4583
    %v5020 = vpack.c.b16 %v4588, %v4584
    %v5021 = vpack.c.b16 %v4589, %v4585
    %v5022 = vpack.c.b16 %v4594, %v4590
    %v5023 = vpack.c.b16 %v4595, %v4591
    %v5024 = vpack.c.b16 %v4596, %v4592
    %v5025 = vpack.c.b16 %v4597, %v4593
    %v5026 = vpack.c.b16 %v4602, %v4598
    %v5027 = vpack.c.b16 %v4603, %v4599
    %v5028 = vpack.c.b16 %v4604, %v4600
    %v5029 = vpack.c.b16 %v4605, %v4601
    %v5030 = vpack.c.b16 %v4610, %v4606
    %v5031 = vpack.c.b16 %v4611, %v4607
    %v5032 = vpack.c.b16 %v4612, %v4608
    %v5033 = vpack.c.b16 %v4613, %v4609
    %v5034 = vpack.c.b16 %v4618, %v4614
    %v5035 = vpack.c.b16 %v4619, %v4615
    %v5036 = vpack.c.b16 %v4620, %v4616
    %v5037 = vpack.c.b16 %v4621, %v4617
    %v5038 = vpack.c.b16 %v4626, %v4622
    %v5039 = vpack.c.b16 %v4627, %v4623
    %v5040 = vpack.c.b16 %v4628, %v4624
    %v5041 = vpack.c.b16 %v4629, %v4625
    %v5042 = vpack.c.b16 %v4634, %v4630
    %v5043 = vpack.c.b16 %v4635, %v4631
    %v5044 = vpack.c.b16 %v4636, %v4632
    %v5045 = vpack.c.b16 %v4637, %v4633
    %v5046 = vpack.c.b16 %v4642, %v4638
    %v5047 = vpack.c.b16 %v4643, %v4639
    %v5048 = vpack.c.b16 %v4644, %v4640
    %v5049 = vpack.c.b16 %v4645, %v4641
    %v5050 = vpack.c.b16 %v4650, %v4646
    %v5051 = vpack.c.b16 %v4651, %v4647
    %v5052 = vpack.c.b16 %v4652, %v4648
    %v5053 = vpack.c.b16 %v4653, %v4649
    %v5054 = vpack.c.b16 %v4658, %v4654
    %v5055 = vpack.c.b16 %v4659, %v4655
    %v5056 = vpack.c.b16 %v4660, %v4656
    %v5057 = vpack.c.b16 %v4661, %v4657
    %v5058 = vpack.c.b16 %v4666, %v4662
    %v5059 = vpack.c.b16 %v4667, %v4663
    %v5060 = vpack.c.b16 %v4668, %v4664
    %v5061 = vpack.c.b16 %v4669, %v4665
    %v5062 = vpack.c.b16 %v4674, %v4670
    %v5063 = vpack.c.b16 %v4675, %v4671
    %v5064 = vpack.c.b16 %v4676, %v4672
    %v5065 = vpack.c.b16 %v4677, %v4673
    %v5066 = vpack.c.b16 %v4682, %v4678
    %v5067 = vpack.c.b16 %v4683, %v4679
    %v5068 = vpack.c.b16 %v4684, %v4680
    %v5069 = vpack.c.b16 %v4685, %v4681
    %v5070 = vpack.c.b16 %v4690, %v4686
    %v5071 = vpack.c.b16 %v4691, %v4687
    %v5072 = vpack.c.b16 %v4692, %v4688
    %v5073 = vpack.c.b16 %v4693, %v4689
    %v5074 = vpack.c.b16 %v4698, %v4694
    %v5075 = vpack.c.b16 %v4699, %v4695
    %v5076 = vpack.c.b16 %v4700, %v4696
    %v5077 = vpack.c.b16 %v4701, %v4697
    %v5078 = vpack.c.b16 %v4706, %v4702
    %v5079 = vpack.c.b16 %v4707, %v4703
    %v5080 = vpack.c.b16 %v4708, %v4704
    %v5081 = vpack.c.b16 %v4709, %v4705
    %v5082 = vpack.c.b16 %v4714, %v4710
    %v5083 = vpack.c.b16 %v4715, %v4711
    %v5084 = vpack.c.b16 %v4716, %v4712
    %v5085 = vpack.c.b16 %v4717, %v4713
    %v5086 = vpack.c.b16 %v4722, %v4718
    %v5087 = vpack.c.b16 %v4723, %v4719
    %v5088 = vpack.c.b16 %v4724, %v4720
    %v5089 = vpack.c.b16 %v4725, %v4721
    %v5090 = vpack.c.b16 %v4730, %v4726
    %v5091 = vpack.c.b16 %v4731, %v4727
    %v5092 = vpack.c.b16 %v4732, %v4728
    %v5093 = vpack.c.b16 %v4733, %v4729
    %v5094 = vpack.c.b16 %v4738, %v4734
    %v5095 = vpack.c.b16 %v4739, %v4735
    %v5096 = vpack.c.b16 %v4740, %v4736
    %v5097 = vpack.c.b16 %v4741, %v4737
    %v5098 = vpack.c.b16 %v4746, %v4742
    %v5099 = vpack.c.b16 %v4747, %v4743
    %v5100 = vpack.c.b16 %v4748, %v4744
    %v5101 = vpack.c.b16 %v4749, %v4745
    %v5102 = vpack.c.b16 %v4754, %v4750
    %v5103 = vpack.c.b16 %v4755, %v4751
    %v5104 = vpack.c.b16 %v4756, %v4752
    %v5105 = vpack.c.b16 %v4757, %v4753
    %v5106 = vpack.c.b16 %v4762, %v4758
    %v5107 = vpack.c.b16 %v4763, %v4759
    %v5108 = vpack.c.b16 %v4764, %v4760
    %v5109 = vpack.c.b16 %v4765, %v4761
    %v5110 = vpack.c.b16 %v4770, %v4766
    %v5111 = vpack.c.b16 %v4771, %v4767
    %v5112 = vpack.c.b16 %v4772, %v4768
    %v5113 = vpack.c.b16 %v4773, %v4769
    %v5114 = vpack.c.b16 %v4778, %v4774
    %v5115 = vpack.c.b16 %v4779, %v4775
    %v5116 = vpack.c.b16 %v4780, %v4776
    %v5117 = vpack.c.b16 %v4781, %v4777
    %v5118 = vpack.c.b16 %v4786, %v4782
    %v5119 = vpack.c.b16 %v4787, %v4783
    %v5120 = vpack.c.b16 %v4788, %v4784
    %v5121 = vpack.c.b16 %v4789, %v4785
    %v5122 = vpack.c.b16 %v4794, %v4790
    %v5123 = vpack.c.b16 %v4795, %v4791
    %v5124 = vpack.c.b16 %v4796, %v4792
    %v5125 = vpack.c.b16 %v4797, %v4793
    %v5126 = vpack.c.b16 %v4802, %v4798
    %v5127 = vpack.c.b16 %v4803, %v4799
    %v5128 = vpack.c.b16 %v4804, %v4800
    %v5129 = vpack.c.b16 %v4805, %v4801
    %v5130 = vpack.c.b16 %v4810, %v4806
    %v5131 = vpack.c.b16 %v4811, %v4807
    %v5132 = vpack.c.b16 %v4812, %v4808
    %v5133 = vpack.c.b16 %v4813, %v4809
    %v5134 = vpack.c.b16 %v4818, %v4814
    %v5135 = vpack.c.b16 %v4819, %v4815
    %v5136 = vpack.c.b16 %v4820, %v4816
    %v5137 = vpack.c.b16 %v4821, %v4817
    %v5138 = vpack.c.b16 %v4826, %v4822
    %v5139 = vpack.c.b16 %v4827, %v4823
    %v5140 = vpack.c.b16 %v4828, %v4824
    %v5141 = vpack.c.b16 %v4829, %v4825
    %v5142 = vpack.c.b16 %v4834, %v4830
    %v5143 = vpack.c.b16 %v4835, %v4831
    %v5144 = vpack.c.b16 %v4836, %v4832
    %v5145 = vpack.c.b16 %v4837, %v4833
    %v5146 = vpack.c.b16 %v4842, %v4838
    %v5147 = vpack.c.b16 %v4843, %v4839
    %v5148 = vpack.c.b16 %v4844, %v4840
    %v5149 = vpack.c.b16 %v4845, %v4841
    %v5150 = vpack.c.b16 %v4850, %v4846
    %v5151 = vpack.c.b16 %v4851, %v4847
    %v5152 = vpack.c.b16 %v4852, %v4848
    %v5153 = vpack.c.b16 %v4853, %v4849
    %v5154 = vpack.c.b16 %v4858, %v4854
    %v5155 = vpack.c.b16 %v4859, %v4855
    %v5156 = vpack.c.b16 %v4860, %v4856
    %v5157 = vpack.c.b16 %v4861, %v4857
    %v5158 = vpack.c.b16 %v4866, %v4862
    %v5159 = vpack.c.b16 %v4867, %v4863
    %v5160 = vpack.c.b16 %v4868, %v4864
    %v5161 = vpack.c.b16 %v4869, %v4865
    %v5162 = vpack.c.b16 %v4874, %v4870
    %v5163 = vpack.c.b16 %v4875, %v4871
    %v5164 = vpack.c.b16 %v4876, %v4872
    %v5165 = vpack.c.b16 %v4877, %v4873
    %v5166 = vpack.c.b16 %v4882, %v4878
    %v5167 = vpack.c.b16 %v4883, %v4879
    %v5168 = vpack.c.b16 %v4884, %v4880
    %v5169 = vpack.c.b16 %v4885, %v4881
    %v5170 = vpack.c.b16 %v4890, %v4886
    %v5171 = vpack.c.b16 %v4891, %v4887
    %v5172 = vpack.c.b16 %v4892, %v4888
    %v5173 = vpack.c.b16 %v4893, %v4889
    %v5174 = vpack.c.b16 %v4898, %v4894
    %v5175 = vpack.c.b16 %v4899, %v4895
    %v5176 = vpack.c.b16 %v4900, %v4896
    %v5177 = vpack.c.b16 %v4901, %v4897
    %v5178 = vpack.c.b16 %v4906, %v4902
    %v5179 = vpack.c.b16 %v4907, %v4903
    %v5180 = vpack.c.b16 %v4908, %v4904
    %v5181 = vpack.c.b16 %v4909, %v4905
    %v5182 = vpack.c.b16 %v4914, %v4910
    %v5183 = vpack.c.b16 %v4915, %v4911
    %v5184 = vpack.c.b16 %v4916, %v4912
    %v5185 = vpack.c.b16 %v4917, %v4913
    %v5186 = vpack.c.b16 %v4922, %v4918
    %v5187 = vpack.c.b16 %v4923, %v4919
    %v5188 = vpack.c.b16 %v4924, %v4920
    %v5189 = vpack.c.b16 %v4925, %v4921
    %v5190 = vpack.c.b16 %v4930, %v4926
    %v5191 = vpack.c.b16 %v4931, %v4927
    %v5192 = vpack.c.b16 %v4932, %v4928
    %v5193 = vpack.c.b16 %v4933, %v4929
    %v5194 = vpack.c.b16 %v4938, %v4934
    %v5195 = vpack.c.b16 %v4939, %v4935
    %v5196 = vpack.c.b16 %v4940, %v4936
    %v5197 = vpack.c.b16 %v4941, %v4937
    %5454 = vmatprep.subr.bf16.mxu0 %v4971
    %5455 = vmatpush1.bf16.msra.mxu0 %v4970
    %5456 = vmatprep.subr.bf16.mxu0 %v4967
    %5457 = vmatpush1.bf16.msra.mxu0 %v4966
    %5458 = vmatprep.subr.bf16.mxu0 %v4963
    %5459 = vmatpush1.bf16.msra.mxu0 %v4962
    %5460 = vmatprep.subr.bf16.mxu0 %v4959
    %5461 = vmatpush1.bf16.msra.mxu0 %v4958
    %5462 = vmatprep.subr.bf16.mxu0 %v4955
    %5463 = vmatpush1.bf16.msra.mxu0 %v4954
    %5464 = vmatprep.subr.bf16.mxu0 %v4951
    %5465 = vmatpush1.bf16.msra.mxu0 %v4950
    %5466 = vmatprep.subr.bf16.mxu0 %v4947
    %5467 = vmatpush1.bf16.msra.mxu0 %v4946
    %5468 = vmatprep.subr.bf16.mxu0 %v4943
    %5469 = vmatpush1.bf16.msra.mxu0 %v4942
    %5470 = vmatprep.subr.bf16.mxu0 %v5003
    %5471 = vmatpush2.bf16.msra.mxu0 %v5002
    %5472 = vmatprep.subr.bf16.mxu0 %v4999
    %5473 = vmatpush2.bf16.msra.mxu0 %v4998
    %5474 = vmatprep.subr.bf16.mxu0 %v4995
    %5475 = vmatpush2.bf16.msra.mxu0 %v4994
    %5476 = vmatprep.subr.bf16.mxu0 %v4991
    %5477 = vmatpush2.bf16.msra.mxu0 %v4990
    %5478 = vmatprep.subr.bf16.mxu0 %v4987
    %5479 = vmatpush2.bf16.msra.mxu0 %v4986
    %5480 = vmatprep.subr.bf16.mxu0 %v4983
    %5481 = vmatpush2.bf16.msra.mxu0 %v4982
    %5482 = vmatprep.subr.bf16.mxu0 %v4979
    %5483 = vmatpush2.bf16.msra.mxu0 %v4978
    %5484 = vmatprep.subr.bf16.mxu0 %v4975
    %5485 = vmatpush2.bf16.msra.mxu0 %v4974
    %5486 = vmatprep.mubr.bf16.mxu0 %v3889
    %5487 = vmatmul.mubr.bf16.gmra.mxu0 %v3888
    %v5488 = vpop.f32.mrf.mxu0
    %v5489 = vadd.f32 %v4157, %v5488
    %v5490 = vpop.f32.mrf.mxu0
    %v5491 = vadd.f32 %v4161, %v5490
    %v5492 = vpop.f32.mrf.mxu0
    %v5493 = vadd.f32 %v4157, %v5492
    %v5494 = vpop.f32.mrf.mxu0
    %v5495 = vadd.f32 %v4161, %v5494
    %5496 = vdwg.mxu0
    %5497 = vmatprep.subr.bf16.mxu0 %v5035
    %5498 = vmatpush1.bf16.msra.mxu0 %v5034
    %5499 = vmatprep.subr.bf16.mxu0 %v5031
    %5500 = vmatpush1.bf16.msra.mxu0 %v5030
    %5501 = vmatprep.subr.bf16.mxu0 %v5027
    %5502 = vmatpush1.bf16.msra.mxu0 %v5026
    %5503 = vmatprep.subr.bf16.mxu0 %v5023
    %5504 = vmatpush1.bf16.msra.mxu0 %v5022
    %5505 = vmatprep.subr.bf16.mxu0 %v5019
    %5506 = vmatpush1.bf16.msra.mxu0 %v5018
    %5507 = vmatprep.subr.bf16.mxu0 %v5015
    %5508 = vmatpush1.bf16.msra.mxu0 %v5014
    %5509 = vmatprep.subr.bf16.mxu0 %v5011
    %5510 = vmatpush1.bf16.msra.mxu0 %v5010
    %5511 = vmatprep.subr.bf16.mxu0 %v5007
    %5512 = vmatpush1.bf16.msra.mxu0 %v5006
    %5513 = vmatprep.subr.bf16.mxu0 %v5067
    %5514 = vmatpush2.bf16.msra.mxu0 %v5066
    %5515 = vmatprep.subr.bf16.mxu0 %v5063
    %5516 = vmatpush2.bf16.msra.mxu0 %v5062
    %5517 = vmatprep.subr.bf16.mxu0 %v5059
    %5518 = vmatpush2.bf16.msra.mxu0 %v5058
    %5519 = vmatprep.subr.bf16.mxu0 %v5055
    %5520 = vmatpush2.bf16.msra.mxu0 %v5054
    %5521 = vmatprep.subr.bf16.mxu0 %v5051
    %5522 = vmatpush2.bf16.msra.mxu0 %v5050
    %5523 = vmatprep.subr.bf16.mxu0 %v5047
    %5524 = vmatpush2.bf16.msra.mxu0 %v5046
    %5525 = vmatprep.subr.bf16.mxu0 %v5043
    %5526 = vmatpush2.bf16.msra.mxu0 %v5042
    %5527 = vmatprep.subr.bf16.mxu0 %v5039
    %5528 = vmatpush2.bf16.msra.mxu0 %v5038
    %5529 = vmatprep.mubr.bf16.mxu0 %v3891
    %5530 = vmatmul.mubr.bf16.gmra.mxu0 %v3890
    %v5531 = vpop.f32.mrf.mxu0
    %v5532 = vadd.f32 %v5489, %v5531
    %v5533 = vpop.f32.mrf.mxu0
    %v5534 = vadd.f32 %v5491, %v5533
    %v5535 = vpop.f32.mrf.mxu0
    %v5536 = vadd.f32 %v5493, %v5535
    %v5537 = vpop.f32.mrf.mxu0
    %v5538 = vadd.f32 %v5495, %v5537
    %5539 = vdwg.mxu0
    %5540 = vmatprep.subr.bf16.mxu0 %v5099
    %5541 = vmatpush1.bf16.msra.mxu0 %v5098
    %5542 = vmatprep.subr.bf16.mxu0 %v5095
    %5543 = vmatpush1.bf16.msra.mxu0 %v5094
    %5544 = vmatprep.subr.bf16.mxu0 %v5091
    %5545 = vmatpush1.bf16.msra.mxu0 %v5090
    %5546 = vmatprep.subr.bf16.mxu0 %v5087
    %5547 = vmatpush1.bf16.msra.mxu0 %v5086
    %5548 = vmatprep.subr.bf16.mxu0 %v5083
    %5549 = vmatpush1.bf16.msra.mxu0 %v5082
    %5550 = vmatprep.subr.bf16.mxu0 %v5079
    %5551 = vmatpush1.bf16.msra.mxu0 %v5078
    %5552 = vmatprep.subr.bf16.mxu0 %v5075
    %5553 = vmatpush1.bf16.msra.mxu0 %v5074
    %5554 = vmatprep.subr.bf16.mxu0 %v5071
    %5555 = vmatpush1.bf16.msra.mxu0 %v5070
    %5556 = vmatprep.subr.bf16.mxu0 %v5131
    %5557 = vmatpush2.bf16.msra.mxu0 %v5130
    %5558 = vmatprep.subr.bf16.mxu0 %v5127
    %5559 = vmatpush2.bf16.msra.mxu0 %v5126
    %5560 = vmatprep.subr.bf16.mxu0 %v5123
    %5561 = vmatpush2.bf16.msra.mxu0 %v5122
    %5562 = vmatprep.subr.bf16.mxu0 %v5119
    %5563 = vmatpush2.bf16.msra.mxu0 %v5118
    %5564 = vmatprep.subr.bf16.mxu0 %v5115
    %5565 = vmatpush2.bf16.msra.mxu0 %v5114
    %5566 = vmatprep.subr.bf16.mxu0 %v5111
    %5567 = vmatpush2.bf16.msra.mxu0 %v5110
    %5568 = vmatprep.subr.bf16.mxu0 %v5107
    %5569 = vmatpush2.bf16.msra.mxu0 %v5106
    %5570 = vmatprep.subr.bf16.mxu0 %v5103
    %5571 = vmatpush2.bf16.msra.mxu0 %v5102
    %5572 = vmatprep.mubr.bf16.mxu0 %v3893
    %5573 = vmatmul.mubr.bf16.gmra.mxu0 %v3892
    %v5574 = vpop.f32.mrf.mxu0
    %v5575 = vadd.f32 %v5532, %v5574
    %v5576 = vpop.f32.mrf.mxu0
    %v5577 = vadd.f32 %v5534, %v5576
    %v5578 = vpop.f32.mrf.mxu0
    %v5579 = vadd.f32 %v5536, %v5578
    %v5580 = vpop.f32.mrf.mxu0
    %v5581 = vadd.f32 %v5538, %v5580
    %5582 = vdwg.mxu0
    %5583 = vmatprep.subr.bf16.mxu0 %v5163
    %5584 = vmatpush1.bf16.msra.mxu0 %v5162
    %5585 = vmatprep.subr.bf16.mxu0 %v5159
    %5586 = vmatpush1.bf16.msra.mxu0 %v5158
    %5587 = vmatprep.subr.bf16.mxu0 %v5155
    %5588 = vmatpush1.bf16.msra.mxu0 %v5154
    %5589 = vmatprep.subr.bf16.mxu0 %v5151
    %5590 = vmatpush1.bf16.msra.mxu0 %v5150
    %5591 = vmatprep.subr.bf16.mxu0 %v5147
    %5592 = vmatpush1.bf16.msra.mxu0 %v5146
    %5593 = vmatprep.subr.bf16.mxu0 %v5143
    %5594 = vmatpush1.bf16.msra.mxu0 %v5142
    %5595 = vmatprep.subr.bf16.mxu0 %v5139
    %5596 = vmatpush1.bf16.msra.mxu0 %v5138
    %5597 = vmatprep.subr.bf16.mxu0 %v5135
    %5598 = vmatpush1.bf16.msra.mxu0 %v5134
    %5599 = vmatprep.subr.bf16.mxu0 %v5195
    %5600 = vmatpush2.bf16.msra.mxu0 %v5194
    %5601 = vmatprep.subr.bf16.mxu0 %v5191
    %5602 = vmatpush2.bf16.msra.mxu0 %v5190
    %5603 = vmatprep.subr.bf16.mxu0 %v5187
    %5604 = vmatpush2.bf16.msra.mxu0 %v5186
    %5605 = vmatprep.subr.bf16.mxu0 %v5183
    %5606 = vmatpush2.bf16.msra.mxu0 %v5182
    %5607 = vmatprep.subr.bf16.mxu0 %v5179
    %5608 = vmatpush2.bf16.msra.mxu0 %v5178
    %5609 = vmatprep.subr.bf16.mxu0 %v5175
    %5610 = vmatpush2.bf16.msra.mxu0 %v5174
    %5611 = vmatprep.subr.bf16.mxu0 %v5171
    %5612 = vmatpush2.bf16.msra.mxu0 %v5170
    %5613 = vmatprep.subr.bf16.mxu0 %v5167
    %5614 = vmatpush2.bf16.msra.mxu0 %v5166
    %5615 = vmatprep.mubr.bf16.mxu0 %v3895
    %5616 = vmatmul.mubr.bf16.gmra.mxu0 %v3894
    %v5617 = vpop.f32.mrf.mxu0
    %v5618 = vadd.f32 %v5575, %v5617
    %v5619 = vpop.f32.mrf.mxu0
    %v5620 = vadd.f32 %v5577, %v5619
    %v5621 = vpop.f32.mrf.mxu0
    %v5622 = vadd.f32 %v5579, %v5621
    %v5623 = vpop.f32.mrf.mxu0
    %v5624 = vadd.f32 %v5581, %v5623
    %5625 = vdwg.mxu0
    %5626 = vmatprep.subr.bf16.mxu0 %v4973
    %5627 = vmatpush1.bf16.msra.mxu0 %v4972
    %5628 = vmatprep.subr.bf16.mxu0 %v4969
    %5629 = vmatpush1.bf16.msra.mxu0 %v4968
    %5630 = vmatprep.subr.bf16.mxu0 %v4965
    %5631 = vmatpush1.bf16.msra.mxu0 %v4964
    %5632 = vmatprep.subr.bf16.mxu0 %v4961
    %5633 = vmatpush1.bf16.msra.mxu0 %v4960
    %5634 = vmatprep.subr.bf16.mxu0 %v4957
    %5635 = vmatpush1.bf16.msra.mxu0 %v4956
    %5636 = vmatprep.subr.bf16.mxu0 %v4953
    %5637 = vmatpush1.bf16.msra.mxu0 %v4952
    %5638 = vmatprep.subr.bf16.mxu0 %v4949
    %5639 = vmatpush1.bf16.msra.mxu0 %v4948
    %5640 = vmatprep.subr.bf16.mxu0 %v4945
    %5641 = vmatpush1.bf16.msra.mxu0 %v4944
    %5642 = vmatprep.subr.bf16.mxu0 %v5005
    %5643 = vmatpush2.bf16.msra.mxu0 %v5004
    %5644 = vmatprep.subr.bf16.mxu0 %v5001
    %5645 = vmatpush2.bf16.msra.mxu0 %v5000
    %5646 = vmatprep.subr.bf16.mxu0 %v4997
    %5647 = vmatpush2.bf16.msra.mxu0 %v4996
    %5648 = vmatprep.subr.bf16.mxu0 %v4993
    %5649 = vmatpush2.bf16.msra.mxu0 %v4992
    %5650 = vmatprep.subr.bf16.mxu0 %v4989
    %5651 = vmatpush2.bf16.msra.mxu0 %v4988
    %5652 = vmatprep.subr.bf16.mxu0 %v4985
    %5653 = vmatpush2.bf16.msra.mxu0 %v4984
    %5654 = vmatprep.subr.bf16.mxu0 %v4981
    %5655 = vmatpush2.bf16.msra.mxu0 %v4980
    %5656 = vmatprep.subr.bf16.mxu0 %v4977
    %5657 = vmatpush2.bf16.msra.mxu0 %v4976
    %5658 = vmatprep.mubr.bf16.mxu0 %v3889
    %5659 = vmatmul.mubr.bf16.gmra.mxu0 %v3888
    %v5660 = vpop.f32.mrf.mxu0
    %v5661 = vadd.f32 %v4165, %v5660
    %v5662 = vpop.f32.mrf.mxu0
    %v5663 = vadd.f32 %v4169, %v5662
    %v5664 = vpop.f32.mrf.mxu0
    %v5665 = vadd.f32 %v4165, %v5664
    %v5666 = vpop.f32.mrf.mxu0
    %v5667 = vadd.f32 %v4169, %v5666
    %5668 = vdwg.mxu0
    %5669 = vmatprep.subr.bf16.mxu0 %v5037
    %5670 = vmatpush1.bf16.msra.mxu0 %v5036
    %5671 = vmatprep.subr.bf16.mxu0 %v5033
    %5672 = vmatpush1.bf16.msra.mxu0 %v5032
    %5673 = vmatprep.subr.bf16.mxu0 %v5029
    %5674 = vmatpush1.bf16.msra.mxu0 %v5028
    %5675 = vmatprep.subr.bf16.mxu0 %v5025
    %5676 = vmatpush1.bf16.msra.mxu0 %v5024
    %5677 = vmatprep.subr.bf16.mxu0 %v5021
    %5678 = vmatpush1.bf16.msra.mxu0 %v5020
    %5679 = vmatprep.subr.bf16.mxu0 %v5017
    %5680 = vmatpush1.bf16.msra.mxu0 %v5016
    %5681 = vmatprep.subr.bf16.mxu0 %v5013
    %5682 = vmatpush1.bf16.msra.mxu0 %v5012
    %5683 = vmatprep.subr.bf16.mxu0 %v5009
    %5684 = vmatpush1.bf16.msra.mxu0 %v5008
    %5685 = vmatprep.subr.bf16.mxu0 %v5069
    %5686 = vmatpush2.bf16.msra.mxu0 %v5068
    %5687 = vmatprep.subr.bf16.mxu0 %v5065
    %5688 = vmatpush2.bf16.msra.mxu0 %v5064
    %5689 = vmatprep.subr.bf16.mxu0 %v5061
    %5690 = vmatpush2.bf16.msra.mxu0 %v5060
    %5691 = vmatprep.subr.bf16.mxu0 %v5057
    %5692 = vmatpush2.bf16.msra.mxu0 %v5056
    %5693 = vmatprep.subr.bf16.mxu0 %v5053
    %5694 = vmatpush2.bf16.msra.mxu0 %v5052
    %5695 = vmatprep.subr.bf16.mxu0 %v5049
    %5696 = vmatpush2.bf16.msra.mxu0 %v5048
    %5697 = vmatprep.subr.bf16.mxu0 %v5045
    %5698 = vmatpush2.bf16.msra.mxu0 %v5044
    %5699 = vmatprep.subr.bf16.mxu0 %v5041
    %5700 = vmatpush2.bf16.msra.mxu0 %v5040
    %5701 = vmatprep.mubr.bf16.mxu0 %v3891
    %5702 = vmatmul.mubr.bf16.gmra.mxu0 %v3890
    %v5703 = vpop.f32.mrf.mxu0
    %v5704 = vadd.f32 %v5661, %v5703
    %v5705 = vpop.f32.mrf.mxu0
    %v5706 = vadd.f32 %v5663, %v5705
    %v5707 = vpop.f32.mrf.mxu0
    %v5708 = vadd.f32 %v5665, %v5707
    %v5709 = vpop.f32.mrf.mxu0
    %v5710 = vadd.f32 %v5667, %v5709
    %5711 = vdwg.mxu0
    %5712 = vmatprep.subr.bf16.mxu0 %v5101
    %5713 = vmatpush1.bf16.msra.mxu0 %v5100
    %5714 = vmatprep.subr.bf16.mxu0 %v5097
    %5715 = vmatpush1.bf16.msra.mxu0 %v5096
    %5716 = vmatprep.subr.bf16.mxu0 %v5093
    %5717 = vmatpush1.bf16.msra.mxu0 %v5092
    %5718 = vmatprep.subr.bf16.mxu0 %v5089
    %5719 = vmatpush1.bf16.msra.mxu0 %v5088
    %5720 = vmatprep.subr.bf16.mxu0 %v5085
    %5721 = vmatpush1.bf16.msra.mxu0 %v5084
    %5722 = vmatprep.subr.bf16.mxu0 %v5081
    %5723 = vmatpush1.bf16.msra.mxu0 %v5080
    %5724 = vmatprep.subr.bf16.mxu0 %v5077
    %5725 = vmatpush1.bf16.msra.mxu0 %v5076
    %5726 = vmatprep.subr.bf16.mxu0 %v5073
    %5727 = vmatpush1.bf16.msra.mxu0 %v5072
    %5728 = vmatprep.subr.bf16.mxu0 %v5133
    %5729 = vmatpush2.bf16.msra.mxu0 %v5132
    %5730 = vmatprep.subr.bf16.mxu0 %v5129
    %5731 = vmatpush2.bf16.msra.mxu0 %v5128
    %5732 = vmatprep.subr.bf16.mxu0 %v5125
    %5733 = vmatpush2.bf16.msra.mxu0 %v5124
    %5734 = vmatprep.subr.bf16.mxu0 %v5121
    %5735 = vmatpush2.bf16.msra.mxu0 %v5120
    %5736 = vmatprep.subr.bf16.mxu0 %v5117
    %5737 = vmatpush2.bf16.msra.mxu0 %v5116
    %5738 = vmatprep.subr.bf16.mxu0 %v5113
    %5739 = vmatpush2.bf16.msra.mxu0 %v5112
    %5740 = vmatprep.subr.bf16.mxu0 %v5109
    %5741 = vmatpush2.bf16.msra.mxu0 %v5108
    %5742 = vmatprep.subr.bf16.mxu0 %v5105
    %5743 = vmatpush2.bf16.msra.mxu0 %v5104
    %5744 = vmatprep.mubr.bf16.mxu0 %v3893
    %5745 = vmatmul.mubr.bf16.gmra.mxu0 %v3892
    %v5746 = vpop.f32.mrf.mxu0
    %v5747 = vadd.f32 %v5704, %v5746
    %v5748 = vpop.f32.mrf.mxu0
    %v5749 = vadd.f32 %v5706, %v5748
    %v5750 = vpop.f32.mrf.mxu0
    %v5751 = vadd.f32 %v5708, %v5750
    %v5752 = vpop.f32.mrf.mxu0
    %v5753 = vadd.f32 %v5710, %v5752
    %5754 = vdwg.mxu0
    %5755 = vmatprep.subr.bf16.mxu0 %v5165
    %5756 = vmatpush1.bf16.msra.mxu0 %v5164
    %5757 = vmatprep.subr.bf16.mxu0 %v5161
    %5758 = vmatpush1.bf16.msra.mxu0 %v5160
    %5759 = vmatprep.subr.bf16.mxu0 %v5157
    %5760 = vmatpush1.bf16.msra.mxu0 %v5156
    %5761 = vmatprep.subr.bf16.mxu0 %v5153
    %5762 = vmatpush1.bf16.msra.mxu0 %v5152
    %5763 = vmatprep.subr.bf16.mxu0 %v5149
    %5764 = vmatpush1.bf16.msra.mxu0 %v5148
    %5765 = vmatprep.subr.bf16.mxu0 %v5145
    %5766 = vmatpush1.bf16.msra.mxu0 %v5144
    %5767 = vmatprep.subr.bf16.mxu0 %v5141
    %5768 = vmatpush1.bf16.msra.mxu0 %v5140
    %5769 = vmatprep.subr.bf16.mxu0 %v5137
    %5770 = vmatpush1.bf16.msra.mxu0 %v5136
    %5771 = vmatprep.subr.bf16.mxu0 %v5197
    %5772 = vmatpush2.bf16.msra.mxu0 %v5196
    %5773 = vmatprep.subr.bf16.mxu0 %v5193
    %5774 = vmatpush2.bf16.msra.mxu0 %v5192
    %5775 = vmatprep.subr.bf16.mxu0 %v5189
    %5776 = vmatpush2.bf16.msra.mxu0 %v5188
    %5777 = vmatprep.subr.bf16.mxu0 %v5185
    %5778 = vmatpush2.bf16.msra.mxu0 %v5184
    %5779 = vmatprep.subr.bf16.mxu0 %v5181
    %5780 = vmatpush2.bf16.msra.mxu0 %v5180
    %5781 = vmatprep.subr.bf16.mxu0 %v5177
    %5782 = vmatpush2.bf16.msra.mxu0 %v5176
    %5783 = vmatprep.subr.bf16.mxu0 %v5173
    %5784 = vmatpush2.bf16.msra.mxu0 %v5172
    %5785 = vmatprep.subr.bf16.mxu0 %v5169
    %5786 = vmatpush2.bf16.msra.mxu0 %v5168
    %5787 = vmatprep.mubr.bf16.mxu0 %v3895
    %5788 = vmatmul.mubr.bf16.gmra.mxu0 %v3894
    %v5789 = vpop.f32.mrf.mxu0
    %v5790 = vadd.f32 %v5747, %v5789
    %v5791 = vpop.f32.mrf.mxu0
    %v5792 = vadd.f32 %v5749, %v5791
    %v5793 = vpop.f32.mrf.mxu0
    %v5794 = vadd.f32 %v5751, %v5793
    %v5795 = vpop.f32.mrf.mxu0
    %v5796 = vadd.f32 %v5753, %v5795
    %5797 = vdwg.mxu0
    %vm5798 = vcmp.ge.f32.partialorder %v5618, 0.0
    %vm5799 = vcmp.ge.f32.partialorder %v5620, 0.0
    %vm5800 = vcmp.ge.f32.partialorder %v5790, 0.0
    %vm5801 = vcmp.ge.f32.partialorder %v5792, 0.0
    %vm5802 = vcmp.ge.f32.partialorder %v5622, 0.0
    %vm5803 = vcmp.ge.f32.partialorder %v5624, 0.0
    %vm5804 = vcmp.ge.f32.partialorder %v5794, 0.0
    %vm5805 = vcmp.ge.f32.partialorder %v5796, 0.0
    %v5806 = vmul.f32 %v5618, 0.2
    %v5807 = vmul.f32 %v5620, 0.2
    %v5808 = vmul.f32 %v5790, 0.2
    %v5809 = vmul.f32 %v5792, 0.2
    %v5810 = vmul.f32 %v5622, 0.2
    %v5811 = vmul.f32 %v5624, 0.2
    %v5812 = vmul.f32 %v5794, 0.2
    %v5813 = vmul.f32 %v5796, 0.2
    %v5814 = vsel %vm5798, %v5618, %v5806
    %v5815 = vsel %vm5799, %v5620, %v5807
    %v5816 = vsel %vm5800, %v5790, %v5808
    %v5817 = vsel %vm5801, %v5792, %v5809
    %v5818 = vsel %vm5802, %v5622, %v5810
    %v5819 = vsel %vm5803, %v5624, %v5811
    %v5820 = vsel %vm5804, %v5794, %v5812
    %v5821 = vsel %vm5805, %v5796, %v5813
    %v5822 = vpack.c.bf16 %v5818, %v5814
    %v5823 = vpack.c.bf16 %v5819, %v5815
    %v5824 = vpack.c.bf16 %v5820, %v5816
    %v5825 = vpack.c.bf16 %v5821, %v5817
    %v5826 = vld [vmem:[#allocation10] sm:$0xff]
    %v5827 = vld [vmem:[#allocation10 + $0x8] sm:$0xff]
    %v5828 = vld [vmem:[#allocation10 + $0x10] sm:$0xff]
    %v5829 = vld [vmem:[#allocation10 + $0x18] sm:$0xff]
    %v5830 = vld [vmem:[#allocation10 + $0x20] sm:$0xff]
    %v5831 = vld [vmem:[#allocation10 + $0x28] sm:$0xff]
    %v5832 = vld [vmem:[#allocation10 + $0x30] sm:$0xff]
    %v5833 = vld [vmem:[#allocation10 + $0x38] sm:$0xff]
    %v5834 = vld [vmem:[#allocation10 + $0x40] sm:$0xff]
    %v5835 = vld [vmem:[#allocation10 + $0x48] sm:$0xff]
    %v5836 = vld [vmem:[#allocation10 + $0x50] sm:$0xff]
    %v5837 = vld [vmem:[#allocation10 + $0x58] sm:$0xff]
    %v5838 = vld [vmem:[#allocation10 + $0x60] sm:$0xff]
    %v5839 = vld [vmem:[#allocation10 + $0x68] sm:$0xff]
    %v5840 = vld [vmem:[#allocation10 + $0x70] sm:$0xff]
    %v5841 = vld [vmem:[#allocation10 + $0x78] sm:$0xff]
    %v5842 = vld [vmem:[#allocation10 + $0x80] sm:$0xff]
    %v5843 = vld [vmem:[#allocation10 + $0x88] sm:$0xff]
    %v5844 = vld [vmem:[#allocation10 + $0x90] sm:$0xff]
    %v5845 = vld [vmem:[#allocation10 + $0x98] sm:$0xff]
    %v5846 = vld [vmem:[#allocation10 + $0xa0] sm:$0xff]
    %v5847 = vld [vmem:[#allocation10 + $0xa8] sm:$0xff]
    %v5848 = vld [vmem:[#allocation10 + $0xb0] sm:$0xff]
    %v5849 = vld [vmem:[#allocation10 + $0xb8] sm:$0xff]
    %v5850 = vld [vmem:[#allocation10 + $0xc0] sm:$0xff]
    %v5851 = vld [vmem:[#allocation10 + $0xc8] sm:$0xff]
    %v5852 = vld [vmem:[#allocation10 + $0xd0] sm:$0xff]
    %v5853 = vld [vmem:[#allocation10 + $0xd8] sm:$0xff]
    %v5854 = vld [vmem:[#allocation10 + $0xe0] sm:$0xff]
    %v5855 = vld [vmem:[#allocation10 + $0xe8] sm:$0xff]
    %v5856 = vld [vmem:[#allocation10 + $0xf0] sm:$0xff]
    %v5857 = vld [vmem:[#allocation10 + $0xf8] sm:$0xff]
    %v5858 = vld [vmem:[#allocation10 + $0x100] sm:$0xff]
    %v5859 = vld [vmem:[#allocation10 + $0x108] sm:$0xff]
    %v5860 = vld [vmem:[#allocation10 + $0x110] sm:$0xff]
    %v5861 = vld [vmem:[#allocation10 + $0x118] sm:$0xff]
    %v5862 = vld [vmem:[#allocation10 + $0x120] sm:$0xff]
    %v5863 = vld [vmem:[#allocation10 + $0x128] sm:$0xff]
    %v5864 = vld [vmem:[#allocation10 + $0x130] sm:$0xff]
    %v5865 = vld [vmem:[#allocation10 + $0x138] sm:$0xff]
    %v5866 = vld [vmem:[#allocation10 + $0x140] sm:$0xff]
    %v5867 = vld [vmem:[#allocation10 + $0x148] sm:$0xff]
    %v5868 = vld [vmem:[#allocation10 + $0x150] sm:$0xff]
    %v5869 = vld [vmem:[#allocation10 + $0x158] sm:$0xff]
    %v5870 = vld [vmem:[#allocation10 + $0x160] sm:$0xff]
    %v5871 = vld [vmem:[#allocation10 + $0x168] sm:$0xff]
    %v5872 = vld [vmem:[#allocation10 + $0x170] sm:$0xff]
    %v5873 = vld [vmem:[#allocation10 + $0x178] sm:$0xff]
    %v5874 = vld [vmem:[#allocation10 + $0x180] sm:$0xff]
    %v5875 = vld [vmem:[#allocation10 + $0x188] sm:$0xff]
    %v5876 = vld [vmem:[#allocation10 + $0x190] sm:$0xff]
    %v5877 = vld [vmem:[#allocation10 + $0x198] sm:$0xff]
    %v5878 = vld [vmem:[#allocation10 + $0x1a0] sm:$0xff]
    %v5879 = vld [vmem:[#allocation10 + $0x1a8] sm:$0xff]
    %v5880 = vld [vmem:[#allocation10 + $0x1b0] sm:$0xff]
    %v5881 = vld [vmem:[#allocation10 + $0x1b8] sm:$0xff]
    %v5882 = vld [vmem:[#allocation10 + $0x1c0] sm:$0xff]
    %v5883 = vld [vmem:[#allocation10 + $0x1c8] sm:$0xff]
    %v5884 = vld [vmem:[#allocation10 + $0x1d0] sm:$0xff]
    %v5885 = vld [vmem:[#allocation10 + $0x1d8] sm:$0xff]
    %v5886 = vld [vmem:[#allocation10 + $0x1e0] sm:$0xff]
    %v5887 = vld [vmem:[#allocation10 + $0x1e8] sm:$0xff]
    %v5888 = vld [vmem:[#allocation10 + $0x1f0] sm:$0xff]
    %v5889 = vld [vmem:[#allocation10 + $0x1f8] sm:$0xff]
    %v5890 = vld [vmem:[#allocation12] sm:$0x3]
    %v5892 = vlaneseq
    %v5893 = vshrl.u32 %v5892, 7
    %v5894 = vsub.s32 0, %v5893
    %v5895 = vrot.slane %v5890, %v5894
    %v5896 = vlaneseq
    %v5897 = vshrl.u32 %v5896, 7
    %v5898 = vsub.s32 1, %v5897
    %v5899 = vrot.slane %v5890, %v5898
    %v5966 = vunpack.c.l.b16 %v5826
    %v5967 = vunpack.c.h.b16 %v5826
    %v5968 = vunpack.c.l.b16 %v5827
    %v5969 = vunpack.c.h.b16 %v5827
    %v5970 = vunpack.c.l.b16 %v5828
    %v5971 = vunpack.c.h.b16 %v5828
    %v5972 = vunpack.c.l.b16 %v5829
    %v5973 = vunpack.c.h.b16 %v5829
    %v5974 = vunpack.c.l.b16 %v5830
    %v5975 = vunpack.c.h.b16 %v5830
    %v5976 = vunpack.c.l.b16 %v5831
    %v5977 = vunpack.c.h.b16 %v5831
    %v5978 = vunpack.c.l.b16 %v5832
    %v5979 = vunpack.c.h.b16 %v5832
    %v5980 = vunpack.c.l.b16 %v5833
    %v5981 = vunpack.c.h.b16 %v5833
    %v5982 = vunpack.c.l.b16 %v5834
    %v5983 = vunpack.c.h.b16 %v5834
    %v5984 = vunpack.c.l.b16 %v5835
    %v5985 = vunpack.c.h.b16 %v5835
    %v5986 = vunpack.c.l.b16 %v5836
    %v5987 = vunpack.c.h.b16 %v5836
    %v5988 = vunpack.c.l.b16 %v5837
    %v5989 = vunpack.c.h.b16 %v5837
    %v5990 = vunpack.c.l.b16 %v5838
    %v5991 = vunpack.c.h.b16 %v5838
    %v5992 = vunpack.c.l.b16 %v5839
    %v5993 = vunpack.c.h.b16 %v5839
    %v5994 = vunpack.c.l.b16 %v5840
    %v5995 = vunpack.c.h.b16 %v5840
    %v5996 = vunpack.c.l.b16 %v5841
    %v5997 = vunpack.c.h.b16 %v5841
    %v5998 = vunpack.c.l.b16 %v5842
    %v5999 = vunpack.c.h.b16 %v5842
    %v6000 = vunpack.c.l.b16 %v5843
    %v6001 = vunpack.c.h.b16 %v5843
    %v6002 = vunpack.c.l.b16 %v5844
    %v6003 = vunpack.c.h.b16 %v5844
    %v6004 = vunpack.c.l.b16 %v5845
    %v6005 = vunpack.c.h.b16 %v5845
    %v6006 = vunpack.c.l.b16 %v5846
    %v6007 = vunpack.c.h.b16 %v5846
    %v6008 = vunpack.c.l.b16 %v5847
    %v6009 = vunpack.c.h.b16 %v5847
    %v6010 = vunpack.c.l.b16 %v5848
    %v6011 = vunpack.c.h.b16 %v5848
    %v6012 = vunpack.c.l.b16 %v5849
    %v6013 = vunpack.c.h.b16 %v5849
    %v6014 = vunpack.c.l.b16 %v5850
    %v6015 = vunpack.c.h.b16 %v5850
    %v6016 = vunpack.c.l.b16 %v5851
    %v6017 = vunpack.c.h.b16 %v5851
    %v6018 = vunpack.c.l.b16 %v5852
    %v6019 = vunpack.c.h.b16 %v5852
    %v6020 = vunpack.c.l.b16 %v5853
    %v6021 = vunpack.c.h.b16 %v5853
    %v6022 = vunpack.c.l.b16 %v5854
    %v6023 = vunpack.c.h.b16 %v5854
    %v6024 = vunpack.c.l.b16 %v5855
    %v6025 = vunpack.c.h.b16 %v5855
    %v6026 = vunpack.c.l.b16 %v5856
    %v6027 = vunpack.c.h.b16 %v5856
    %v6028 = vunpack.c.l.b16 %v5857
    %v6029 = vunpack.c.h.b16 %v5857
    %v6030 = vunpack.c.l.b16 %v5858
    %v6031 = vunpack.c.h.b16 %v5858
    %v6032 = vunpack.c.l.b16 %v5859
    %v6033 = vunpack.c.h.b16 %v5859
    %v6034 = vunpack.c.l.b16 %v5860
    %v6035 = vunpack.c.h.b16 %v5860
    %v6036 = vunpack.c.l.b16 %v5861
    %v6037 = vunpack.c.h.b16 %v5861
    %v6038 = vunpack.c.l.b16 %v5862
    %v6039 = vunpack.c.h.b16 %v5862
    %v6040 = vunpack.c.l.b16 %v5863
    %v6041 = vunpack.c.h.b16 %v5863
    %v6042 = vunpack.c.l.b16 %v5864
    %v6043 = vunpack.c.h.b16 %v5864
    %v6044 = vunpack.c.l.b16 %v5865
    %v6045 = vunpack.c.h.b16 %v5865
    %v6046 = vunpack.c.l.b16 %v5866
    %v6047 = vunpack.c.h.b16 %v5866
    %v6048 = vunpack.c.l.b16 %v5867
    %v6049 = vunpack.c.h.b16 %v5867
    %v6050 = vunpack.c.l.b16 %v5868
    %v6051 = vunpack.c.h.b16 %v5868
    %v6052 = vunpack.c.l.b16 %v5869
    %v6053 = vunpack.c.h.b16 %v5869
    %v6054 = vunpack.c.l.b16 %v5870
    %v6055 = vunpack.c.h.b16 %v5870
    %v6056 = vunpack.c.l.b16 %v5871
    %v6057 = vunpack.c.h.b16 %v5871
    %v6058 = vunpack.c.l.b16 %v5872
    %v6059 = vunpack.c.h.b16 %v5872
    %v6060 = vunpack.c.l.b16 %v5873
    %v6061 = vunpack.c.h.b16 %v5873
    %v6062 = vunpack.c.l.b16 %v5874
    %v6063 = vunpack.c.h.b16 %v5874
    %v6064 = vunpack.c.l.b16 %v5875
    %v6065 = vunpack.c.h.b16 %v5875
    %v6066 = vunpack.c.l.b16 %v5876
    %v6067 = vunpack.c.h.b16 %v5876
    %v6068 = vunpack.c.l.b16 %v5877
    %v6069 = vunpack.c.h.b16 %v5877
    %v6070 = vunpack.c.l.b16 %v5878
    %v6071 = vunpack.c.h.b16 %v5878
    %v6072 = vunpack.c.l.b16 %v5879
    %v6073 = vunpack.c.h.b16 %v5879
    %v6074 = vunpack.c.l.b16 %v5880
    %v6075 = vunpack.c.h.b16 %v5880
    %v6076 = vunpack.c.l.b16 %v5881
    %v6077 = vunpack.c.h.b16 %v5881
    %v6078 = vunpack.c.l.b16 %v5882
    %v6079 = vunpack.c.h.b16 %v5882
    %v6080 = vunpack.c.l.b16 %v5883
    %v6081 = vunpack.c.h.b16 %v5883
    %v6082 = vunpack.c.l.b16 %v5884
    %v6083 = vunpack.c.h.b16 %v5884
    %v6084 = vunpack.c.l.b16 %v5885
    %v6085 = vunpack.c.h.b16 %v5885
    %v6086 = vunpack.c.l.b16 %v5886
    %v6087 = vunpack.c.h.b16 %v5886
    %v6088 = vunpack.c.l.b16 %v5887
    %v6089 = vunpack.c.h.b16 %v5887
    %v6090 = vunpack.c.l.b16 %v5888
    %v6091 = vunpack.c.h.b16 %v5888
    %v6092 = vunpack.c.l.b16 %v5889
    %v6093 = vunpack.c.h.b16 %v5889
    %v6094 = vpack.c.b16 %v5968, %v5966
    %v6095 = vpack.c.b16 %v5969, %v5967
    %v6096 = vpack.c.b16 %v5972, %v5970
    %v6097 = vpack.c.b16 %v5973, %v5971
    %v6098 = vpack.c.b16 %v5976, %v5974
    %v6099 = vpack.c.b16 %v5977, %v5975
    %v6100 = vpack.c.b16 %v5980, %v5978
    %v6101 = vpack.c.b16 %v5981, %v5979
    %v6102 = vpack.c.b16 %v5984, %v5982
    %v6103 = vpack.c.b16 %v5985, %v5983
    %v6104 = vpack.c.b16 %v5988, %v5986
    %v6105 = vpack.c.b16 %v5989, %v5987
    %v6106 = vpack.c.b16 %v5992, %v5990
    %v6107 = vpack.c.b16 %v5993, %v5991
    %v6108 = vpack.c.b16 %v5996, %v5994
    %v6109 = vpack.c.b16 %v5997, %v5995
    %v6110 = vpack.c.b16 %v6000, %v5998
    %v6111 = vpack.c.b16 %v6001, %v5999
    %v6112 = vpack.c.b16 %v6004, %v6002
    %v6113 = vpack.c.b16 %v6005, %v6003
    %v6114 = vpack.c.b16 %v6008, %v6006
    %v6115 = vpack.c.b16 %v6009, %v6007
    %v6116 = vpack.c.b16 %v6012, %v6010
    %v6117 = vpack.c.b16 %v6013, %v6011
    %v6118 = vpack.c.b16 %v6016, %v6014
    %v6119 = vpack.c.b16 %v6017, %v6015
    %v6120 = vpack.c.b16 %v6020, %v6018
    %v6121 = vpack.c.b16 %v6021, %v6019
    %v6122 = vpack.c.b16 %v6024, %v6022
    %v6123 = vpack.c.b16 %v6025, %v6023
    %v6124 = vpack.c.b16 %v6028, %v6026
    %v6125 = vpack.c.b16 %v6029, %v6027
    %v6126 = vpack.c.b16 %v6032, %v6030
    %v6127 = vpack.c.b16 %v6033, %v6031
    %v6128 = vpack.c.b16 %v6036, %v6034
    %v6129 = vpack.c.b16 %v6037, %v6035
    %v6130 = vpack.c.b16 %v6040, %v6038
    %v6131 = vpack.c.b16 %v6041, %v6039
    %v6132 = vpack.c.b16 %v6044, %v6042
    %v6133 = vpack.c.b16 %v6045, %v6043
    %v6134 = vpack.c.b16 %v6048, %v6046
    %v6135 = vpack.c.b16 %v6049, %v6047
    %v6136 = vpack.c.b16 %v6052, %v6050
    %v6137 = vpack.c.b16 %v6053, %v6051
    %v6138 = vpack.c.b16 %v6056, %v6054
    %v6139 = vpack.c.b16 %v6057, %v6055
    %v6140 = vpack.c.b16 %v6060, %v6058
    %v6141 = vpack.c.b16 %v6061, %v6059
    %v6142 = vpack.c.b16 %v6064, %v6062
    %v6143 = vpack.c.b16 %v6065, %v6063
    %v6144 = vpack.c.b16 %v6068, %v6066
    %v6145 = vpack.c.b16 %v6069, %v6067
    %v6146 = vpack.c.b16 %v6072, %v6070
    %v6147 = vpack.c.b16 %v6073, %v6071
    %v6148 = vpack.c.b16 %v6076, %v6074
    %v6149 = vpack.c.b16 %v6077, %v6075
    %v6150 = vpack.c.b16 %v6080, %v6078
    %v6151 = vpack.c.b16 %v6081, %v6079
    %v6152 = vpack.c.b16 %v6084, %v6082
    %v6153 = vpack.c.b16 %v6085, %v6083
    %v6154 = vpack.c.b16 %v6088, %v6086
    %v6155 = vpack.c.b16 %v6089, %v6087
    %v6156 = vpack.c.b16 %v6092, %v6090
    %v6157 = vpack.c.b16 %v6093, %v6091
    %6222 = vmatprep.subr.bf16.mxu0 %v6109
    %6223 = vmatpush1.bf16.msra.mxu0 %v6108
    %6224 = vmatprep.subr.bf16.mxu0 %v6107
    %6225 = vmatpush1.bf16.msra.mxu0 %v6106
    %6226 = vmatprep.subr.bf16.mxu0 %v6105
    %6227 = vmatpush1.bf16.msra.mxu0 %v6104
    %6228 = vmatprep.subr.bf16.mxu0 %v6103
    %6229 = vmatpush1.bf16.msra.mxu0 %v6102
    %6230 = vmatprep.subr.bf16.mxu0 %v6101
    %6231 = vmatpush1.bf16.msra.mxu0 %v6100
    %6232 = vmatprep.subr.bf16.mxu0 %v6099
    %6233 = vmatpush1.bf16.msra.mxu0 %v6098
    %6234 = vmatprep.subr.bf16.mxu0 %v6097
    %6235 = vmatpush1.bf16.msra.mxu0 %v6096
    %6236 = vmatprep.subr.bf16.mxu0 %v6095
    %6237 = vmatpush1.bf16.msra.mxu0 %v6094
    %6238 = vmatprep.subr.bf16.mxu0 %v6125
    %6239 = vmatpush2.bf16.msra.mxu0 %v6124
    %6240 = vmatprep.subr.bf16.mxu0 %v6123
    %6241 = vmatpush2.bf16.msra.mxu0 %v6122
    %6242 = vmatprep.subr.bf16.mxu0 %v6121
    %6243 = vmatpush2.bf16.msra.mxu0 %v6120
    %6244 = vmatprep.subr.bf16.mxu0 %v6119
    %6245 = vmatpush2.bf16.msra.mxu0 %v6118
    %6246 = vmatprep.subr.bf16.mxu0 %v6117
    %6247 = vmatpush2.bf16.msra.mxu0 %v6116
    %6248 = vmatprep.subr.bf16.mxu0 %v6115
    %6249 = vmatpush2.bf16.msra.mxu0 %v6114
    %6250 = vmatprep.subr.bf16.mxu0 %v6113
    %6251 = vmatpush2.bf16.msra.mxu0 %v6112
    %6252 = vmatprep.subr.bf16.mxu0 %v6111
    %6253 = vmatpush2.bf16.msra.mxu0 %v6110
    %6254 = vmatprep.mubr.bf16.mxu0 %v5823
    %6255 = vmatmul.mubr.bf16.gmra.mxu0 %v5822
    %v6256 = vpop.f32.mrf.mxu0
    %v6257 = vadd.f32 %v5895, %v6256
    %v6258 = vpop.f32.mrf.mxu0
    %v6259 = vadd.f32 %v5899, %v6258
    %v6260 = vpop.f32.mrf.mxu0
    %v6261 = vadd.f32 %v5895, %v6260
    %v6262 = vpop.f32.mrf.mxu0
    %v6263 = vadd.f32 %v5899, %v6262
    %6264 = vdwg.mxu0
    %6265 = vmatprep.subr.bf16.mxu0 %v6141
    %6266 = vmatpush1.bf16.msra.mxu0 %v6140
    %6267 = vmatprep.subr.bf16.mxu0 %v6139
    %6268 = vmatpush1.bf16.msra.mxu0 %v6138
    %6269 = vmatprep.subr.bf16.mxu0 %v6137
    %6270 = vmatpush1.bf16.msra.mxu0 %v6136
    %6271 = vmatprep.subr.bf16.mxu0 %v6135
    %6272 = vmatpush1.bf16.msra.mxu0 %v6134
    %6273 = vmatprep.subr.bf16.mxu0 %v6133
    %6274 = vmatpush1.bf16.msra.mxu0 %v6132
    %6275 = vmatprep.subr.bf16.mxu0 %v6131
    %6276 = vmatpush1.bf16.msra.mxu0 %v6130
    %6277 = vmatprep.subr.bf16.mxu0 %v6129
    %6278 = vmatpush1.bf16.msra.mxu0 %v6128
    %6279 = vmatprep.subr.bf16.mxu0 %v6127
    %6280 = vmatpush1.bf16.msra.mxu0 %v6126
    %6281 = vmatprep.subr.bf16.mxu0 %v6157
    %6282 = vmatpush2.bf16.msra.mxu0 %v6156
    %6283 = vmatprep.subr.bf16.mxu0 %v6155
    %6284 = vmatpush2.bf16.msra.mxu0 %v6154
    %6285 = vmatprep.subr.bf16.mxu0 %v6153
    %6286 = vmatpush2.bf16.msra.mxu0 %v6152
    %6287 = vmatprep.subr.bf16.mxu0 %v6151
    %6288 = vmatpush2.bf16.msra.mxu0 %v6150
    %6289 = vmatprep.subr.bf16.mxu0 %v6149
    %6290 = vmatpush2.bf16.msra.mxu0 %v6148
    %6291 = vmatprep.subr.bf16.mxu0 %v6147
    %6292 = vmatpush2.bf16.msra.mxu0 %v6146
    %6293 = vmatprep.subr.bf16.mxu0 %v6145
    %6294 = vmatpush2.bf16.msra.mxu0 %v6144
    %6295 = vmatprep.subr.bf16.mxu0 %v6143
    %6296 = vmatpush2.bf16.msra.mxu0 %v6142
    %6297 = vmatprep.mubr.bf16.mxu0 %v5825
    %6298 = vmatmul.mubr.bf16.gmra.mxu0 %v5824
    %v6299 = vpop.f32.mrf.mxu0
    %v6300 = vadd.f32 %v6257, %v6299
    %v6301 = vpop.f32.mrf.mxu0
    %v6302 = vadd.f32 %v6259, %v6301
    %v6303 = vpop.f32.mrf.mxu0
    %v6304 = vadd.f32 %v6261, %v6303
    %v6305 = vpop.f32.mrf.mxu0
    %v6306 = vadd.f32 %v6263, %v6305
    %6307 = vdwg.mxu0
    %vm6308 = vcmp.ge.f32.partialorder %v6300, 0.0
    %vm6309 = vcmp.ge.f32.partialorder %v6302, 0.0
    %vm6310 = vcmp.ge.f32.partialorder %v6304, 0.0
    %vm6311 = vcmp.ge.f32.partialorder %v6306, 0.0
    %v6312 = vmul.f32 %v6300, 0.2
    %v6313 = vmul.f32 %v6302, 0.2
    %v6314 = vmul.f32 %v6304, 0.2
    %v6315 = vmul.f32 %v6306, 0.2
    %v6316 = vsel %vm6308, %v6300, %v6312
    %v6317 = vsel %vm6309, %v6302, %v6313
    %v6318 = vsel %vm6310, %v6304, %v6314
    %v6319 = vsel %vm6311, %v6306, %v6315
    %v6320 = vpack.c.bf16 %v6318, %v6316
    %v6321 = vpack.c.bf16 %v6319, %v6317
    %v6322 = vld [vmem:[#allocation13] sm:$0xf]
    %v6323 = vld [vmem:[#allocation13 + $0x4] sm:$0xf]
    %v6324 = vld [vmem:[#allocation13 + $0x8] sm:$0xf]
    %v6325 = vld [vmem:[#allocation13 + $0xc] sm:$0xf]
    %v6326 = vld [vmem:[#allocation13 + $0x10] sm:$0xf]
    %v6327 = vld [vmem:[#allocation13 + $0x14] sm:$0xf]
    %v6328 = vld [vmem:[#allocation13 + $0x18] sm:$0xf]
    %v6329 = vld [vmem:[#allocation13 + $0x1c] sm:$0xf]
    %v6330 = vld [vmem:[#allocation13 + $0x20] sm:$0xf]
    %v6331 = vld [vmem:[#allocation13 + $0x24] sm:$0xf]
    %v6332 = vld [vmem:[#allocation13 + $0x28] sm:$0xf]
    %v6333 = vld [vmem:[#allocation13 + $0x2c] sm:$0xf]
    %v6334 = vld [vmem:[#allocation13 + $0x30] sm:$0xf]
    %v6335 = vld [vmem:[#allocation13 + $0x34] sm:$0xf]
    %v6336 = vld [vmem:[#allocation13 + $0x38] sm:$0xf]
    %v6337 = vld [vmem:[#allocation13 + $0x3c] sm:$0xf]
    %v6338 = vld [vmem:[#allocation13 + $0x40] sm:$0xf]
    %v6339 = vld [vmem:[#allocation13 + $0x44] sm:$0xf]
    %v6340 = vld [vmem:[#allocation13 + $0x48] sm:$0xf]
    %v6341 = vld [vmem:[#allocation13 + $0x4c] sm:$0xf]
    %v6342 = vld [vmem:[#allocation13 + $0x50] sm:$0xf]
    %v6343 = vld [vmem:[#allocation13 + $0x54] sm:$0xf]
    %v6344 = vld [vmem:[#allocation13 + $0x58] sm:$0xf]
    %v6345 = vld [vmem:[#allocation13 + $0x5c] sm:$0xf]
    %v6346 = vld [vmem:[#allocation13 + $0x60] sm:$0xf]
    %v6347 = vld [vmem:[#allocation13 + $0x64] sm:$0xf]
    %v6348 = vld [vmem:[#allocation13 + $0x68] sm:$0xf]
    %v6349 = vld [vmem:[#allocation13 + $0x6c] sm:$0xf]
    %v6350 = vld [vmem:[#allocation13 + $0x70] sm:$0xf]
    %v6351 = vld [vmem:[#allocation13 + $0x74] sm:$0xf]
    %v6352 = vld [vmem:[#allocation13 + $0x78] sm:$0xf]
    %v6353 = vld [vmem:[#allocation13 + $0x7c] sm:$0xf]
    %v6354 = vld [vmem:[#allocation15] sm:$0x1]
    %v6356 = vlaneseq
    %v6357 = vshrl.u32 %v6356, 7
    %v6358 = vsub.s32 0, %v6357
    %v6359 = vrot.slane %v6354, %v6358
    %v6393 = vunpack.c.l.b16 %v6322
    %v6394 = vunpack.c.l.b16 %v6323
    %v6395 = vunpack.c.l.b16 %v6324
    %v6396 = vunpack.c.l.b16 %v6325
    %v6397 = vunpack.c.l.b16 %v6326
    %v6398 = vunpack.c.l.b16 %v6327
    %v6399 = vunpack.c.l.b16 %v6328
    %v6400 = vunpack.c.l.b16 %v6329
    %v6401 = vunpack.c.l.b16 %v6330
    %v6402 = vunpack.c.l.b16 %v6331
    %v6403 = vunpack.c.l.b16 %v6332
    %v6404 = vunpack.c.l.b16 %v6333
    %v6405 = vunpack.c.l.b16 %v6334
    %v6406 = vunpack.c.l.b16 %v6335
    %v6407 = vunpack.c.l.b16 %v6336
    %v6408 = vunpack.c.l.b16 %v6337
    %v6409 = vunpack.c.l.b16 %v6338
    %v6410 = vunpack.c.l.b16 %v6339
    %v6411 = vunpack.c.l.b16 %v6340
    %v6412 = vunpack.c.l.b16 %v6341
    %v6413 = vunpack.c.l.b16 %v6342
    %v6414 = vunpack.c.l.b16 %v6343
    %v6415 = vunpack.c.l.b16 %v6344
    %v6416 = vunpack.c.l.b16 %v6345
    %v6417 = vunpack.c.l.b16 %v6346
    %v6418 = vunpack.c.l.b16 %v6347
    %v6419 = vunpack.c.l.b16 %v6348
    %v6420 = vunpack.c.l.b16 %v6349
    %v6421 = vunpack.c.l.b16 %v6350
    %v6422 = vunpack.c.l.b16 %v6351
    %v6423 = vunpack.c.l.b16 %v6352
    %v6424 = vunpack.c.l.b16 %v6353
    %v6425 = vpack.c.b16 %v6394, %v6393
    %v6426 = vpack.c.b16 %v6396, %v6395
    %v6427 = vpack.c.b16 %v6398, %v6397
    %v6428 = vpack.c.b16 %v6400, %v6399
    %v6429 = vpack.c.b16 %v6402, %v6401
    %v6430 = vpack.c.b16 %v6404, %v6403
    %v6431 = vpack.c.b16 %v6406, %v6405
    %v6432 = vpack.c.b16 %v6408, %v6407
    %v6433 = vpack.c.b16 %v6410, %v6409
    %v6434 = vpack.c.b16 %v6412, %v6411
    %v6435 = vpack.c.b16 %v6414, %v6413
    %v6436 = vpack.c.b16 %v6416, %v6415
    %v6437 = vpack.c.b16 %v6418, %v6417
    %v6438 = vpack.c.b16 %v6420, %v6419
    %v6439 = vpack.c.b16 %v6422, %v6421
    %v6440 = vpack.c.b16 %v6424, %v6423
    %6457 = vmatprep.subr.bf16.mxu0 0
    %6458 = vmatpush1.bf16.msra.mxu0 %v6432
    %6459 = vmatprep.subr.bf16.mxu0 0
    %6460 = vmatpush1.bf16.msra.mxu0 %v6431
    %6461 = vmatprep.subr.bf16.mxu0 0
    %6462 = vmatpush1.bf16.msra.mxu0 %v6430
    %6463 = vmatprep.subr.bf16.mxu0 0
    %6464 = vmatpush1.bf16.msra.mxu0 %v6429
    %6465 = vmatprep.subr.bf16.mxu0 0
    %6466 = vmatpush1.bf16.msra.mxu0 %v6428
    %6467 = vmatprep.subr.bf16.mxu0 0
    %6468 = vmatpush1.bf16.msra.mxu0 %v6427
    %6469 = vmatprep.subr.bf16.mxu0 0
    %6470 = vmatpush1.bf16.msra.mxu0 %v6426
    %6471 = vmatprep.subr.bf16.mxu0 0
    %6472 = vmatpush1.bf16.msra.mxu0 %v6425
    %6473 = vmatprep.subr.bf16.mxu0 0
    %6474 = vmatpush2.bf16.msra.mxu0 %v6440
    %6475 = vmatprep.subr.bf16.mxu0 0
    %6476 = vmatpush2.bf16.msra.mxu0 %v6439
    %6477 = vmatprep.subr.bf16.mxu0 0
    %6478 = vmatpush2.bf16.msra.mxu0 %v6438
    %6479 = vmatprep.subr.bf16.mxu0 0
    %6480 = vmatpush2.bf16.msra.mxu0 %v6437
    %6481 = vmatprep.subr.bf16.mxu0 0
    %6482 = vmatpush2.bf16.msra.mxu0 %v6436
    %6483 = vmatprep.subr.bf16.mxu0 0
    %6484 = vmatpush2.bf16.msra.mxu0 %v6435
    %6485 = vmatprep.subr.bf16.mxu0 0
    %6486 = vmatpush2.bf16.msra.mxu0 %v6434
    %6487 = vmatprep.subr.bf16.mxu0 0
    %6488 = vmatpush2.bf16.msra.mxu0 %v6433
    %6489 = vmatprep.mubr.bf16.mxu0 %v6321
    %6490 = vmatmul.mubr.bf16.gmra.mxu0 %v6320
    %v6491 = vpop.f32.mrf.mxu0
    %v6492 = vadd.f32 %v6359, %v6491
    %v6493 = vpop.f32.mrf.mxu0
    %v6494 = vpop.f32.mrf.mxu0
    %v6495 = vadd.f32 %v6359, %v6494
    %v6496 = vpop.f32.mrf.mxu0
    %6497 = vdwg.mxu0
    %v6498 = vsub.f32 0.0, %v6492
    %v6499 = vsub.f32 0.0, %v6495
    %v6500 = vmul.f32 %v6498, 1.442695
    %v6501 = vpow.pop %v6500
    %v6502 = vmul.f32 %v6499, 1.442695
    %v6503 = vpow.pop %v6502
    %v6504 = vadd.f32 %v6501, 1.0
    %v6505 = vadd.f32 %v6503, 1.0
    %v6506 = vrcp.pop %v6504
    %v6507 = vmul.f32 1.0, %v6506
    %v6508 = vrcp.pop %v6505
    %v6509 = vmul.f32 1.0, %v6508
    %v6510 = vpack.c.bf16 %v6509, %v6507
    %v6512 = vunpack.c.l.b16 %v6510
    %v6513 = vunpack.c.h.b16 %v6510
    %v6514 = vpack.c.b16 %v6512, %v6512
    %v6515 = vpack.c.b16 %v6513, %v6513
    %6518 = vst [vmem:[%s11] sm:$0xf] %v6514
    %6519 = vst [vmem:[%s11 + $0x4] sm:$0xf] %v6515
    // Predicated region
    $region82: #{discriminator_forward.1} parent=1 // pred_check
      _
    $region83: #{discriminator_forward.1} parent=1 // pred_check_branch
      %6521 = sbr.rel (0) target = $region85
    $region84: #{discriminator_forward.1} parent=1 // pred_region
      _
    $region85: #{discriminator_forward.1} parent=1 // pred_fallthru
      _
    // Predicated region
    $region86: #{discriminator_forward.1} parent=1 // pred_check
      _
    $region87: #{discriminator_forward.1} parent=1 // pred_check_branch
      %6523 = sbr.rel (0) target = $region89
    $region88: #{discriminator_forward.1} parent=1 // pred_region
      _
    $region89: #{discriminator_forward.1} parent=1 // pred_fallthru
      _
    %6524 = vsyncpa [#allocation3], 1
    %6525 = vsyncpa [#allocation5], 1
    %6526 = vsyncpa [#allocation8], 1
    %6527 = vsyncpa [#allocation11], 1
    %6528 = vsyncpa [#allocation14], 1

</llo_original>
